<compile_context>
chip_gen: v7x
topology: tpu7x:2x2x1
jax: 0.10.0
libtpu: 0.0.40
codegen_flags: <defaults>
</compile_context>

<pallas_src>
import jax
import jax.numpy as jnp
from jax.experimental import pallas as pl
from jax.experimental.pallas import tpu as pltpu


# ----------------------------- Pallas kernel --------------------------------
def aelstm_kernel(x_ref,          # (T*B, 2E)  bf16, time-major rows (row = t*B + b)
                  wih_ref,        # (3, 2E, H) bf16, gate order r, z, n
                  whh_ref,        # (3, H, H)  bf16
                  bfold_ref,      # (3, 1, H)  f32   (bih_r+bhh_r, bih_z+bhh_z, bih_n)
                  bhhn_ref,       # (1, H)     f32   (bhh_n, stays inside r*(.))
                  ginb_ref,       # (3, B, H)  f32   backward gate preactivations @ t=T-1
                  bhhnb_ref,      # (1, H)     f32   backward bhh_n
                  wfcf_ref,       # (H, 3)     f32
                  wfcb_ref,       # (H, 3)     f32
                  bfc_ref,        # (1, 3)     f32
                  out_ref):       # (B, 3)     f32
    B = out_ref.shape[0]
    H = whh_ref.shape[-1]
    T = x_ref.shape[0] // B

    # ---- precompute: input-side projections for all T*B rows (off the serial chain),
    #      one MXU matmul per gate, biases already folded in (r,z fully; n only b_in).
    xflat = x_ref[...]                                            # (T*B, 2E) bf16
    gin_r = jnp.dot(xflat, wih_ref[0],
                    preferred_element_type=jnp.float32) + bfold_ref[0]
    gin_z = jnp.dot(xflat, wih_ref[1],
                    preferred_element_type=jnp.float32) + bfold_ref[1]
    gin_n = jnp.dot(xflat, wih_ref[2],
                    preferred_element_type=jnp.float32) + bfold_ref[2]

    bhn = jnp.broadcast_to(bhhn_ref[...], (B, H))                 # hoisted broadcast

    # ---- forward recurrence: only the h @ W_hh matmuls are serial; fully unrolled.
    h = jnp.zeros((B, H), jnp.float32)
    for t in range(T):                       # static unroll (T small & static)
        lo = t * B
        gr = gin_r[lo:lo + B, :]
        gz = gin_z[lo:lo + B, :]
        gn = gin_n[lo:lo + B, :]
        hb = h.astype(jnp.bfloat16)          # bf16 operands for the MXU
        r = jax.nn.sigmoid(
            gr + jnp.dot(hb, whh_ref[0], preferred_element_type=jnp.float32))
        z = jax.nn.sigmoid(
            gz + jnp.dot(hb, whh_ref[1], preferred_element_type=jnp.float32))
        hn = jnp.dot(hb, whh_ref[2], preferred_element_type=jnp.float32) + bhn
        n = jnp.tanh(gn + r * hn)
        h = (1.0 - z) * n + z * h

    # ---- backward direction at the last timestep: h0 = 0, so no hidden matmuls;
    #      input projection + biases were precomputed in the wrapper (ginb_ref).
    rb = jax.nn.sigmoid(ginb_ref[0])
    zb = jax.nn.sigmoid(ginb_ref[1])
    nb = jnp.tanh(ginb_ref[2] + rb * jnp.broadcast_to(bhhnb_ref[...], (B, H)))
    h_bwd = (1.0 - zb) * nb

    # ---- final linear layer on concat(h_fwd, h_bwd), split into two dots to avoid
    #      an unaligned lane concat at H=150.
    out_ref[...] = (
        jnp.dot(h, wfcf_ref[...], preferred_element_type=jnp.float32)
        + jnp.dot(h_bwd, wfcb_ref[...], preferred_element_type=jnp.float32)
        + bfc_ref[...])


# ----------------------------- JAX wrapper -----------------------------------
def aelstm_forward(tokens, aspect_tokens, params):
    """tokens: (B, T) int32, aspect_tokens: (B,) int32 -> (B, 3) float32."""
    emb = params["emb"]
    E = emb.shape[1]
    H = params["whh_f"].shape[-1]
    B, T = tokens.shape

    # Glue (embedding gather, broadcast, concat, transpose) stays in plain JAX.
    x = jnp.take(emb, tokens, axis=0)                         # (B, T, E)
    a = jnp.take(emb, aspect_tokens, axis=0)                  # (B, E)
    a = jnp.broadcast_to(a[:, None, :], x.shape)              # (B, T, E)
    xa = jnp.concatenate([x, a], axis=-1).astype(jnp.float32)  # (B, T, 2E)
    x_flat = jnp.transpose(xa, (1, 0, 2)).reshape(T * B, 2 * E)  # time-major rows

    # Backward direction only ever sees x[:, -1] for output[:, -1, H:] (h0 = 0):
    # precompute its gate preactivations here so wih_b / whh_b never enter the kernel.
    x_last = xa[:, -1, :]                                      # (B, 2E)
    gin_b = jnp.stack([
        x_last @ params["wih_b"][0] + params["bih_b"][0] + params["bhh_b"][0],
        x_last @ params["wih_b"][1] + params["bih_b"][1] + params["bhh_b"][1],
        x_last @ params["wih_b"][2] + params["bih_b"][2],
    ])                                                          # (3, B, H) f32

    # Forward-direction bias folding (r,z fully folded; n keeps bhh_n inside r*(.)).
    bfold_f = jnp.stack([
        params["bih_f"][0] + params["bhh_f"][0],
        params["bih_f"][1] + params["bhh_f"][1],
        params["bih_f"][2],
    ])                                                          # (3, 1, H)
    bhhn_f = params["bhh_f"][2]                                 # (1, H)
    bhhn_b = params["bhh_b"][2]                                 # (1, H)

    wfc_f = params["wfc"][:H, :]                                # (H, 3)
    wfc_b = params["wfc"][H:, :]                                # (H, 3)

    bf16 = jnp.bfloat16
    args = (x_flat.astype(bf16),
            params["wih_f"].astype(bf16),
            params["whh_f"].astype(bf16),
            bfold_f, bhhn_f,
            gin_b, bhhn_b,
            wfc_f, wfc_b, params["bfc"])

    flops = int(2 * (T * B * (2 * E) * 3 * H       # input projections
                     + T * B * 3 * H * H           # recurrent matmuls
                     + B * 2 * H * 3))             # fc
    transcendentals = int(T * B * 3 * H + B * 3 * H)
    bytes_accessed = int(sum(int(v.size) * v.dtype.itemsize for v in args)
                         + B * 3 * 4)

    vmem = pl.BlockSpec(memory_space=pltpu.MemorySpace.VMEM)
    out = pl.pallas_call(
        aelstm_kernel,
        out_shape=jax.ShapeDtypeStruct((B, 3), jnp.float32),
        in_specs=[vmem] * len(args),
        out_specs=vmem,
        cost_estimate=pl.CostEstimate(flops=flops,
                                      transcendentals=transcendentals,
                                      bytes_accessed=bytes_accessed),
    )(*args)
    return out


# ----------------------------- pure-JAX reference -----------------------------
def _gru_cell_ref(xt, h, wih, whh, bih, bhh):
    r = jax.nn.sigmoid(xt @ wih[0] + bih[0] + h @ whh[0] + bhh[0])
    z = jax.nn.sigmoid(xt @ wih[1] + bih[1] + h @ whh[1] + bhh[1])
    n = jnp.tanh(xt @ wih[2] + bih[2] + r * (h @ whh[2] + bhh[2]))
    return (1.0 - z) * n + z * h


def aelstm_reference(tokens, aspect_tokens, params):
    emb = params["emb"]
    H = params["whh_f"].shape[-1]
    x = jnp.take(emb, tokens, axis=0)
    a = jnp.take(emb, aspect_tokens, axis=0)
    a = jnp.broadcast_to(a[:, None, :], x.shape)
    xa = jnp.concatenate([x, a], axis=-1)                     # (B, T, 2E)
    B, T, _ = xa.shape

    hf = jnp.zeros((B, H), jnp.float32)
    for t in range(T):
        hf = _gru_cell_ref(xa[:, t], hf, params["wih_f"], params["whh_f"],
                           params["bih_f"], params["bhh_f"])
    # full backward pass; keep its output at timestep T-1 (== its first step)
    hb = jnp.zeros((B, H), jnp.float32)
    out_b_last = None
    for t in range(T - 1, -1, -1):
        hb = _gru_cell_ref(xa[:, t], hb, params["wih_b"], params["whh_b"],
                           params["bih_b"], params["bhh_b"])
        if t == T - 1:
            out_b_last = hb
    last = jnp.concatenate([hf, out_b_last], axis=-1)         # (B, 2H)
    return last @ params["wfc"] + params["bfc"]


# ----------------------------- parameter init ---------------------------------
def init_params(key, vocab, emb_dim, hidden):
    d_in = 2 * emb_dim
    k_gru = 1.0 / (hidden ** 0.5)
    k_fc = 1.0 / ((2 * hidden) ** 0.5)
    ks = jax.random.split(key, 12)

    def unif(k, shape, bound):
        return jax.random.uniform(k, shape, jnp.float32, -bound, bound)

    return {
        "emb":   jax.random.normal(ks[0], (vocab, emb_dim), jnp.float32),
        # gate-major (r, z, n), pre-transposed to (in, out)
        "wih_f": unif(ks[1], (3, d_in, hidden), k_gru),
        "whh_f": unif(ks[2], (3, hidden, hidden), k_gru),
        "bih_f": unif(ks[3], (3, 1, hidden), k_gru),
        "bhh_f": unif(ks[4], (3, 1, hidden), k_gru),
        "wih_b": unif(ks[5], (3, d_in, hidden), k_gru),
        "whh_b": unif(ks[6], (3, hidden, hidden), k_gru),
        "bih_b": unif(ks[7], (3, 1, hidden), k_gru),
        "bhh_b": unif(ks[8], (3, 1, hidden), k_gru),
        "wfc":   unif(ks[9], (2 * hidden, 3), k_fc),
        "bfc":   unif(ks[10], (1, 3), k_fc),
    }


# ----------------------------------- main --------------------------------------
if __name__ == "__main__":
    VOCAB, EMB, HID = 50, 300, 150     # sizes implied by the module (fc: 300 -> 3)
    B, T = 2, 8

    key = jax.random.PRNGKey(0)
    k_p, k_tok, k_asp = jax.random.split(key, 3)
    params = init_params(k_p, VOCAB, EMB, HID)
    tokens = jax.random.randint(k_tok, (B, T), 0, VOCAB, dtype=jnp.int32)
    aspect = jax.random.randint(k_asp, (B,), 0, VOCAB, dtype=jnp.int32)

    out = jax.jit(aelstm_forward)(tokens, aspect, params)
    out = jax.block_until_ready(out)

    ref = jax.block_until_ready(aelstm_reference(tokens, aspect, params))
    assert out.shape == (B, 3), out.shape
    # bf16 weights/activations in the kernel's matmuls -> relaxed tolerance vs f32 ref.
    assert jnp.allclose(out, ref, atol=5e-2, rtol=5e-2), (out, ref)
    print("KERNEL_OK")
</pallas_src>

<mosaic_0001>
module attributes {stable_mosaic.version = 11 : i64} {
  func.func @aelstm_kernel(%arg0: memref<16x600xbf16, #tpu.memory_space<vmem>>, %arg1: memref<3x600x150xbf16, #tpu.memory_space<vmem>>, %arg2: memref<3x150x150xbf16, #tpu.memory_space<vmem>>, %arg3: memref<3x1x150xf32, #tpu.memory_space<vmem>>, %arg4: memref<1x150xf32, #tpu.memory_space<vmem>>, %arg5: memref<3x2x150xf32, #tpu.memory_space<vmem>>, %arg6: memref<1x150xf32, #tpu.memory_space<vmem>>, %arg7: memref<150x3xf32, #tpu.memory_space<vmem>>, %arg8: memref<150x3xf32, #tpu.memory_space<vmem>>, %arg9: memref<1x3xf32, #tpu.memory_space<vmem>>, %arg10: memref<2x3xf32, #tpu.memory_space<vmem>>) attributes {dimension_semantics = [], scalar_prefetch = 0 : i64, scratch_operands = 0 : i64, tpu.core_type = #tpu.core_type<tc>} {
    %c0 = arith.constant 0 : index
    %c0_0 = arith.constant 0 : index
    %0 = vector.load %arg0[%c0, %c0_0] : memref<16x600xbf16, #tpu.memory_space<vmem>>, vector<16x600xbf16>
    %c0_1 = arith.constant 0 : index
    %c0_2 = arith.constant 0 : index
    %c0_3 = arith.constant 0 : index
    %1 = vector.load %arg1[%c0_1, %c0_2, %c0_3] : memref<3x600x150xbf16, #tpu.memory_space<vmem>>, vector<1x600x150xbf16>
    %2 = vector.shape_cast %1 : vector<1x600x150xbf16> to vector<600x150xbf16>
    %cst = arith.constant dense<0.000000e+00> : vector<16x150xf32>
    %3 = tpu.matmul %0, %2, %cst {dimension_numbers = #tpu.dot_dimension_numbers<[1], [0], [0], [1], [0, 0, 1, 1], [], []>} : vector<16x600xbf16>, vector<600x150xbf16>, vector<16x150xf32> -> vector<16x150xf32>
    %c0_4 = arith.constant 0 : index
    %c0_5 = arith.constant 0 : index
    %c0_6 = arith.constant 0 : index
    %4 = vector.load %arg3[%c0_4, %c0_5, %c0_6] : memref<3x1x150xf32, #tpu.memory_space<vmem>>, vector<1x1x150xf32>
    %5 = vector.shape_cast %4 : vector<1x1x150xf32> to vector<1x150xf32>
    %6 = vector.broadcast %5 : vector<1x150xf32> to vector<16x150xf32>
    %7 = arith.addf %3, %6 : vector<16x150xf32>
    %c1 = arith.constant 1 : index
    %c0_7 = arith.constant 0 : index
    %c0_8 = arith.constant 0 : index
    %8 = vector.load %arg1[%c1, %c0_7, %c0_8] : memref<3x600x150xbf16, #tpu.memory_space<vmem>>, vector<1x600x150xbf16>
    %9 = vector.shape_cast %8 : vector<1x600x150xbf16> to vector<600x150xbf16>
    %cst_9 = arith.constant dense<0.000000e+00> : vector<16x150xf32>
    %10 = tpu.matmul %0, %9, %cst_9 {dimension_numbers = #tpu.dot_dimension_numbers<[1], [0], [0], [1], [0, 0, 1, 1], [], []>} : vector<16x600xbf16>, vector<600x150xbf16>, vector<16x150xf32> -> vector<16x150xf32>
    %c1_10 = arith.constant 1 : index
    %c0_11 = arith.constant 0 : index
    %c0_12 = arith.constant 0 : index
    %11 = vector.load %arg3[%c1_10, %c0_11, %c0_12] : memref<3x1x150xf32, #tpu.memory_space<vmem>>, vector<1x1x150xf32>
    %12 = vector.shape_cast %11 : vector<1x1x150xf32> to vector<1x150xf32>
    %13 = vector.broadcast %12 : vector<1x150xf32> to vector<16x150xf32>
    %14 = arith.addf %10, %13 : vector<16x150xf32>
    %c2 = arith.constant 2 : index
    %c0_13 = arith.constant 0 : index
    %c0_14 = arith.constant 0 : index
    %15 = vector.load %arg1[%c2, %c0_13, %c0_14] : memref<3x600x150xbf16, #tpu.memory_space<vmem>>, vector<1x600x150xbf16>
    %16 = vector.shape_cast %15 : vector<1x600x150xbf16> to vector<600x150xbf16>
    %cst_15 = arith.constant dense<0.000000e+00> : vector<16x150xf32>
    %17 = tpu.matmul %0, %16, %cst_15 {dimension_numbers = #tpu.dot_dimension_numbers<[1], [0], [0], [1], [0, 0, 1, 1], [], []>} : vector<16x600xbf16>, vector<600x150xbf16>, vector<16x150xf32> -> vector<16x150xf32>
    %c2_16 = arith.constant 2 : index
    %c0_17 = arith.constant 0 : index
    %c0_18 = arith.constant 0 : index
    %18 = vector.load %arg3[%c2_16, %c0_17, %c0_18] : memref<3x1x150xf32, #tpu.memory_space<vmem>>, vector<1x1x150xf32>
    %19 = vector.shape_cast %18 : vector<1x1x150xf32> to vector<1x150xf32>
    %20 = vector.broadcast %19 : vector<1x150xf32> to vector<16x150xf32>
    %21 = arith.addf %17, %20 : vector<16x150xf32>
    %c0_19 = arith.constant 0 : index
    %c0_20 = arith.constant 0 : index
    %22 = vector.load %arg4[%c0_19, %c0_20] : memref<1x150xf32, #tpu.memory_space<vmem>>, vector<1x150xf32>
    %23 = vector.shape_cast %22 : vector<1x150xf32> to vector<1x150xf32>
    %24 = vector.broadcast %23 : vector<1x150xf32> to vector<2x150xf32>
    %cst_21 = arith.constant 0.000000e+00 : f32
    %25 = vector.broadcast %cst_21 : f32 to vector<2x150xf32>
    %26 = vector.extract_strided_slice %7 {offsets = [0, 0], sizes = [2, 150], strides = [1, 1]} : vector<16x150xf32> to vector<2x150xf32>
    %27 = vector.extract_strided_slice %14 {offsets = [0, 0], sizes = [2, 150], strides = [1, 1]} : vector<16x150xf32> to vector<2x150xf32>
    %28 = vector.extract_strided_slice %21 {offsets = [0, 0], sizes = [2, 150], strides = [1, 1]} : vector<16x150xf32> to vector<2x150xf32>
    %29 = arith.truncf %25 : vector<2x150xf32> to vector<2x150xbf16>
    %c0_22 = arith.constant 0 : index
    %c0_23 = arith.constant 0 : index
    %c0_24 = arith.constant 0 : index
    %30 = vector.load %arg2[%c0_22, %c0_23, %c0_24] : memref<3x150x150xbf16, #tpu.memory_space<vmem>>, vector<1x150x150xbf16>
    %31 = vector.shape_cast %30 : vector<1x150x150xbf16> to vector<150x150xbf16>
    %cst_25 = arith.constant dense<0.000000e+00> : vector<2x150xf32>
    %32 = tpu.matmul %29, %31, %cst_25 {dimension_numbers = #tpu.dot_dimension_numbers<[1], [0], [0], [1], [0, 0, 1, 1], [], []>} : vector<2x150xbf16>, vector<150x150xbf16>, vector<2x150xf32> -> vector<2x150xf32>
    %33 = arith.addf %26, %32 : vector<2x150xf32>
    %34 = arith.negf %33 : vector<2x150xf32>
    %35 = math.exp %34 : vector<2x150xf32>
    %cst_26 = arith.constant 1.000000e+00 : f32
    %36 = vector.broadcast %cst_26 : f32 to vector<2x150xf32>
    %37 = arith.addf %36, %35 : vector<2x150xf32>
    %38 = arith.divf %36, %37 : vector<2x150xf32>
    %c1_27 = arith.constant 1 : index
    %c0_28 = arith.constant 0 : index
    %c0_29 = arith.constant 0 : index
    %39 = vector.load %arg2[%c1_27, %c0_28, %c0_29] : memref<3x150x150xbf16, #tpu.memory_space<vmem>>, vector<1x150x150xbf16>
    %40 = vector.shape_cast %39 : vector<1x150x150xbf16> to vector<150x150xbf16>
    %cst_30 = arith.constant dense<0.000000e+00> : vector<2x150xf32>
    %41 = tpu.matmul %29, %40, %cst_30 {dimension_numbers = #tpu.dot_dimension_numbers<[1], [0], [0], [1], [0, 0, 1, 1], [], []>} : vector<2x150xbf16>, vector<150x150xbf16>, vector<2x150xf32> -> vector<2x150xf32>
    %42 = arith.addf %27, %41 : vector<2x150xf32>
    %43 = arith.negf %42 : vector<2x150xf32>
    %44 = math.exp %43 : vector<2x150xf32>
    %cst_31 = arith.constant 1.000000e+00 : f32
    %45 = vector.broadcast %cst_31 : f32 to vector<2x150xf32>
    %46 = arith.addf %45, %44 : vector<2x150xf32>
    %47 = arith.divf %45, %46 : vector<2x150xf32>
    %c2_32 = arith.constant 2 : index
    %c0_33 = arith.constant 0 : index
    %c0_34 = arith.constant 0 : index
    %48 = vector.load %arg2[%c2_32, %c0_33, %c0_34] : memref<3x150x150xbf16, #tpu.memory_space<vmem>>, vector<1x150x150xbf16>
    %49 = vector.shape_cast %48 : vector<1x150x150xbf16> to vector<150x150xbf16>
    %cst_35 = arith.constant dense<0.000000e+00> : vector<2x150xf32>
    %50 = tpu.matmul %29, %49, %cst_35 {dimension_numbers = #tpu.dot_dimension_numbers<[1], [0], [0], [1], [0, 0, 1, 1], [], []>} : vector<2x150xbf16>, vector<150x150xbf16>, vector<2x150xf32> -> vector<2x150xf32>
    %51 = arith.addf %50, %24 : vector<2x150xf32>
    %52 = arith.mulf %38, %51 : vector<2x150xf32>
    %53 = arith.addf %28, %52 : vector<2x150xf32>
    %54 = math.tanh %53 : vector<2x150xf32>
    %cst_36 = arith.constant 1.000000e+00 : f32
    %55 = vector.broadcast %cst_36 : f32 to vector<2x150xf32>
    %56 = arith.subf %55, %47 : vector<2x150xf32>
    %57 = arith.mulf %56, %54 : vector<2x150xf32>
    %58 = arith.mulf %47, %25 : vector<2x150xf32>
    %59 = arith.addf %57, %58 : vector<2x150xf32>
    %60 = vector.extract_strided_slice %7 {offsets = [2, 0], sizes = [2, 150], strides = [1, 1]} : vector<16x150xf32> to vector<2x150xf32>
    %61 = vector.extract_strided_slice %14 {offsets = [2, 0], sizes = [2, 150], strides = [1, 1]} : vector<16x150xf32> to vector<2x150xf32>
    %62 = vector.extract_strided_slice %21 {offsets = [2, 0], sizes = [2, 150], strides = [1, 1]} : vector<16x150xf32> to vector<2x150xf32>
    %63 = arith.truncf %59 : vector<2x150xf32> to vector<2x150xbf16>
    %c0_37 = arith.constant 0 : index
    %c0_38 = arith.constant 0 : index
    %c0_39 = arith.constant 0 : index
    %64 = vector.load %arg2[%c0_37, %c0_38, %c0_39] : memref<3x150x150xbf16, #tpu.memory_space<vmem>>, vector<1x150x150xbf16>
    %65 = vector.shape_cast %64 : vector<1x150x150xbf16> to vector<150x150xbf16>
    %cst_40 = arith.constant dense<0.000000e+00> : vector<2x150xf32>
    %66 = tpu.matmul %63, %65, %cst_40 {dimension_numbers = #tpu.dot_dimension_numbers<[1], [0], [0], [1], [0, 0, 1, 1], [], []>} : vector<2x150xbf16>, vector<150x150xbf16>, vector<2x150xf32> -> vector<2x150xf32>
    %67 = arith.addf %60, %66 : vector<2x150xf32>
    %68 = arith.negf %67 : vector<2x150xf32>
    %69 = math.exp %68 : vector<2x150xf32>
    %cst_41 = arith.constant 1.000000e+00 : f32
    %70 = vector.broadcast %cst_41 : f32 to vector<2x150xf32>
    %71 = arith.addf %70, %69 : vector<2x150xf32>
    %72 = arith.divf %70, %71 : vector<2x150xf32>
    %c1_42 = arith.constant 1 : index
    %c0_43 = arith.constant 0 : index
    %c0_44 = arith.constant 0 : index
    %73 = vector.load %arg2[%c1_42, %c0_43, %c0_44] : memref<3x150x150xbf16, #tpu.memory_space<vmem>>, vector<1x150x150xbf16>
    %74 = vector.shape_cast %73 : vector<1x150x150xbf16> to vector<150x150xbf16>
    %cst_45 = arith.constant dense<0.000000e+00> : vector<2x150xf32>
    %75 = tpu.matmul %63, %74, %cst_45 {dimension_numbers = #tpu.dot_dimension_numbers<[1], [0], [0], [1], [0, 0, 1, 1], [], []>} : vector<2x150xbf16>, vector<150x150xbf16>, vector<2x150xf32> -> vector<2x150xf32>
    %76 = arith.addf %61, %75 : vector<2x150xf32>
    %77 = arith.negf %76 : vector<2x150xf32>
    %78 = math.exp %77 : vector<2x150xf32>
    %cst_46 = arith.constant 1.000000e+00 : f32
    %79 = vector.broadcast %cst_46 : f32 to vector<2x150xf32>
    %80 = arith.addf %79, %78 : vector<2x150xf32>
    %81 = arith.divf %79, %80 : vector<2x150xf32>
    %c2_47 = arith.constant 2 : index
    %c0_48 = arith.constant 0 : index
    %c0_49 = arith.constant 0 : index
    %82 = vector.load %arg2[%c2_47, %c0_48, %c0_49] : memref<3x150x150xbf16, #tpu.memory_space<vmem>>, vector<1x150x150xbf16>
    %83 = vector.shape_cast %82 : vector<1x150x150xbf16> to vector<150x150xbf16>
    %cst_50 = arith.constant dense<0.000000e+00> : vector<2x150xf32>
    %84 = tpu.matmul %63, %83, %cst_50 {dimension_numbers = #tpu.dot_dimension_numbers<[1], [0], [0], [1], [0, 0, 1, 1], [], []>} : vector<2x150xbf16>, vector<150x150xbf16>, vector<2x150xf32> -> vector<2x150xf32>
    %85 = arith.addf %84, %24 : vector<2x150xf32>
    %86 = arith.mulf %72, %85 : vector<2x150xf32>
    %87 = arith.addf %62, %86 : vector<2x150xf32>
    %88 = math.tanh %87 : vector<2x150xf32>
    %cst_51 = arith.constant 1.000000e+00 : f32
    %89 = vector.broadcast %cst_51 : f32 to vector<2x150xf32>
    %90 = arith.subf %89, %81 : vector<2x150xf32>
    %91 = arith.mulf %90, %88 : vector<2x150xf32>
    %92 = arith.mulf %81, %59 : vector<2x150xf32>
    %93 = arith.addf %91, %92 : vector<2x150xf32>
    %94 = vector.extract_strided_slice %7 {offsets = [4, 0], sizes = [2, 150], strides = [1, 1]} : vector<16x150xf32> to vector<2x150xf32>
    %95 = vector.extract_strided_slice %14 {offsets = [4, 0], sizes = [2, 150], strides = [1, 1]} : vector<16x150xf32> to vector<2x150xf32>
    %96 = vector.extract_strided_slice %21 {offsets = [4, 0], sizes = [2, 150], strides = [1, 1]} : vector<16x150xf32> to vector<2x150xf32>
    %97 = arith.truncf %93 : vector<2x150xf32> to vector<2x150xbf16>
    %c0_52 = arith.constant 0 : index
    %c0_53 = arith.constant 0 : index
    %c0_54 = arith.constant 0 : index
    %98 = vector.load %arg2[%c0_52, %c0_53, %c0_54] : memref<3x150x150xbf16, #tpu.memory_space<vmem>>, vector<1x150x150xbf16>
    %99 = vector.shape_cast %98 : vector<1x150x150xbf16> to vector<150x150xbf16>
    %cst_55 = arith.constant dense<0.000000e+00> : vector<2x150xf32>
    %100 = tpu.matmul %97, %99, %cst_55 {dimension_numbers = #tpu.dot_dimension_numbers<[1], [0], [0], [1], [0, 0, 1, 1], [], []>} : vector<2x150xbf16>, vector<150x150xbf16>, vector<2x150xf32> -> vector<2x150xf32>
    %101 = arith.addf %94, %100 : vector<2x150xf32>
    %102 = arith.negf %101 : vector<2x150xf32>
    %103 = math.exp %102 : vector<2x150xf32>
    %cst_56 = arith.constant 1.000000e+00 : f32
    %104 = vector.broadcast %cst_56 : f32 to vector<2x150xf32>
    %105 = arith.addf %104, %103 : vector<2x150xf32>
    %106 = arith.divf %104, %105 : vector<2x150xf32>
    %c1_57 = arith.constant 1 : index
    %c0_58 = arith.constant 0 : index
    %c0_59 = arith.constant 0 : index
    %107 = vector.load %arg2[%c1_57, %c0_58, %c0_59] : memref<3x150x150xbf16, #tpu.memory_space<vmem>>, vector<1x150x150xbf16>
    %108 = vector.shape_cast %107 : vector<1x150x150xbf16> to vector<150x150xbf16>
    %cst_60 = arith.constant dense<0.000000e+00> : vector<2x150xf32>
    %109 = tpu.matmul %97, %108, %cst_60 {dimension_numbers = #tpu.dot_dimension_numbers<[1], [0], [0], [1], [0, 0, 1, 1], [], []>} : vector<2x150xbf16>, vector<150x150xbf16>, vector<2x150xf32> -> vector<2x150xf32>
    %110 = arith.addf %95, %109 : vector<2x150xf32>
    %111 = arith.negf %110 : vector<2x150xf32>
    %112 = math.exp %111 : vector<2x150xf32>
    %cst_61 = arith.constant 1.000000e+00 : f32
    %113 = vector.broadcast %cst_61 : f32 to vector<2x150xf32>
    %114 = arith.addf %113, %112 : vector<2x150xf32>
    %115 = arith.divf %113, %114 : vector<2x150xf32>
    %c2_62 = arith.constant 2 : index
    %c0_63 = arith.constant 0 : index
    %c0_64 = arith.constant 0 : index
    %116 = vector.load %arg2[%c2_62, %c0_63, %c0_64] : memref<3x150x150xbf16, #tpu.memory_space<vmem>>, vector<1x150x150xbf16>
    %117 = vector.shape_cast %116 : vector<1x150x150xbf16> to vector<150x150xbf16>
    %cst_65 = arith.constant dense<0.000000e+00> : vector<2x150xf32>
    %118 = tpu.matmul %97, %117, %cst_65 {dimension_numbers = #tpu.dot_dimension_numbers<[1], [0], [0], [1], [0, 0, 1, 1], [], []>} : vector<2x150xbf16>, vector<150x150xbf16>, vector<2x150xf32> -> vector<2x150xf32>
    %119 = arith.addf %118, %24 : vector<2x150xf32>
    %120 = arith.mulf %106, %119 : vector<2x150xf32>
    %121 = arith.addf %96, %120 : vector<2x150xf32>
    %122 = math.tanh %121 : vector<2x150xf32>
    %cst_66 = arith.constant 1.000000e+00 : f32
    %123 = vector.broadcast %cst_66 : f32 to vector<2x150xf32>
    %124 = arith.subf %123, %115 : vector<2x150xf32>
    %125 = arith.mulf %124, %122 : vector<2x150xf32>
    %126 = arith.mulf %115, %93 : vector<2x150xf32>
    %127 = arith.addf %125, %126 : vector<2x150xf32>
    %128 = vector.extract_strided_slice %7 {offsets = [6, 0], sizes = [2, 150], strides = [1, 1]} : vector<16x150xf32> to vector<2x150xf32>
    %129 = vector.extract_strided_slice %14 {offsets = [6, 0], sizes = [2, 150], strides = [1, 1]} : vector<16x150xf32> to vector<2x150xf32>
    %130 = vector.extract_strided_slice %21 {offsets = [6, 0], sizes = [2, 150], strides = [1, 1]} : vector<16x150xf32> to vector<2x150xf32>
    %131 = arith.truncf %127 : vector<2x150xf32> to vector<2x150xbf16>
    %c0_67 = arith.constant 0 : index
    %c0_68 = arith.constant 0 : index
    %c0_69 = arith.constant 0 : index
    %132 = vector.load %arg2[%c0_67, %c0_68, %c0_69] : memref<3x150x150xbf16, #tpu.memory_space<vmem>>, vector<1x150x150xbf16>
    %133 = vector.shape_cast %132 : vector<1x150x150xbf16> to vector<150x150xbf16>
    %cst_70 = arith.constant dense<0.000000e+00> : vector<2x150xf32>
    %134 = tpu.matmul %131, %133, %cst_70 {dimension_numbers = #tpu.dot_dimension_numbers<[1], [0], [0], [1], [0, 0, 1, 1], [], []>} : vector<2x150xbf16>, vector<150x150xbf16>, vector<2x150xf32> -> vector<2x150xf32>
    %135 = arith.addf %128, %134 : vector<2x150xf32>
    %136 = arith.negf %135 : vector<2x150xf32>
    %137 = math.exp %136 : vector<2x150xf32>
    %cst_71 = arith.constant 1.000000e+00 : f32
    %138 = vector.broadcast %cst_71 : f32 to vector<2x150xf32>
    %139 = arith.addf %138, %137 : vector<2x150xf32>
    %140 = arith.divf %138, %139 : vector<2x150xf32>
    %c1_72 = arith.constant 1 : index
    %c0_73 = arith.constant 0 : index
    %c0_74 = arith.constant 0 : index
    %141 = vector.load %arg2[%c1_72, %c0_73, %c0_74] : memref<3x150x150xbf16, #tpu.memory_space<vmem>>, vector<1x150x150xbf16>
    %142 = vector.shape_cast %141 : vector<1x150x150xbf16> to vector<150x150xbf16>
    %cst_75 = arith.constant dense<0.000000e+00> : vector<2x150xf32>
    %143 = tpu.matmul %131, %142, %cst_75 {dimension_numbers = #tpu.dot_dimension_numbers<[1], [0], [0], [1], [0, 0, 1, 1], [], []>} : vector<2x150xbf16>, vector<150x150xbf16>, vector<2x150xf32> -> vector<2x150xf32>
    %144 = arith.addf %129, %143 : vector<2x150xf32>
    %145 = arith.negf %144 : vector<2x150xf32>
    %146 = math.exp %145 : vector<2x150xf32>
    %cst_76 = arith.constant 1.000000e+00 : f32
    %147 = vector.broadcast %cst_76 : f32 to vector<2x150xf32>
    %148 = arith.addf %147, %146 : vector<2x150xf32>
    %149 = arith.divf %147, %148 : vector<2x150xf32>
    %c2_77 = arith.constant 2 : index
    %c0_78 = arith.constant 0 : index
    %c0_79 = arith.constant 0 : index
    %150 = vector.load %arg2[%c2_77, %c0_78, %c0_79] : memref<3x150x150xbf16, #tpu.memory_space<vmem>>, vector<1x150x150xbf16>
    %151 = vector.shape_cast %150 : vector<1x150x150xbf16> to vector<150x150xbf16>
    %cst_80 = arith.constant dense<0.000000e+00> : vector<2x150xf32>
    %152 = tpu.matmul %131, %151, %cst_80 {dimension_numbers = #tpu.dot_dimension_numbers<[1], [0], [0], [1], [0, 0, 1, 1], [], []>} : vector<2x150xbf16>, vector<150x150xbf16>, vector<2x150xf32> -> vector<2x150xf32>
    %153 = arith.addf %152, %24 : vector<2x150xf32>
    %154 = arith.mulf %140, %153 : vector<2x150xf32>
    %155 = arith.addf %130, %154 : vector<2x150xf32>
    %156 = math.tanh %155 : vector<2x150xf32>
    %cst_81 = arith.constant 1.000000e+00 : f32
    %157 = vector.broadcast %cst_81 : f32 to vector<2x150xf32>
    %158 = arith.subf %157, %149 : vector<2x150xf32>
    %159 = arith.mulf %158, %156 : vector<2x150xf32>
    %160 = arith.mulf %149, %127 : vector<2x150xf32>
    %161 = arith.addf %159, %160 : vector<2x150xf32>
    %162 = vector.extract_strided_slice %7 {offsets = [8, 0], sizes = [2, 150], strides = [1, 1]} : vector<16x150xf32> to vector<2x150xf32>
    %163 = vector.extract_strided_slice %14 {offsets = [8, 0], sizes = [2, 150], strides = [1, 1]} : vector<16x150xf32> to vector<2x150xf32>
    %164 = vector.extract_strided_slice %21 {offsets = [8, 0], sizes = [2, 150], strides = [1, 1]} : vector<16x150xf32> to vector<2x150xf32>
    %165 = arith.truncf %161 : vector<2x150xf32> to vector<2x150xbf16>
    %c0_82 = arith.constant 0 : index
    %c0_83 = arith.constant 0 : index
    %c0_84 = arith.constant 0 : index
    %166 = vector.load %arg2[%c0_82, %c0_83, %c0_84] : memref<3x150x150xbf16, #tpu.memory_space<vmem>>, vector<1x150x150xbf16>
    %167 = vector.shape_cast %166 : vector<1x150x150xbf16> to vector<150x150xbf16>
    %cst_85 = arith.constant dense<0.000000e+00> : vector<2x150xf32>
    %168 = tpu.matmul %165, %167, %cst_85 {dimension_numbers = #tpu.dot_dimension_numbers<[1], [0], [0], [1], [0, 0, 1, 1], [], []>} : vector<2x150xbf16>, vector<150x150xbf16>, vector<2x150xf32> -> vector<2x150xf32>
    %169 = arith.addf %162, %168 : vector<2x150xf32>
    %170 = arith.negf %169 : vector<2x150xf32>
    %171 = math.exp %170 : vector<2x150xf32>
    %cst_86 = arith.constant 1.000000e+00 : f32
    %172 = vector.broadcast %cst_86 : f32 to vector<2x150xf32>
    %173 = arith.addf %172, %171 : vector<2x150xf32>
    %174 = arith.divf %172, %173 : vector<2x150xf32>
    %c1_87 = arith.constant 1 : index
    %c0_88 = arith.constant 0 : index
    %c0_89 = arith.constant 0 : index
    %175 = vector.load %arg2[%c1_87, %c0_88, %c0_89] : memref<3x150x150xbf16, #tpu.memory_space<vmem>>, vector<1x150x150xbf16>
    %176 = vector.shape_cast %175 : vector<1x150x150xbf16> to vector<150x150xbf16>
    %cst_90 = arith.constant dense<0.000000e+00> : vector<2x150xf32>
    %177 = tpu.matmul %165, %176, %cst_90 {dimension_numbers = #tpu.dot_dimension_numbers<[1], [0], [0], [1], [0, 0, 1, 1], [], []>} : vector<2x150xbf16>, vector<150x150xbf16>, vector<2x150xf32> -> vector<2x150xf32>
    %178 = arith.addf %163, %177 : vector<2x150xf32>
    %179 = arith.negf %178 : vector<2x150xf32>
    %180 = math.exp %179 : vector<2x150xf32>
    %cst_91 = arith.constant 1.000000e+00 : f32
    %181 = vector.broadcast %cst_91 : f32 to vector<2x150xf32>
    %182 = arith.addf %181, %180 : vector<2x150xf32>
    %183 = arith.divf %181, %182 : vector<2x150xf32>
    %c2_92 = arith.constant 2 : index
    %c0_93 = arith.constant 0 : index
    %c0_94 = arith.constant 0 : index
    %184 = vector.load %arg2[%c2_92, %c0_93, %c0_94] : memref<3x150x150xbf16, #tpu.memory_space<vmem>>, vector<1x150x150xbf16>
    %185 = vector.shape_cast %184 : vector<1x150x150xbf16> to vector<150x150xbf16>
    %cst_95 = arith.constant dense<0.000000e+00> : vector<2x150xf32>
    %186 = tpu.matmul %165, %185, %cst_95 {dimension_numbers = #tpu.dot_dimension_numbers<[1], [0], [0], [1], [0, 0, 1, 1], [], []>} : vector<2x150xbf16>, vector<150x150xbf16>, vector<2x150xf32> -> vector<2x150xf32>
    %187 = arith.addf %186, %24 : vector<2x150xf32>
    %188 = arith.mulf %174, %187 : vector<2x150xf32>
    %189 = arith.addf %164, %188 : vector<2x150xf32>
    %190 = math.tanh %189 : vector<2x150xf32>
    %cst_96 = arith.constant 1.000000e+00 : f32
    %191 = vector.broadcast %cst_96 : f32 to vector<2x150xf32>
    %192 = arith.subf %191, %183 : vector<2x150xf32>
    %193 = arith.mulf %192, %190 : vector<2x150xf32>
    %194 = arith.mulf %183, %161 : vector<2x150xf32>
    %195 = arith.addf %193, %194 : vector<2x150xf32>
    %196 = vector.extract_strided_slice %7 {offsets = [10, 0], sizes = [2, 150], strides = [1, 1]} : vector<16x150xf32> to vector<2x150xf32>
    %197 = vector.extract_strided_slice %14 {offsets = [10, 0], sizes = [2, 150], strides = [1, 1]} : vector<16x150xf32> to vector<2x150xf32>
    %198 = vector.extract_strided_slice %21 {offsets = [10, 0], sizes = [2, 150], strides = [1, 1]} : vector<16x150xf32> to vector<2x150xf32>
    %199 = arith.truncf %195 : vector<2x150xf32> to vector<2x150xbf16>
    %c0_97 = arith.constant 0 : index
    %c0_98 = arith.constant 0 : index
    %c0_99 = arith.constant 0 : index
    %200 = vector.load %arg2[%c0_97, %c0_98, %c0_99] : memref<3x150x150xbf16, #tpu.memory_space<vmem>>, vector<1x150x150xbf16>
    %201 = vector.shape_cast %200 : vector<1x150x150xbf16> to vector<150x150xbf16>
    %cst_100 = arith.constant dense<0.000000e+00> : vector<2x150xf32>
    %202 = tpu.matmul %199, %201, %cst_100 {dimension_numbers = #tpu.dot_dimension_numbers<[1], [0], [0], [1], [0, 0, 1, 1], [], []>} : vector<2x150xbf16>, vector<150x150xbf16>, vector<2x150xf32> -> vector<2x150xf32>
    %203 = arith.addf %196, %202 : vector<2x150xf32>
    %204 = arith.negf %203 : vector<2x150xf32>
    %205 = math.exp %204 : vector<2x150xf32>
    %cst_101 = arith.constant 1.000000e+00 : f32
    %206 = vector.broadcast %cst_101 : f32 to vector<2x150xf32>
    %207 = arith.addf %206, %205 : vector<2x150xf32>
    %208 = arith.divf %206, %207 : vector<2x150xf32>
    %c1_102 = arith.constant 1 : index
    %c0_103 = arith.constant 0 : index
    %c0_104 = arith.constant 0 : index
    %209 = vector.load %arg2[%c1_102, %c0_103, %c0_104] : memref<3x150x150xbf16, #tpu.memory_space<vmem>>, vector<1x150x150xbf16>
    %210 = vector.shape_cast %209 : vector<1x150x150xbf16> to vector<150x150xbf16>
    %cst_105 = arith.constant dense<0.000000e+00> : vector<2x150xf32>
    %211 = tpu.matmul %199, %210, %cst_105 {dimension_numbers = #tpu.dot_dimension_numbers<[1], [0], [0], [1], [0, 0, 1, 1], [], []>} : vector<2x150xbf16>, vector<150x150xbf16>, vector<2x150xf32> -> vector<2x150xf32>
    %212 = arith.addf %197, %211 : vector<2x150xf32>
    %213 = arith.negf %212 : vector<2x150xf32>
    %214 = math.exp %213 : vector<2x150xf32>
    %cst_106 = arith.constant 1.000000e+00 : f32
    %215 = vector.broadcast %cst_106 : f32 to vector<2x150xf32>
    %216 = arith.addf %215, %214 : vector<2x150xf32>
    %217 = arith.divf %215, %216 : vector<2x150xf32>
    %c2_107 = arith.constant 2 : index
    %c0_108 = arith.constant 0 : index
    %c0_109 = arith.constant 0 : index
    %218 = vector.load %arg2[%c2_107, %c0_108, %c0_109] : memref<3x150x150xbf16, #tpu.memory_space<vmem>>, vector<1x150x150xbf16>
    %219 = vector.shape_cast %218 : vector<1x150x150xbf16> to vector<150x150xbf16>
    %cst_110 = arith.constant dense<0.000000e+00> : vector<2x150xf32>
    %220 = tpu.matmul %199, %219, %cst_110 {dimension_numbers = #tpu.dot_dimension_numbers<[1], [0], [0], [1], [0, 0, 1, 1], [], []>} : vector<2x150xbf16>, vector<150x150xbf16>, vector<2x150xf32> -> vector<2x150xf32>
    %221 = arith.addf %220, %24 : vector<2x150xf32>
    %222 = arith.mulf %208, %221 : vector<2x150xf32>
    %223 = arith.addf %198, %222 : vector<2x150xf32>
    %224 = math.tanh %223 : vector<2x150xf32>
    %cst_111 = arith.constant 1.000000e+00 : f32
    %225 = vector.broadcast %cst_111 : f32 to vector<2x150xf32>
    %226 = arith.subf %225, %217 : vector<2x150xf32>
    %227 = arith.mulf %226, %224 : vector<2x150xf32>
    %228 = arith.mulf %217, %195 : vector<2x150xf32>
    %229 = arith.addf %227, %228 : vector<2x150xf32>
    %230 = vector.extract_strided_slice %7 {offsets = [12, 0], sizes = [2, 150], strides = [1, 1]} : vector<16x150xf32> to vector<2x150xf32>
    %231 = vector.extract_strided_slice %14 {offsets = [12, 0], sizes = [2, 150], strides = [1, 1]} : vector<16x150xf32> to vector<2x150xf32>
    %232 = vector.extract_strided_slice %21 {offsets = [12, 0], sizes = [2, 150], strides = [1, 1]} : vector<16x150xf32> to vector<2x150xf32>
    %233 = arith.truncf %229 : vector<2x150xf32> to vector<2x150xbf16>
    %c0_112 = arith.constant 0 : index
    %c0_113 = arith.constant 0 : index
    %c0_114 = arith.constant 0 : index
    %234 = vector.load %arg2[%c0_112, %c0_113, %c0_114] : memref<3x150x150xbf16, #tpu.memory_space<vmem>>, vector<1x150x150xbf16>
    %235 = vector.shape_cast %234 : vector<1x150x150xbf16> to vector<150x150xbf16>
    %cst_115 = arith.constant dense<0.000000e+00> : vector<2x150xf32>
    %236 = tpu.matmul %233, %235, %cst_115 {dimension_numbers = #tpu.dot_dimension_numbers<[1], [0], [0], [1], [0, 0, 1, 1], [], []>} : vector<2x150xbf16>, vector<150x150xbf16>, vector<2x150xf32> -> vector<2x150xf32>
    %237 = arith.addf %230, %236 : vector<2x150xf32>
    %238 = arith.negf %237 : vector<2x150xf32>
    %239 = math.exp %238 : vector<2x150xf32>
    %cst_116 = arith.constant 1.000000e+00 : f32
    %240 = vector.broadcast %cst_116 : f32 to vector<2x150xf32>
    %241 = arith.addf %240, %239 : vector<2x150xf32>
    %242 = arith.divf %240, %241 : vector<2x150xf32>
    %c1_117 = arith.constant 1 : index
    %c0_118 = arith.constant 0 : index
    %c0_119 = arith.constant 0 : index
    %243 = vector.load %arg2[%c1_117, %c0_118, %c0_119] : memref<3x150x150xbf16, #tpu.memory_space<vmem>>, vector<1x150x150xbf16>
    %244 = vector.shape_cast %243 : vector<1x150x150xbf16> to vector<150x150xbf16>
    %cst_120 = arith.constant dense<0.000000e+00> : vector<2x150xf32>
    %245 = tpu.matmul %233, %244, %cst_120 {dimension_numbers = #tpu.dot_dimension_numbers<[1], [0], [0], [1], [0, 0, 1, 1], [], []>} : vector<2x150xbf16>, vector<150x150xbf16>, vector<2x150xf32> -> vector<2x150xf32>
    %246 = arith.addf %231, %245 : vector<2x150xf32>
    %247 = arith.negf %246 : vector<2x150xf32>
    %248 = math.exp %247 : vector<2x150xf32>
    %cst_121 = arith.constant 1.000000e+00 : f32
    %249 = vector.broadcast %cst_121 : f32 to vector<2x150xf32>
    %250 = arith.addf %249, %248 : vector<2x150xf32>
    %251 = arith.divf %249, %250 : vector<2x150xf32>
    %c2_122 = arith.constant 2 : index
    %c0_123 = arith.constant 0 : index
    %c0_124 = arith.constant 0 : index
    %252 = vector.load %arg2[%c2_122, %c0_123, %c0_124] : memref<3x150x150xbf16, #tpu.memory_space<vmem>>, vector<1x150x150xbf16>
    %253 = vector.shape_cast %252 : vector<1x150x150xbf16> to vector<150x150xbf16>
    %cst_125 = arith.constant dense<0.000000e+00> : vector<2x150xf32>
    %254 = tpu.matmul %233, %253, %cst_125 {dimension_numbers = #tpu.dot_dimension_numbers<[1], [0], [0], [1], [0, 0, 1, 1], [], []>} : vector<2x150xbf16>, vector<150x150xbf16>, vector<2x150xf32> -> vector<2x150xf32>
    %255 = arith.addf %254, %24 : vector<2x150xf32>
    %256 = arith.mulf %242, %255 : vector<2x150xf32>
    %257 = arith.addf %232, %256 : vector<2x150xf32>
    %258 = math.tanh %257 : vector<2x150xf32>
    %cst_126 = arith.constant 1.000000e+00 : f32
    %259 = vector.broadcast %cst_126 : f32 to vector<2x150xf32>
    %260 = arith.subf %259, %251 : vector<2x150xf32>
    %261 = arith.mulf %260, %258 : vector<2x150xf32>
    %262 = arith.mulf %251, %229 : vector<2x150xf32>
    %263 = arith.addf %261, %262 : vector<2x150xf32>
    %264 = vector.extract_strided_slice %7 {offsets = [14, 0], sizes = [2, 150], strides = [1, 1]} : vector<16x150xf32> to vector<2x150xf32>
    %265 = vector.extract_strided_slice %14 {offsets = [14, 0], sizes = [2, 150], strides = [1, 1]} : vector<16x150xf32> to vector<2x150xf32>
    %266 = vector.extract_strided_slice %21 {offsets = [14, 0], sizes = [2, 150], strides = [1, 1]} : vector<16x150xf32> to vector<2x150xf32>
    %267 = arith.truncf %263 : vector<2x150xf32> to vector<2x150xbf16>
    %c0_127 = arith.constant 0 : index
    %c0_128 = arith.constant 0 : index
    %c0_129 = arith.constant 0 : index
    %268 = vector.load %arg2[%c0_127, %c0_128, %c0_129] : memref<3x150x150xbf16, #tpu.memory_space<vmem>>, vector<1x150x150xbf16>
    %269 = vector.shape_cast %268 : vector<1x150x150xbf16> to vector<150x150xbf16>
    %cst_130 = arith.constant dense<0.000000e+00> : vector<2x150xf32>
    %270 = tpu.matmul %267, %269, %cst_130 {dimension_numbers = #tpu.dot_dimension_numbers<[1], [0], [0], [1], [0, 0, 1, 1], [], []>} : vector<2x150xbf16>, vector<150x150xbf16>, vector<2x150xf32> -> vector<2x150xf32>
    %271 = arith.addf %264, %270 : vector<2x150xf32>
    %272 = arith.negf %271 : vector<2x150xf32>
    %273 = math.exp %272 : vector<2x150xf32>
    %cst_131 = arith.constant 1.000000e+00 : f32
    %274 = vector.broadcast %cst_131 : f32 to vector<2x150xf32>
    %275 = arith.addf %274, %273 : vector<2x150xf32>
    %276 = arith.divf %274, %275 : vector<2x150xf32>
    %c1_132 = arith.constant 1 : index
    %c0_133 = arith.constant 0 : index
    %c0_134 = arith.constant 0 : index
    %277 = vector.load %arg2[%c1_132, %c0_133, %c0_134] : memref<3x150x150xbf16, #tpu.memory_space<vmem>>, vector<1x150x150xbf16>
    %278 = vector.shape_cast %277 : vector<1x150x150xbf16> to vector<150x150xbf16>
    %cst_135 = arith.constant dense<0.000000e+00> : vector<2x150xf32>
    %279 = tpu.matmul %267, %278, %cst_135 {dimension_numbers = #tpu.dot_dimension_numbers<[1], [0], [0], [1], [0, 0, 1, 1], [], []>} : vector<2x150xbf16>, vector<150x150xbf16>, vector<2x150xf32> -> vector<2x150xf32>
    %280 = arith.addf %265, %279 : vector<2x150xf32>
    %281 = arith.negf %280 : vector<2x150xf32>
    %282 = math.exp %281 : vector<2x150xf32>
    %cst_136 = arith.constant 1.000000e+00 : f32
    %283 = vector.broadcast %cst_136 : f32 to vector<2x150xf32>
    %284 = arith.addf %283, %282 : vector<2x150xf32>
    %285 = arith.divf %283, %284 : vector<2x150xf32>
    %c2_137 = arith.constant 2 : index
    %c0_138 = arith.constant 0 : index
    %c0_139 = arith.constant 0 : index
    %286 = vector.load %arg2[%c2_137, %c0_138, %c0_139] : memref<3x150x150xbf16, #tpu.memory_space<vmem>>, vector<1x150x150xbf16>
    %287 = vector.shape_cast %286 : vector<1x150x150xbf16> to vector<150x150xbf16>
    %cst_140 = arith.constant dense<0.000000e+00> : vector<2x150xf32>
    %288 = tpu.matmul %267, %287, %cst_140 {dimension_numbers = #tpu.dot_dimension_numbers<[1], [0], [0], [1], [0, 0, 1, 1], [], []>} : vector<2x150xbf16>, vector<150x150xbf16>, vector<2x150xf32> -> vector<2x150xf32>
    %289 = arith.addf %288, %24 : vector<2x150xf32>
    %290 = arith.mulf %276, %289 : vector<2x150xf32>
    %291 = arith.addf %266, %290 : vector<2x150xf32>
    %292 = math.tanh %291 : vector<2x150xf32>
    %cst_141 = arith.constant 1.000000e+00 : f32
    %293 = vector.broadcast %cst_141 : f32 to vector<2x150xf32>
    %294 = arith.subf %293, %285 : vector<2x150xf32>
    %295 = arith.mulf %294, %292 : vector<2x150xf32>
    %296 = arith.mulf %285, %263 : vector<2x150xf32>
    %297 = arith.addf %295, %296 : vector<2x150xf32>
    %c0_142 = arith.constant 0 : index
    %c0_143 = arith.constant 0 : index
    %c0_144 = arith.constant 0 : index
    %298 = vector.load %arg5[%c0_142, %c0_143, %c0_144] : memref<3x2x150xf32, #tpu.memory_space<vmem>>, vector<1x2x150xf32>
    %299 = vector.shape_cast %298 : vector<1x2x150xf32> to vector<2x150xf32>
    %300 = arith.negf %299 : vector<2x150xf32>
    %301 = math.exp %300 : vector<2x150xf32>
    %cst_145 = arith.constant 1.000000e+00 : f32
    %302 = vector.broadcast %cst_145 : f32 to vector<2x150xf32>
    %303 = arith.addf %302, %301 : vector<2x150xf32>
    %304 = arith.divf %302, %303 : vector<2x150xf32>
    %c1_146 = arith.constant 1 : index
    %c0_147 = arith.constant 0 : index
    %c0_148 = arith.constant 0 : index
    %305 = vector.load %arg5[%c1_146, %c0_147, %c0_148] : memref<3x2x150xf32, #tpu.memory_space<vmem>>, vector<1x2x150xf32>
    %306 = vector.shape_cast %305 : vector<1x2x150xf32> to vector<2x150xf32>
    %307 = arith.negf %306 : vector<2x150xf32>
    %308 = math.exp %307 : vector<2x150xf32>
    %cst_149 = arith.constant 1.000000e+00 : f32
    %309 = vector.broadcast %cst_149 : f32 to vector<2x150xf32>
    %310 = arith.addf %309, %308 : vector<2x150xf32>
    %311 = arith.divf %309, %310 : vector<2x150xf32>
    %c2_150 = arith.constant 2 : index
    %c0_151 = arith.constant 0 : index
    %c0_152 = arith.constant 0 : index
    %312 = vector.load %arg5[%c2_150, %c0_151, %c0_152] : memref<3x2x150xf32, #tpu.memory_space<vmem>>, vector<1x2x150xf32>
    %313 = vector.shape_cast %312 : vector<1x2x150xf32> to vector<2x150xf32>
    %c0_153 = arith.constant 0 : index
    %c0_154 = arith.constant 0 : index
    %314 = vector.load %arg6[%c0_153, %c0_154] : memref<1x150xf32, #tpu.memory_space<vmem>>, vector<1x150xf32>
    %315 = vector.shape_cast %314 : vector<1x150xf32> to vector<1x150xf32>
    %316 = vector.broadcast %315 : vector<1x150xf32> to vector<2x150xf32>
    %317 = arith.mulf %304, %316 : vector<2x150xf32>
    %318 = arith.addf %313, %317 : vector<2x150xf32>
    %319 = math.tanh %318 : vector<2x150xf32>
    %cst_155 = arith.constant 1.000000e+00 : f32
    %320 = vector.broadcast %cst_155 : f32 to vector<2x150xf32>
    %321 = arith.subf %320, %311 : vector<2x150xf32>
    %322 = arith.mulf %321, %319 : vector<2x150xf32>
    %c0_156 = arith.constant 0 : index
    %c0_157 = arith.constant 0 : index
    %323 = vector.load %arg7[%c0_156, %c0_157] : memref<150x3xf32, #tpu.memory_space<vmem>>, vector<150x3xf32>
    %cst_158 = arith.constant dense<0.000000e+00> : vector<2x3xf32>
    %324 = tpu.matmul %297, %323, %cst_158 {dimension_numbers = #tpu.dot_dimension_numbers<[1], [0], [0], [1], [0, 0, 1, 1], [], []>} : vector<2x150xf32>, vector<150x3xf32>, vector<2x3xf32> -> vector<2x3xf32>
    %c0_159 = arith.constant 0 : index
    %c0_160 = arith.constant 0 : index
    %325 = vector.load %arg8[%c0_159, %c0_160] : memref<150x3xf32, #tpu.memory_space<vmem>>, vector<150x3xf32>
    %cst_161 = arith.constant dense<0.000000e+00> : vector<2x3xf32>
    %326 = tpu.matmul %322, %325, %cst_161 {dimension_numbers = #tpu.dot_dimension_numbers<[1], [0], [0], [1], [0, 0, 1, 1], [], []>} : vector<2x150xf32>, vector<150x3xf32>, vector<2x3xf32> -> vector<2x3xf32>
    %327 = arith.addf %324, %326 : vector<2x3xf32>
    %c0_162 = arith.constant 0 : index
    %c0_163 = arith.constant 0 : index
    %328 = vector.load %arg9[%c0_162, %c0_163] : memref<1x3xf32, #tpu.memory_space<vmem>>, vector<1x3xf32>
    %329 = vector.broadcast %328 : vector<1x3xf32> to vector<2x3xf32>
    %330 = arith.addf %327, %329 : vector<2x3xf32>
    %c0_164 = arith.constant 0 : index
    %c0_165 = arith.constant 0 : index
    %331 = vector.load %arg10[%c0_164, %c0_165] : memref<2x3xf32, #tpu.memory_space<vmem>>, vector<2x3xf32>
    tpu.vector_store %arg10[%c0_164, %c0_165], %330 {strides = array<i32>} : memref<2x3xf32, #tpu.memory_space<vmem>>, vector<2x3xf32>,
    return
  }
}

</mosaic_0001>

<llo_original>
// kernel: aelstm_forward.1
$region0: #{aelstm_forward.1}
  #allocation0 [shape = 'u32[]', space=smem, size = 0x4, offset = 0x4, fixed_abs, tag = 'smem constant byte address 0x4 - core index']
  #allocation1 [shape = 'u32[144,128]{1,0:T(1,128)}', space=vmem, size = 0x12000, scoped, tag = 'internal scratch']
  %s0 = inlined_call_operand.vmem [shape: bf16[16,600], index: 0, kind: input, shape index: {}]
  %s1 = inlined_call_operand.vmem [shape: bf16[3,600,150], index: 1, kind: input, shape index: {}]
  %s2 = inlined_call_operand.vmem [shape: bf16[3,150,150], index: 2, kind: input, shape index: {}]
  %s3 = inlined_call_operand.vmem [shape: f32[3,1,150], index: 3, kind: input, shape index: {}]
  %s4 = inlined_call_operand.vmem [shape: f32[1,150], index: 4, kind: input, shape index: {}]
  %s5 = inlined_call_operand.vmem [shape: f32[3,2,150], index: 5, kind: input, shape index: {}]
  %s6 = inlined_call_operand.vmem [shape: f32[1,150], index: 6, kind: input, shape index: {}]
  %s7 = inlined_call_operand.vmem [shape: f32[150,3], index: 7, kind: input, shape index: {}]
  %s8 = inlined_call_operand.vmem [shape: f32[150,3], index: 8, kind: input, shape index: {}]
  %s9 = inlined_call_operand.vmem [shape: f32[1,3], index: 9, kind: input, shape index: {}]
  %s10 = inlined_call_operand.hbm [shape: f32[2,3], index: 10, kind: output, shape index: {}]
  %s11 = sld [smem:[#allocation0]]
  $region50: #{aelstm_forward.1} parent=0
    _
  %s13 = ssub.s32 1, %s11
  %s14 = scalar_select 0, %s13, %s11
  $region1: #{aelstm_forward.1} parent=0
    #allocation2 [shape = 'u8[1024]{0}', space=vmem, size = 0x400, scoped, tag = 'output window, operand 0, single buffered']
    #allocation3 [shape = 's32[1]{0}', space=sflag, size = 0x4, scoped, tag = 'scoped memory for aelstm_forward.1']
    %15 = vsyncpa [#allocation3], 0
    // Predicated region
    $region2: #{aelstm_forward.1} parent=1 // pred_check
      _
    $region3: #{aelstm_forward.1} parent=1 // pred_check_branch
      %17 = sbr.rel (0) target = $region5
    $region4: #{aelstm_forward.1} parent=1 // pred_region
      _
    $region5: #{aelstm_forward.1} parent=1 // pred_fallthru
      _
    // Predicated region
    $region6: #{aelstm_forward.1} parent=1 // pred_check
      _
    $region7: #{aelstm_forward.1} parent=1 // pred_check_branch
      %19 = sbr.rel (0) target = $region9
    $region8: #{aelstm_forward.1} parent=1 // pred_region
      _
    $region9: #{aelstm_forward.1} parent=1 // pred_fallthru
      _
    // Predicated region
    $region10: #{aelstm_forward.1} parent=1 // pred_check
      _
    $region11: #{aelstm_forward.1} parent=1 // pred_check_branch
      %21 = sbr.rel (0) target = $region13
    $region12: #{aelstm_forward.1} parent=1 // pred_region
      _
    $region13: #{aelstm_forward.1} parent=1 // pred_fallthru
      _
    // Predicated region
    $region14: #{aelstm_forward.1} parent=1 // pred_check
      _
    $region15: #{aelstm_forward.1} parent=1 // pred_check_branch
      %23 = sbr.rel (0) target = $region17
    $region16: #{aelstm_forward.1} parent=1 // pred_region
      _
    $region17: #{aelstm_forward.1} parent=1 // pred_fallthru
      _
    // Predicated region
    $region18: #{aelstm_forward.1} parent=1 // pred_check
      _
    $region19: #{aelstm_forward.1} parent=1 // pred_check_branch
      %25 = sbr.rel (0) target = $region21
    $region20: #{aelstm_forward.1} parent=1 // pred_region
      _
    $region21: #{aelstm_forward.1} parent=1 // pred_fallthru
      _
    // Predicated region
    $region22: #{aelstm_forward.1} parent=1 // pred_check
      _
    $region23: #{aelstm_forward.1} parent=1 // pred_check_branch
      %27 = sbr.rel (0) target = $region25
    $region24: #{aelstm_forward.1} parent=1 // pred_region
      _
    $region25: #{aelstm_forward.1} parent=1 // pred_fallthru
      _
    // Predicated region
    $region26: #{aelstm_forward.1} parent=1 // pred_check
      _
    $region27: #{aelstm_forward.1} parent=1 // pred_check_branch
      %29 = sbr.rel (0) target = $region29
    $region28: #{aelstm_forward.1} parent=1 // pred_region
      _
    $region29: #{aelstm_forward.1} parent=1 // pred_fallthru
      _
    // Predicated region
    $region30: #{aelstm_forward.1} parent=1 // pred_check
      _
    $region31: #{aelstm_forward.1} parent=1 // pred_check_branch
      %31 = sbr.rel (0) target = $region33
    $region32: #{aelstm_forward.1} parent=1 // pred_region
      _
    $region33: #{aelstm_forward.1} parent=1 // pred_fallthru
      _
    // Predicated region
    $region34: #{aelstm_forward.1} parent=1 // pred_check
      _
    $region35: #{aelstm_forward.1} parent=1 // pred_check_branch
      %33 = sbr.rel (0) target = $region37
    $region36: #{aelstm_forward.1} parent=1 // pred_region
      _
    $region37: #{aelstm_forward.1} parent=1 // pred_fallthru
      _
    // Predicated region
    $region38: #{aelstm_forward.1} parent=1 // pred_check
      _
    $region39: #{aelstm_forward.1} parent=1 // pred_check_branch
      %35 = sbr.rel (0) target = $region41
    $region40: #{aelstm_forward.1} parent=1 // pred_region
      _
    $region41: #{aelstm_forward.1} parent=1 // pred_fallthru
      _
    %v37 = vld [vmem:[%s0] sm:$0xff]
    %v38 = vld [vmem:[%s0 + $0x8] sm:$0xff]
    %v39 = vld [vmem:[%s0 + $0x10] sm:$0xf]
    %v40 = vld [vmem:[%s0 + $0x14] sm:$0xff]
    %v41 = vld [vmem:[%s0 + $0x1c] sm:$0xff]
    %v42 = vld [vmem:[%s0 + $0x24] sm:$0xf]
    %v43 = vld [vmem:[%s1] sm:$0xff]
    %v44 = vld [vmem:[%s1 + $0x8] sm:$0xff]
    %v45 = vld [vmem:[%s1 + $0x10] sm:$0xff]
    %v46 = vld [vmem:[%s1 + $0x18] sm:$0xff]
    %v47 = vld [vmem:[%s1 + $0x20] sm:$0xff]
    %v48 = vld [vmem:[%s1 + $0x28] sm:$0xff]
    %v49 = vld [vmem:[%s1 + $0x30] sm:$0xff]
    %v50 = vld [vmem:[%s1 + $0x38] sm:$0xff]
    %v51 = vld [vmem:[%s1 + $0x40] sm:$0xff]
    %v52 = vld [vmem:[%s1 + $0x48] sm:$0xff]
    %v53 = vld [vmem:[%s1 + $0x50] sm:$0xff]
    %v54 = vld [vmem:[%s1 + $0x58] sm:$0xff]
    %v55 = vld [vmem:[%s1 + $0x60] sm:$0xff]
    %v56 = vld [vmem:[%s1 + $0x68] sm:$0xff]
    %v57 = vld [vmem:[%s1 + $0x70] sm:$0xff]
    %v58 = vld [vmem:[%s1 + $0x78] sm:$0xff]
    %v59 = vld [vmem:[%s1 + $0x80] sm:$0xff]
    %v60 = vld [vmem:[%s1 + $0x88] sm:$0xff]
    %v61 = vld [vmem:[%s1 + $0x90] sm:$0xff]
    %v62 = vld [vmem:[%s1 + $0x98] sm:$0xff]
    %v63 = vld [vmem:[%s1 + $0xa0] sm:$0xff]
    %v64 = vld [vmem:[%s1 + $0xa8] sm:$0xff]
    %v65 = vld [vmem:[%s1 + $0xb0] sm:$0xff]
    %v66 = vld [vmem:[%s1 + $0xb8] sm:$0xff]
    %v67 = vld [vmem:[%s1 + $0xc0] sm:$0xff]
    %v68 = vld [vmem:[%s1 + $0xc8] sm:$0xff]
    %v69 = vld [vmem:[%s1 + $0xd0] sm:$0xff]
    %v70 = vld [vmem:[%s1 + $0xd8] sm:$0xff]
    %v71 = vld [vmem:[%s1 + $0xe0] sm:$0xff]
    %v72 = vld [vmem:[%s1 + $0xe8] sm:$0xff]
    %v73 = vld [vmem:[%s1 + $0xf0] sm:$0xff]
    %v74 = vld [vmem:[%s1 + $0xf8] sm:$0xff]
    %v75 = vld [vmem:[%s1 + $0x100] sm:$0xff]
    %v76 = vld [vmem:[%s1 + $0x108] sm:$0xff]
    %v77 = vld [vmem:[%s1 + $0x110] sm:$0xff]
    %v78 = vld [vmem:[%s1 + $0x118] sm:$0xff]
    %v79 = vld [vmem:[%s1 + $0x120] sm:$0xff]
    %v80 = vld [vmem:[%s1 + $0x128] sm:$0xff]
    %v81 = vld [vmem:[%s1 + $0x130] sm:$0xff]
    %v82 = vld [vmem:[%s1 + $0x138] sm:$0xff]
    %v83 = vld [vmem:[%s1 + $0x140] sm:$0xff]
    %v84 = vld [vmem:[%s1 + $0x148] sm:$0xff]
    %v85 = vld [vmem:[%s1 + $0x150] sm:$0xff]
    %v86 = vld [vmem:[%s1 + $0x158] sm:$0xff]
    %v87 = vld [vmem:[%s1 + $0x160] sm:$0xff]
    %v88 = vld [vmem:[%s1 + $0x168] sm:$0xff]
    %v89 = vld [vmem:[%s1 + $0x170] sm:$0xff]
    %v90 = vld [vmem:[%s1 + $0x178] sm:$0xff]
    %v91 = vld [vmem:[%s1 + $0x180] sm:$0xff]
    %v92 = vld [vmem:[%s1 + $0x188] sm:$0xff]
    %v93 = vld [vmem:[%s1 + $0x190] sm:$0xff]
    %v94 = vld [vmem:[%s1 + $0x198] sm:$0xff]
    %v95 = vld [vmem:[%s1 + $0x1a0] sm:$0xff]
    %v96 = vld [vmem:[%s1 + $0x1a8] sm:$0xff]
    %v97 = vld [vmem:[%s1 + $0x1b0] sm:$0xff]
    %v98 = vld [vmem:[%s1 + $0x1b8] sm:$0xff]
    %v99 = vld [vmem:[%s1 + $0x1c0] sm:$0xff]
    %v100 = vld [vmem:[%s1 + $0x1c8] sm:$0xff]
    %v101 = vld [vmem:[%s1 + $0x1d0] sm:$0xff]
    %v102 = vld [vmem:[%s1 + $0x1d8] sm:$0xff]
    %v103 = vld [vmem:[%s1 + $0x1e0] sm:$0xff]
    %v104 = vld [vmem:[%s1 + $0x1e8] sm:$0xff]
    %v105 = vld [vmem:[%s1 + $0x1f0] sm:$0xff]
    %v106 = vld [vmem:[%s1 + $0x1f8] sm:$0xff]
    %v107 = vld [vmem:[%s1 + $0x200] sm:$0xff]
    %v108 = vld [vmem:[%s1 + $0x208] sm:$0xff]
    %v109 = vld [vmem:[%s1 + $0x210] sm:$0xff]
    %v110 = vld [vmem:[%s1 + $0x218] sm:$0xff]
    %v111 = vld [vmem:[%s1 + $0x220] sm:$0xff]
    %v112 = vld [vmem:[%s1 + $0x228] sm:$0xff]
    %v113 = vld [vmem:[%s1 + $0x230] sm:$0xff]
    %v114 = vld [vmem:[%s1 + $0x238] sm:$0xff]
    %v115 = vld [vmem:[%s1 + $0x240] sm:$0xff]
    %v116 = vld [vmem:[%s1 + $0x248] sm:$0xff]
    %v117 = vld [vmem:[%s1 + $0x250] sm:$0xff]
    %v118 = vld [vmem:[%s3] sm:$0x3]
    %v120 = vlaneseq
    %v121 = vshrl.u32 %v120, 7
    %v122 = vsub.s32 0, %v121
    %v123 = vrot.slane %v118, %v122
    %v124 = vlaneseq
    %v125 = vshrl.u32 %v124, 7
    %v126 = vsub.s32 1, %v125
    %v127 = vrot.slane %v118, %v126
    %v136 = vunpack.c.l.b16 %v37
    %v137 = vunpack.c.h.b16 %v37
    %v138 = vunpack.c.l.b16 %v38
    %v139 = vunpack.c.h.b16 %v38
    %v140 = vunpack.c.l.b16 %v39
    %v141 = vunpack.c.l.b16 %v40
    %v142 = vunpack.c.h.b16 %v40
    %v143 = vunpack.c.l.b16 %v41
    %v144 = vunpack.c.h.b16 %v41
    %v145 = vunpack.c.l.b16 %v42
    %v146 = vpack.c.b16 %v141, %v136
    %v147 = vpack.c.b16 %v142, %v137
    %v148 = vpack.c.b16 %v143, %v138
    %v149 = vpack.c.b16 %v144, %v139
    %v150 = vpack.c.b16 %v145, %v140
    %v230 = vunpack.c.l.b16 %v43
    %v231 = vunpack.c.h.b16 %v43
    %v232 = vunpack.c.l.b16 %v44
    %v233 = vunpack.c.h.b16 %v44
    %v234 = vunpack.c.l.b16 %v45
    %v235 = vunpack.c.h.b16 %v45
    %v236 = vunpack.c.l.b16 %v46
    %v237 = vunpack.c.h.b16 %v46
    %v238 = vunpack.c.l.b16 %v47
    %v239 = vunpack.c.h.b16 %v47
    %v240 = vunpack.c.l.b16 %v48
    %v241 = vunpack.c.h.b16 %v48
    %v242 = vunpack.c.l.b16 %v49
    %v243 = vunpack.c.h.b16 %v49
    %v244 = vunpack.c.l.b16 %v50
    %v245 = vunpack.c.h.b16 %v50
    %v246 = vunpack.c.l.b16 %v51
    %v247 = vunpack.c.h.b16 %v51
    %v248 = vunpack.c.l.b16 %v52
    %v249 = vunpack.c.h.b16 %v52
    %v250 = vunpack.c.l.b16 %v53
    %v251 = vunpack.c.h.b16 %v53
    %v252 = vunpack.c.l.b16 %v54
    %v253 = vunpack.c.h.b16 %v54
    %v254 = vunpack.c.l.b16 %v55
    %v255 = vunpack.c.h.b16 %v55
    %v256 = vunpack.c.l.b16 %v56
    %v257 = vunpack.c.h.b16 %v56
    %v258 = vunpack.c.l.b16 %v57
    %v259 = vunpack.c.h.b16 %v57
    %v260 = vunpack.c.l.b16 %v58
    %v261 = vunpack.c.h.b16 %v58
    %v262 = vunpack.c.l.b16 %v59
    %v263 = vunpack.c.h.b16 %v59
    %v264 = vunpack.c.l.b16 %v60
    %v265 = vunpack.c.h.b16 %v60
    %v266 = vunpack.c.l.b16 %v61
    %v267 = vunpack.c.h.b16 %v61
    %v268 = vunpack.c.l.b16 %v62
    %v269 = vunpack.c.h.b16 %v62
    %v270 = vunpack.c.l.b16 %v63
    %v271 = vunpack.c.h.b16 %v63
    %v272 = vunpack.c.l.b16 %v64
    %v273 = vunpack.c.h.b16 %v64
    %v274 = vunpack.c.l.b16 %v65
    %v275 = vunpack.c.h.b16 %v65
    %v276 = vunpack.c.l.b16 %v66
    %v277 = vunpack.c.h.b16 %v66
    %v278 = vunpack.c.l.b16 %v67
    %v279 = vunpack.c.h.b16 %v67
    %v280 = vunpack.c.l.b16 %v68
    %v281 = vunpack.c.h.b16 %v68
    %v282 = vunpack.c.l.b16 %v69
    %v283 = vunpack.c.h.b16 %v69
    %v284 = vunpack.c.l.b16 %v70
    %v285 = vunpack.c.h.b16 %v70
    %v286 = vunpack.c.l.b16 %v71
    %v287 = vunpack.c.h.b16 %v71
    %v288 = vunpack.c.l.b16 %v72
    %v289 = vunpack.c.h.b16 %v72
    %v290 = vunpack.c.l.b16 %v73
    %v291 = vunpack.c.h.b16 %v73
    %v292 = vunpack.c.l.b16 %v74
    %v293 = vunpack.c.h.b16 %v74
    %v294 = vunpack.c.l.b16 %v75
    %v295 = vunpack.c.h.b16 %v75
    %v296 = vunpack.c.l.b16 %v76
    %v297 = vunpack.c.h.b16 %v76
    %v298 = vunpack.c.l.b16 %v77
    %v299 = vunpack.c.h.b16 %v77
    %v300 = vunpack.c.l.b16 %v78
    %v301 = vunpack.c.h.b16 %v78
    %v302 = vunpack.c.l.b16 %v79
    %v303 = vunpack.c.h.b16 %v79
    %v304 = vunpack.c.l.b16 %v80
    %v305 = vunpack.c.h.b16 %v80
    %v306 = vunpack.c.l.b16 %v81
    %v307 = vunpack.c.h.b16 %v81
    %v308 = vunpack.c.l.b16 %v82
    %v309 = vunpack.c.h.b16 %v82
    %v310 = vunpack.c.l.b16 %v83
    %v311 = vunpack.c.h.b16 %v83
    %v312 = vunpack.c.l.b16 %v84
    %v313 = vunpack.c.h.b16 %v84
    %v314 = vunpack.c.l.b16 %v85
    %v315 = vunpack.c.h.b16 %v85
    %v316 = vunpack.c.l.b16 %v86
    %v317 = vunpack.c.h.b16 %v86
    %v318 = vunpack.c.l.b16 %v87
    %v319 = vunpack.c.h.b16 %v87
    %v320 = vunpack.c.l.b16 %v88
    %v321 = vunpack.c.h.b16 %v88
    %v322 = vunpack.c.l.b16 %v89
    %v323 = vunpack.c.h.b16 %v89
    %v324 = vunpack.c.l.b16 %v90
    %v325 = vunpack.c.h.b16 %v90
    %v326 = vunpack.c.l.b16 %v91
    %v327 = vunpack.c.h.b16 %v91
    %v328 = vunpack.c.l.b16 %v92
    %v329 = vunpack.c.h.b16 %v92
    %v330 = vunpack.c.l.b16 %v93
    %v331 = vunpack.c.h.b16 %v93
    %v332 = vunpack.c.l.b16 %v94
    %v333 = vunpack.c.h.b16 %v94
    %v334 = vunpack.c.l.b16 %v95
    %v335 = vunpack.c.h.b16 %v95
    %v336 = vunpack.c.l.b16 %v96
    %v337 = vunpack.c.h.b16 %v96
    %v338 = vunpack.c.l.b16 %v97
    %v339 = vunpack.c.h.b16 %v97
    %v340 = vunpack.c.l.b16 %v98
    %v341 = vunpack.c.h.b16 %v98
    %v342 = vunpack.c.l.b16 %v99
    %v343 = vunpack.c.h.b16 %v99
    %v344 = vunpack.c.l.b16 %v100
    %v345 = vunpack.c.h.b16 %v100
    %v346 = vunpack.c.l.b16 %v101
    %v347 = vunpack.c.h.b16 %v101
    %v348 = vunpack.c.l.b16 %v102
    %v349 = vunpack.c.h.b16 %v102
    %v350 = vunpack.c.l.b16 %v103
    %v351 = vunpack.c.h.b16 %v103
    %v352 = vunpack.c.l.b16 %v104
    %v353 = vunpack.c.h.b16 %v104
    %v354 = vunpack.c.l.b16 %v105
    %v355 = vunpack.c.h.b16 %v105
    %v356 = vunpack.c.l.b16 %v106
    %v357 = vunpack.c.h.b16 %v106
    %v358 = vunpack.c.l.b16 %v107
    %v359 = vunpack.c.h.b16 %v107
    %v360 = vunpack.c.l.b16 %v108
    %v361 = vunpack.c.h.b16 %v108
    %v362 = vunpack.c.l.b16 %v109
    %v363 = vunpack.c.h.b16 %v109
    %v364 = vunpack.c.l.b16 %v110
    %v365 = vunpack.c.h.b16 %v110
    %v366 = vunpack.c.l.b16 %v111
    %v367 = vunpack.c.h.b16 %v111
    %v368 = vunpack.c.l.b16 %v112
    %v369 = vunpack.c.h.b16 %v112
    %v370 = vunpack.c.l.b16 %v113
    %v371 = vunpack.c.h.b16 %v113
    %v372 = vunpack.c.l.b16 %v114
    %v373 = vunpack.c.h.b16 %v114
    %v374 = vunpack.c.l.b16 %v115
    %v375 = vunpack.c.h.b16 %v115
    %v376 = vunpack.c.l.b16 %v116
    %v377 = vunpack.c.h.b16 %v116
    %v378 = vunpack.c.l.b16 %v117
    %v379 = vunpack.c.h.b16 %v117
    %v380 = vpack.c.b16 %v232, %v230
    %v381 = vpack.c.b16 %v233, %v231
    %v382 = vpack.c.b16 %v236, %v234
    %v383 = vpack.c.b16 %v237, %v235
    %v384 = vpack.c.b16 %v240, %v238
    %v385 = vpack.c.b16 %v241, %v239
    %v386 = vpack.c.b16 %v244, %v242
    %v387 = vpack.c.b16 %v245, %v243
    %v388 = vpack.c.b16 %v248, %v246
    %v389 = vpack.c.b16 %v249, %v247
    %v390 = vpack.c.b16 %v252, %v250
    %v391 = vpack.c.b16 %v253, %v251
    %v392 = vpack.c.b16 %v256, %v254
    %v393 = vpack.c.b16 %v257, %v255
    %v394 = vpack.c.b16 %v260, %v258
    %v395 = vpack.c.b16 %v261, %v259
    %v396 = vpack.c.b16 %v264, %v262
    %v397 = vpack.c.b16 %v265, %v263
    %v398 = vpack.c.b16 %v268, %v266
    %v399 = vpack.c.b16 %v269, %v267
    %v400 = vpack.c.b16 %v272, %v270
    %v401 = vpack.c.b16 %v273, %v271
    %v402 = vpack.c.b16 %v276, %v274
    %v403 = vpack.c.b16 %v277, %v275
    %v404 = vpack.c.b16 %v280, %v278
    %v405 = vpack.c.b16 %v281, %v279
    %v406 = vpack.c.b16 %v284, %v282
    %v407 = vpack.c.b16 %v285, %v283
    %v408 = vpack.c.b16 %v288, %v286
    %v409 = vpack.c.b16 %v289, %v287
    %v410 = vpack.c.b16 %v292, %v290
    %v411 = vpack.c.b16 %v293, %v291
    %v412 = vpack.c.b16 %v296, %v294
    %v413 = vpack.c.b16 %v297, %v295
    %v414 = vpack.c.b16 %v300, %v298
    %v415 = vpack.c.b16 %v301, %v299
    %v416 = vpack.c.b16 %v304, %v302
    %v417 = vpack.c.b16 %v305, %v303
    %v418 = vpack.c.b16 %v308, %v306
    %v419 = vpack.c.b16 %v309, %v307
    %v420 = vpack.c.b16 %v312, %v310
    %v421 = vpack.c.b16 %v313, %v311
    %v422 = vpack.c.b16 %v316, %v314
    %v423 = vpack.c.b16 %v317, %v315
    %v424 = vpack.c.b16 %v320, %v318
    %v425 = vpack.c.b16 %v321, %v319
    %v426 = vpack.c.b16 %v324, %v322
    %v427 = vpack.c.b16 %v325, %v323
    %v428 = vpack.c.b16 %v328, %v326
    %v429 = vpack.c.b16 %v329, %v327
    %v430 = vpack.c.b16 %v332, %v330
    %v431 = vpack.c.b16 %v333, %v331
    %v432 = vpack.c.b16 %v336, %v334
    %v433 = vpack.c.b16 %v337, %v335
    %v434 = vpack.c.b16 %v340, %v338
    %v435 = vpack.c.b16 %v341, %v339
    %v436 = vpack.c.b16 %v344, %v342
    %v437 = vpack.c.b16 %v345, %v343
    %v438 = vpack.c.b16 %v348, %v346
    %v439 = vpack.c.b16 %v349, %v347
    %v440 = vpack.c.b16 %v352, %v350
    %v441 = vpack.c.b16 %v353, %v351
    %v442 = vpack.c.b16 %v356, %v354
    %v443 = vpack.c.b16 %v357, %v355
    %v444 = vpack.c.b16 %v360, %v358
    %v445 = vpack.c.b16 %v361, %v359
    %v446 = vpack.c.b16 %v364, %v362
    %v447 = vpack.c.b16 %v365, %v363
    %v448 = vpack.c.b16 %v368, %v366
    %v449 = vpack.c.b16 %v369, %v367
    %v450 = vpack.c.b16 %v372, %v370
    %v451 = vpack.c.b16 %v373, %v371
    %v452 = vpack.c.b16 %v376, %v374
    %v453 = vpack.c.b16 %v377, %v375
    %v454 = vpack.c.b16 %v378, %v378
    %v455 = vpack.c.b16 %v379, %v379
    %vm530 = vcmask 719872
    %v532 = vsel %vm530, %v150, 0
    %vm534 = vcmask 1043456
    %v536 = vsel %vm534, %v454, 0
    %v539 = vsel %vm534, %v455, 0
    %541 = vmatprep.subr.bf16.mxu0 %v381
    %542 = vmatpush1.bf16.msra.mxu0 %v380
    %543 = vmatprep.subr.bf16.mxu0 %v383
    %544 = vmatpush1.bf16.msra.mxu0 %v382
    %545 = vmatprep.subr.bf16.mxu0 %v385
    %546 = vmatpush1.bf16.msra.mxu0 %v384
    %547 = vmatprep.subr.bf16.mxu0 %v387
    %548 = vmatpush1.bf16.msra.mxu0 %v386
    %549 = vmatprep.subr.bf16.mxu0 %v389
    %550 = vmatpush1.bf16.msra.mxu0 %v388
    %551 = vmatprep.subr.bf16.mxu0 %v391
    %552 = vmatpush1.bf16.msra.mxu0 %v390
    %553 = vmatprep.subr.bf16.mxu0 %v393
    %554 = vmatpush1.bf16.msra.mxu0 %v392
    %555 = vmatprep.subr.bf16.mxu0 %v395
    %556 = vmatpush1.bf16.msra.mxu0 %v394
    %557 = vmatprep.subr.bf16.mxu0 %v397
    %558 = vmatpush1.bf16.msra.mxu0 %v396
    %559 = vmatprep.subr.bf16.mxu0 %v399
    %560 = vmatpush1.bf16.msra.mxu0 %v398
    %561 = vmatprep.subr.bf16.mxu0 %v401
    %562 = vmatpush1.bf16.msra.mxu0 %v400
    %563 = vmatprep.subr.bf16.mxu0 %v403
    %564 = vmatpush1.bf16.msra.mxu0 %v402
    %565 = vmatprep.subr.bf16.mxu0 %v405
    %566 = vmatpush1.bf16.msra.mxu0 %v404
    %567 = vmatprep.subr.bf16.mxu0 %v407
    %568 = vmatpush1.bf16.msra.mxu0 %v406
    %569 = vmatprep.subr.bf16.mxu0 %v409
    %570 = vmatpush1.bf16.msra.mxu0 %v408
    %571 = vmatprep.subr.bf16.mxu0 %v411
    %572 = vmatpush1.bf16.msra.mxu0 %v410
    %573 = vmatprep.mubr.bf16.mxu0 %v147
    %574 = vmatmul.mubr.bf16.gmra.mrb[0].mxu0 %v146
    %v575 = vpop.f32.mrb[0].mxu0
    %v576 = vadd.f32 %v123, %v575
    %v577 = vpop.f32.mrb[0].mxu0
    %v578 = vadd.f32 %v127, %v577
    %v579 = vpop.f32.mrb[0].mxu0
    %v580 = vadd.f32 %v123, %v579
    %v581 = vpop.f32.mrb[0].mxu0
    %v582 = vadd.f32 %v127, %v581
    %583 = vdwg.mxu0
    %584 = vmatprep.subr.bf16.mxu0 %v413
    %585 = vmatpush1.bf16.msra.mxu0 %v412
    %586 = vmatprep.subr.bf16.mxu0 %v415
    %587 = vmatpush1.bf16.msra.mxu0 %v414
    %588 = vmatprep.subr.bf16.mxu0 %v417
    %589 = vmatpush1.bf16.msra.mxu0 %v416
    %590 = vmatprep.subr.bf16.mxu0 %v419
    %591 = vmatpush1.bf16.msra.mxu0 %v418
    %592 = vmatprep.subr.bf16.mxu0 %v421
    %593 = vmatpush1.bf16.msra.mxu0 %v420
    %594 = vmatprep.subr.bf16.mxu0 %v423
    %595 = vmatpush1.bf16.msra.mxu0 %v422
    %596 = vmatprep.subr.bf16.mxu0 %v425
    %597 = vmatpush1.bf16.msra.mxu0 %v424
    %598 = vmatprep.subr.bf16.mxu0 %v427
    %599 = vmatpush1.bf16.msra.mxu0 %v426
    %600 = vmatprep.subr.bf16.mxu0 %v429
    %601 = vmatpush1.bf16.msra.mxu0 %v428
    %602 = vmatprep.subr.bf16.mxu0 %v431
    %603 = vmatpush1.bf16.msra.mxu0 %v430
    %604 = vmatprep.subr.bf16.mxu0 %v433
    %605 = vmatpush1.bf16.msra.mxu0 %v432
    %606 = vmatprep.subr.bf16.mxu0 %v435
    %607 = vmatpush1.bf16.msra.mxu0 %v434
    %608 = vmatprep.subr.bf16.mxu0 %v437
    %609 = vmatpush1.bf16.msra.mxu0 %v436
    %610 = vmatprep.subr.bf16.mxu0 %v439
    %611 = vmatpush1.bf16.msra.mxu0 %v438
    %612 = vmatprep.subr.bf16.mxu0 %v441
    %613 = vmatpush1.bf16.msra.mxu0 %v440
    %614 = vmatprep.subr.bf16.mxu0 %v443
    %615 = vmatpush1.bf16.msra.mxu0 %v442
    %616 = vmatprep.mubr.bf16.mxu0 %v149
    %617 = vmatmul.mubr.bf16.gmra.mrb[0].mxu0 %v148
    %v618 = vpop.f32.mrb[0].mxu0
    %v619 = vadd.f32 %v576, %v618
    %v620 = vpop.f32.mrb[0].mxu0
    %v621 = vadd.f32 %v578, %v620
    %v622 = vpop.f32.mrb[0].mxu0
    %v623 = vadd.f32 %v580, %v622
    %v624 = vpop.f32.mrb[0].mxu0
    %v625 = vadd.f32 %v582, %v624
    %626 = vdwg.mxu0
    %627 = vmatprep.subr.bf16.mxu0 %v445
    %628 = vmatpush1.bf16.msra.mxu0 %v444
    %629 = vmatprep.subr.bf16.mxu0 %v447
    %630 = vmatpush1.bf16.msra.mxu0 %v446
    %631 = vmatprep.subr.bf16.mxu0 %v449
    %632 = vmatpush1.bf16.msra.mxu0 %v448
    %633 = vmatprep.subr.bf16.mxu0 %v451
    %634 = vmatpush1.bf16.msra.mxu0 %v450
    %635 = vmatprep.subr.bf16.mxu0 %v453
    %636 = vmatpush1.bf16.msra.mxu0 %v452
    %637 = vmatprep.subr.bf16.mxu0 %v539
    %638 = vmatpush1.bf16.msra.mxu0 %v536
    %639 = vmatprep.subr.bf16.mxu0 0
    %640 = vmatpush1.bf16.msra.mxu0 0
    %641 = vmatprep.subr.bf16.mxu0 0
    %642 = vmatpush1.bf16.msra.mxu0 0
    %643 = vmatprep.subr.bf16.mxu0 0
    %644 = vmatpush1.bf16.msra.mxu0 0
    %645 = vmatprep.subr.bf16.mxu0 0
    %646 = vmatpush1.bf16.msra.mxu0 0
    %647 = vmatprep.subr.bf16.mxu0 0
    %648 = vmatpush1.bf16.msra.mxu0 0
    %649 = vmatprep.subr.bf16.mxu0 0
    %650 = vmatpush1.bf16.msra.mxu0 0
    %651 = vmatprep.subr.bf16.mxu0 0
    %652 = vmatpush1.bf16.msra.mxu0 0
    %653 = vmatprep.subr.bf16.mxu0 0
    %654 = vmatpush1.bf16.msra.mxu0 0
    %655 = vmatprep.subr.bf16.mxu0 0
    %656 = vmatpush1.bf16.msra.mxu0 0
    %657 = vmatprep.subr.bf16.mxu0 0
    %658 = vmatpush1.bf16.msra.mxu0 0
    %659 = vmatprep.mubr.bf16.mxu0 0
    %660 = vmatmul.mubr.bf16.gmra.mrb[0].mxu0 %v532
    %v661 = vpop.f32.mrb[0].mxu0
    %v662 = vadd.f32 %v619, %v661
    %v663 = vpop.f32.mrb[0].mxu0
    %v664 = vadd.f32 %v621, %v663
    %v665 = vpop.f32.mrb[0].mxu0
    %v666 = vadd.f32 %v623, %v665
    %v667 = vpop.f32.mrb[0].mxu0
    %v668 = vadd.f32 %v625, %v667
    %669 = vdwg.mxu0
    %s670 = scalar_lea.vmem %s1, 600
    %v671 = vld [vmem:[%s670] sm:$0xff]
    %v672 = vld [vmem:[%s670 + $0x8] sm:$0xff]
    %v673 = vld [vmem:[%s670 + $0x10] sm:$0xff]
    %v674 = vld [vmem:[%s670 + $0x18] sm:$0xff]
    %v675 = vld [vmem:[%s670 + $0x20] sm:$0xff]
    %v676 = vld [vmem:[%s670 + $0x28] sm:$0xff]
    %v677 = vld [vmem:[%s670 + $0x30] sm:$0xff]
    %v678 = vld [vmem:[%s670 + $0x38] sm:$0xff]
    %v679 = vld [vmem:[%s670 + $0x40] sm:$0xff]
    %v680 = vld [vmem:[%s670 + $0x48] sm:$0xff]
    %v681 = vld [vmem:[%s670 + $0x50] sm:$0xff]
    %v682 = vld [vmem:[%s670 + $0x58] sm:$0xff]
    %v683 = vld [vmem:[%s670 + $0x60] sm:$0xff]
    %v684 = vld [vmem:[%s670 + $0x68] sm:$0xff]
    %v685 = vld [vmem:[%s670 + $0x70] sm:$0xff]
    %v686 = vld [vmem:[%s670 + $0x78] sm:$0xff]
    %v687 = vld [vmem:[%s670 + $0x80] sm:$0xff]
    %v688 = vld [vmem:[%s670 + $0x88] sm:$0xff]
    %v689 = vld [vmem:[%s670 + $0x90] sm:$0xff]
    %v690 = vld [vmem:[%s670 + $0x98] sm:$0xff]
    %v691 = vld [vmem:[%s670 + $0xa0] sm:$0xff]
    %v692 = vld [vmem:[%s670 + $0xa8] sm:$0xff]
    %v693 = vld [vmem:[%s670 + $0xb0] sm:$0xff]
    %v694 = vld [vmem:[%s670 + $0xb8] sm:$0xff]
    %v695 = vld [vmem:[%s670 + $0xc0] sm:$0xff]
    %v696 = vld [vmem:[%s670 + $0xc8] sm:$0xff]
    %v697 = vld [vmem:[%s670 + $0xd0] sm:$0xff]
    %v698 = vld [vmem:[%s670 + $0xd8] sm:$0xff]
    %v699 = vld [vmem:[%s670 + $0xe0] sm:$0xff]
    %v700 = vld [vmem:[%s670 + $0xe8] sm:$0xff]
    %v701 = vld [vmem:[%s670 + $0xf0] sm:$0xff]
    %v702 = vld [vmem:[%s670 + $0xf8] sm:$0xff]
    %v703 = vld [vmem:[%s670 + $0x100] sm:$0xff]
    %v704 = vld [vmem:[%s670 + $0x108] sm:$0xff]
    %v705 = vld [vmem:[%s670 + $0x110] sm:$0xff]
    %v706 = vld [vmem:[%s670 + $0x118] sm:$0xff]
    %v707 = vld [vmem:[%s670 + $0x120] sm:$0xff]
    %v708 = vld [vmem:[%s670 + $0x128] sm:$0xff]
    %v709 = vld [vmem:[%s670 + $0x130] sm:$0xff]
    %v710 = vld [vmem:[%s670 + $0x138] sm:$0xff]
    %v711 = vld [vmem:[%s670 + $0x140] sm:$0xff]
    %v712 = vld [vmem:[%s670 + $0x148] sm:$0xff]
    %v713 = vld [vmem:[%s670 + $0x150] sm:$0xff]
    %v714 = vld [vmem:[%s670 + $0x158] sm:$0xff]
    %v715 = vld [vmem:[%s670 + $0x160] sm:$0xff]
    %v716 = vld [vmem:[%s670 + $0x168] sm:$0xff]
    %v717 = vld [vmem:[%s670 + $0x170] sm:$0xff]
    %v718 = vld [vmem:[%s670 + $0x178] sm:$0xff]
    %v719 = vld [vmem:[%s670 + $0x180] sm:$0xff]
    %v720 = vld [vmem:[%s670 + $0x188] sm:$0xff]
    %v721 = vld [vmem:[%s670 + $0x190] sm:$0xff]
    %v722 = vld [vmem:[%s670 + $0x198] sm:$0xff]
    %v723 = vld [vmem:[%s670 + $0x1a0] sm:$0xff]
    %v724 = vld [vmem:[%s670 + $0x1a8] sm:$0xff]
    %v725 = vld [vmem:[%s670 + $0x1b0] sm:$0xff]
    %v726 = vld [vmem:[%s670 + $0x1b8] sm:$0xff]
    %v727 = vld [vmem:[%s670 + $0x1c0] sm:$0xff]
    %v728 = vld [vmem:[%s670 + $0x1c8] sm:$0xff]
    %v729 = vld [vmem:[%s670 + $0x1d0] sm:$0xff]
    %v730 = vld [vmem:[%s670 + $0x1d8] sm:$0xff]
    %v731 = vld [vmem:[%s670 + $0x1e0] sm:$0xff]
    %v732 = vld [vmem:[%s670 + $0x1e8] sm:$0xff]
    %v733 = vld [vmem:[%s670 + $0x1f0] sm:$0xff]
    %v734 = vld [vmem:[%s670 + $0x1f8] sm:$0xff]
    %v735 = vld [vmem:[%s670 + $0x200] sm:$0xff]
    %v736 = vld [vmem:[%s670 + $0x208] sm:$0xff]
    %v737 = vld [vmem:[%s670 + $0x210] sm:$0xff]
    %v738 = vld [vmem:[%s670 + $0x218] sm:$0xff]
    %v739 = vld [vmem:[%s670 + $0x220] sm:$0xff]
    %v740 = vld [vmem:[%s670 + $0x228] sm:$0xff]
    %v741 = vld [vmem:[%s670 + $0x230] sm:$0xff]
    %v742 = vld [vmem:[%s670 + $0x238] sm:$0xff]
    %v743 = vld [vmem:[%s670 + $0x240] sm:$0xff]
    %v744 = vld [vmem:[%s670 + $0x248] sm:$0xff]
    %v745 = vld [vmem:[%s670 + $0x250] sm:$0xff]
    %s746 = scalar_lea.vmem %s3, 2
    %v747 = vld [vmem:[%s746] sm:$0x3]
    %v749 = vlaneseq
    %v750 = vshrl.u32 %v749, 7
    %v751 = vsub.s32 0, %v750
    %v752 = vrot.slane %v747, %v751
    %v753 = vlaneseq
    %v754 = vshrl.u32 %v753, 7
    %v755 = vsub.s32 1, %v754
    %v756 = vrot.slane %v747, %v755
    %v834 = vunpack.c.l.b16 %v671
    %v835 = vunpack.c.h.b16 %v671
    %v836 = vunpack.c.l.b16 %v672
    %v837 = vunpack.c.h.b16 %v672
    %v838 = vunpack.c.l.b16 %v673
    %v839 = vunpack.c.h.b16 %v673
    %v840 = vunpack.c.l.b16 %v674
    %v841 = vunpack.c.h.b16 %v674
    %v842 = vunpack.c.l.b16 %v675
    %v843 = vunpack.c.h.b16 %v675
    %v844 = vunpack.c.l.b16 %v676
    %v845 = vunpack.c.h.b16 %v676
    %v846 = vunpack.c.l.b16 %v677
    %v847 = vunpack.c.h.b16 %v677
    %v848 = vunpack.c.l.b16 %v678
    %v849 = vunpack.c.h.b16 %v678
    %v850 = vunpack.c.l.b16 %v679
    %v851 = vunpack.c.h.b16 %v679
    %v852 = vunpack.c.l.b16 %v680
    %v853 = vunpack.c.h.b16 %v680
    %v854 = vunpack.c.l.b16 %v681
    %v855 = vunpack.c.h.b16 %v681
    %v856 = vunpack.c.l.b16 %v682
    %v857 = vunpack.c.h.b16 %v682
    %v858 = vunpack.c.l.b16 %v683
    %v859 = vunpack.c.h.b16 %v683
    %v860 = vunpack.c.l.b16 %v684
    %v861 = vunpack.c.h.b16 %v684
    %v862 = vunpack.c.l.b16 %v685
    %v863 = vunpack.c.h.b16 %v685
    %v864 = vunpack.c.l.b16 %v686
    %v865 = vunpack.c.h.b16 %v686
    %v866 = vunpack.c.l.b16 %v687
    %v867 = vunpack.c.h.b16 %v687
    %v868 = vunpack.c.l.b16 %v688
    %v869 = vunpack.c.h.b16 %v688
    %v870 = vunpack.c.l.b16 %v689
    %v871 = vunpack.c.h.b16 %v689
    %v872 = vunpack.c.l.b16 %v690
    %v873 = vunpack.c.h.b16 %v690
    %v874 = vunpack.c.l.b16 %v691
    %v875 = vunpack.c.h.b16 %v691
    %v876 = vunpack.c.l.b16 %v692
    %v877 = vunpack.c.h.b16 %v692
    %v878 = vunpack.c.l.b16 %v693
    %v879 = vunpack.c.h.b16 %v693
    %v880 = vunpack.c.l.b16 %v694
    %v881 = vunpack.c.h.b16 %v694
    %v882 = vunpack.c.l.b16 %v695
    %v883 = vunpack.c.h.b16 %v695
    %v884 = vunpack.c.l.b16 %v696
    %v885 = vunpack.c.h.b16 %v696
    %v886 = vunpack.c.l.b16 %v697
    %v887 = vunpack.c.h.b16 %v697
    %v888 = vunpack.c.l.b16 %v698
    %v889 = vunpack.c.h.b16 %v698
    %v890 = vunpack.c.l.b16 %v699
    %v891 = vunpack.c.h.b16 %v699
    %v892 = vunpack.c.l.b16 %v700
    %v893 = vunpack.c.h.b16 %v700
    %v894 = vunpack.c.l.b16 %v701
    %v895 = vunpack.c.h.b16 %v701
    %v896 = vunpack.c.l.b16 %v702
    %v897 = vunpack.c.h.b16 %v702
    %v898 = vunpack.c.l.b16 %v703
    %v899 = vunpack.c.h.b16 %v703
    %v900 = vunpack.c.l.b16 %v704
    %v901 = vunpack.c.h.b16 %v704
    %v902 = vunpack.c.l.b16 %v705
    %v903 = vunpack.c.h.b16 %v705
    %v904 = vunpack.c.l.b16 %v706
    %v905 = vunpack.c.h.b16 %v706
    %v906 = vunpack.c.l.b16 %v707
    %v907 = vunpack.c.h.b16 %v707
    %v908 = vunpack.c.l.b16 %v708
    %v909 = vunpack.c.h.b16 %v708
    %v910 = vunpack.c.l.b16 %v709
    %v911 = vunpack.c.h.b16 %v709
    %v912 = vunpack.c.l.b16 %v710
    %v913 = vunpack.c.h.b16 %v710
    %v914 = vunpack.c.l.b16 %v711
    %v915 = vunpack.c.h.b16 %v711
    %v916 = vunpack.c.l.b16 %v712
    %v917 = vunpack.c.h.b16 %v712
    %v918 = vunpack.c.l.b16 %v713
    %v919 = vunpack.c.h.b16 %v713
    %v920 = vunpack.c.l.b16 %v714
    %v921 = vunpack.c.h.b16 %v714
    %v922 = vunpack.c.l.b16 %v715
    %v923 = vunpack.c.h.b16 %v715
    %v924 = vunpack.c.l.b16 %v716
    %v925 = vunpack.c.h.b16 %v716
    %v926 = vunpack.c.l.b16 %v717
    %v927 = vunpack.c.h.b16 %v717
    %v928 = vunpack.c.l.b16 %v718
    %v929 = vunpack.c.h.b16 %v718
    %v930 = vunpack.c.l.b16 %v719
    %v931 = vunpack.c.h.b16 %v719
    %v932 = vunpack.c.l.b16 %v720
    %v933 = vunpack.c.h.b16 %v720
    %v934 = vunpack.c.l.b16 %v721
    %v935 = vunpack.c.h.b16 %v721
    %v936 = vunpack.c.l.b16 %v722
    %v937 = vunpack.c.h.b16 %v722
    %v938 = vunpack.c.l.b16 %v723
    %v939 = vunpack.c.h.b16 %v723
    %v940 = vunpack.c.l.b16 %v724
    %v941 = vunpack.c.h.b16 %v724
    %v942 = vunpack.c.l.b16 %v725
    %v943 = vunpack.c.h.b16 %v725
    %v944 = vunpack.c.l.b16 %v726
    %v945 = vunpack.c.h.b16 %v726
    %v946 = vunpack.c.l.b16 %v727
    %v947 = vunpack.c.h.b16 %v727
    %v948 = vunpack.c.l.b16 %v728
    %v949 = vunpack.c.h.b16 %v728
    %v950 = vunpack.c.l.b16 %v729
    %v951 = vunpack.c.h.b16 %v729
    %v952 = vunpack.c.l.b16 %v730
    %v953 = vunpack.c.h.b16 %v730
    %v954 = vunpack.c.l.b16 %v731
    %v955 = vunpack.c.h.b16 %v731
    %v956 = vunpack.c.l.b16 %v732
    %v957 = vunpack.c.h.b16 %v732
    %v958 = vunpack.c.l.b16 %v733
    %v959 = vunpack.c.h.b16 %v733
    %v960 = vunpack.c.l.b16 %v734
    %v961 = vunpack.c.h.b16 %v734
    %v962 = vunpack.c.l.b16 %v735
    %v963 = vunpack.c.h.b16 %v735
    %v964 = vunpack.c.l.b16 %v736
    %v965 = vunpack.c.h.b16 %v736
    %v966 = vunpack.c.l.b16 %v737
    %v967 = vunpack.c.h.b16 %v737
    %v968 = vunpack.c.l.b16 %v738
    %v969 = vunpack.c.h.b16 %v738
    %v970 = vunpack.c.l.b16 %v739
    %v971 = vunpack.c.h.b16 %v739
    %v972 = vunpack.c.l.b16 %v740
    %v973 = vunpack.c.h.b16 %v740
    %v974 = vunpack.c.l.b16 %v741
    %v975 = vunpack.c.h.b16 %v741
    %v976 = vunpack.c.l.b16 %v742
    %v977 = vunpack.c.h.b16 %v742
    %v978 = vunpack.c.l.b16 %v743
    %v979 = vunpack.c.h.b16 %v743
    %v980 = vunpack.c.l.b16 %v744
    %v981 = vunpack.c.h.b16 %v744
    %v982 = vunpack.c.l.b16 %v745
    %v983 = vunpack.c.h.b16 %v745
    %v984 = vpack.c.b16 %v836, %v834
    %v985 = vpack.c.b16 %v837, %v835
    %v986 = vpack.c.b16 %v840, %v838
    %v987 = vpack.c.b16 %v841, %v839
    %v988 = vpack.c.b16 %v844, %v842
    %v989 = vpack.c.b16 %v845, %v843
    %v990 = vpack.c.b16 %v848, %v846
    %v991 = vpack.c.b16 %v849, %v847
    %v992 = vpack.c.b16 %v852, %v850
    %v993 = vpack.c.b16 %v853, %v851
    %v994 = vpack.c.b16 %v856, %v854
    %v995 = vpack.c.b16 %v857, %v855
    %v996 = vpack.c.b16 %v860, %v858
    %v997 = vpack.c.b16 %v861, %v859
    %v998 = vpack.c.b16 %v864, %v862
    %v999 = vpack.c.b16 %v865, %v863
    %v1000 = vpack.c.b16 %v868, %v866
    %v1001 = vpack.c.b16 %v869, %v867
    %v1002 = vpack.c.b16 %v872, %v870
    %v1003 = vpack.c.b16 %v873, %v871
    %v1004 = vpack.c.b16 %v876, %v874
    %v1005 = vpack.c.b16 %v877, %v875
    %v1006 = vpack.c.b16 %v880, %v878
    %v1007 = vpack.c.b16 %v881, %v879
    %v1008 = vpack.c.b16 %v884, %v882
    %v1009 = vpack.c.b16 %v885, %v883
    %v1010 = vpack.c.b16 %v888, %v886
    %v1011 = vpack.c.b16 %v889, %v887
    %v1012 = vpack.c.b16 %v892, %v890
    %v1013 = vpack.c.b16 %v893, %v891
    %v1014 = vpack.c.b16 %v896, %v894
    %v1015 = vpack.c.b16 %v897, %v895
    %v1016 = vpack.c.b16 %v900, %v898
    %v1017 = vpack.c.b16 %v901, %v899
    %v1018 = vpack.c.b16 %v904, %v902
    %v1019 = vpack.c.b16 %v905, %v903
    %v1020 = vpack.c.b16 %v908, %v906
    %v1021 = vpack.c.b16 %v909, %v907
    %v1022 = vpack.c.b16 %v912, %v910
    %v1023 = vpack.c.b16 %v913, %v911
    %v1024 = vpack.c.b16 %v916, %v914
    %v1025 = vpack.c.b16 %v917, %v915
    %v1026 = vpack.c.b16 %v920, %v918
    %v1027 = vpack.c.b16 %v921, %v919
    %v1028 = vpack.c.b16 %v924, %v922
    %v1029 = vpack.c.b16 %v925, %v923
    %v1030 = vpack.c.b16 %v928, %v926
    %v1031 = vpack.c.b16 %v929, %v927
    %v1032 = vpack.c.b16 %v932, %v930
    %v1033 = vpack.c.b16 %v933, %v931
    %v1034 = vpack.c.b16 %v936, %v934
    %v1035 = vpack.c.b16 %v937, %v935
    %v1036 = vpack.c.b16 %v940, %v938
    %v1037 = vpack.c.b16 %v941, %v939
    %v1038 = vpack.c.b16 %v944, %v942
    %v1039 = vpack.c.b16 %v945, %v943
    %v1040 = vpack.c.b16 %v948, %v946
    %v1041 = vpack.c.b16 %v949, %v947
    %v1042 = vpack.c.b16 %v952, %v950
    %v1043 = vpack.c.b16 %v953, %v951
    %v1044 = vpack.c.b16 %v956, %v954
    %v1045 = vpack.c.b16 %v957, %v955
    %v1046 = vpack.c.b16 %v960, %v958
    %v1047 = vpack.c.b16 %v961, %v959
    %v1048 = vpack.c.b16 %v964, %v962
    %v1049 = vpack.c.b16 %v965, %v963
    %v1050 = vpack.c.b16 %v968, %v966
    %v1051 = vpack.c.b16 %v969, %v967
    %v1052 = vpack.c.b16 %v972, %v970
    %v1053 = vpack.c.b16 %v973, %v971
    %v1054 = vpack.c.b16 %v976, %v974
    %v1055 = vpack.c.b16 %v977, %v975
    %v1056 = vpack.c.b16 %v980, %v978
    %v1057 = vpack.c.b16 %v981, %v979
    %v1058 = vpack.c.b16 %v982, %v982
    %v1059 = vpack.c.b16 %v983, %v983
    %v1135 = vsel %vm534, %v1058, 0
    %v1138 = vsel %vm534, %v1059, 0
    %1140 = vmatprep.subr.bf16.mxu0 %v985
    %1141 = vmatpush1.bf16.msra.mxu0 %v984
    %1142 = vmatprep.subr.bf16.mxu0 %v987
    %1143 = vmatpush1.bf16.msra.mxu0 %v986
    %1144 = vmatprep.subr.bf16.mxu0 %v989
    %1145 = vmatpush1.bf16.msra.mxu0 %v988
    %1146 = vmatprep.subr.bf16.mxu0 %v991
    %1147 = vmatpush1.bf16.msra.mxu0 %v990
    %1148 = vmatprep.subr.bf16.mxu0 %v993
    %1149 = vmatpush1.bf16.msra.mxu0 %v992
    %1150 = vmatprep.subr.bf16.mxu0 %v995
    %1151 = vmatpush1.bf16.msra.mxu0 %v994
    %1152 = vmatprep.subr.bf16.mxu0 %v997
    %1153 = vmatpush1.bf16.msra.mxu0 %v996
    %1154 = vmatprep.subr.bf16.mxu0 %v999
    %1155 = vmatpush1.bf16.msra.mxu0 %v998
    %1156 = vmatprep.subr.bf16.mxu0 %v1001
    %1157 = vmatpush1.bf16.msra.mxu0 %v1000
    %1158 = vmatprep.subr.bf16.mxu0 %v1003
    %1159 = vmatpush1.bf16.msra.mxu0 %v1002
    %1160 = vmatprep.subr.bf16.mxu0 %v1005
    %1161 = vmatpush1.bf16.msra.mxu0 %v1004
    %1162 = vmatprep.subr.bf16.mxu0 %v1007
    %1163 = vmatpush1.bf16.msra.mxu0 %v1006
    %1164 = vmatprep.subr.bf16.mxu0 %v1009
    %1165 = vmatpush1.bf16.msra.mxu0 %v1008
    %1166 = vmatprep.subr.bf16.mxu0 %v1011
    %1167 = vmatpush1.bf16.msra.mxu0 %v1010
    %1168 = vmatprep.subr.bf16.mxu0 %v1013
    %1169 = vmatpush1.bf16.msra.mxu0 %v1012
    %1170 = vmatprep.subr.bf16.mxu0 %v1015
    %1171 = vmatpush1.bf16.msra.mxu0 %v1014
    %1172 = vmatprep.mubr.bf16.mxu0 %v147
    %1173 = vmatmul.mubr.bf16.gmra.mrb[0].mxu0 %v146
    %v1174 = vpop.f32.mrb[0].mxu0
    %v1175 = vadd.f32 %v752, %v1174
    %v1176 = vpop.f32.mrb[0].mxu0
    %v1177 = vadd.f32 %v756, %v1176
    %v1178 = vpop.f32.mrb[0].mxu0
    %v1179 = vadd.f32 %v752, %v1178
    %v1180 = vpop.f32.mrb[0].mxu0
    %v1181 = vadd.f32 %v756, %v1180
    %1182 = vdwg.mxu0
    %1183 = vmatprep.subr.bf16.mxu0 %v1017
    %1184 = vmatpush1.bf16.msra.mxu0 %v1016
    %1185 = vmatprep.subr.bf16.mxu0 %v1019
    %1186 = vmatpush1.bf16.msra.mxu0 %v1018
    %1187 = vmatprep.subr.bf16.mxu0 %v1021
    %1188 = vmatpush1.bf16.msra.mxu0 %v1020
    %1189 = vmatprep.subr.bf16.mxu0 %v1023
    %1190 = vmatpush1.bf16.msra.mxu0 %v1022
    %1191 = vmatprep.subr.bf16.mxu0 %v1025
    %1192 = vmatpush1.bf16.msra.mxu0 %v1024
    %1193 = vmatprep.subr.bf16.mxu0 %v1027
    %1194 = vmatpush1.bf16.msra.mxu0 %v1026
    %1195 = vmatprep.subr.bf16.mxu0 %v1029
    %1196 = vmatpush1.bf16.msra.mxu0 %v1028
    %1197 = vmatprep.subr.bf16.mxu0 %v1031
    %1198 = vmatpush1.bf16.msra.mxu0 %v1030
    %1199 = vmatprep.subr.bf16.mxu0 %v1033
    %1200 = vmatpush1.bf16.msra.mxu0 %v1032
    %1201 = vmatprep.subr.bf16.mxu0 %v1035
    %1202 = vmatpush1.bf16.msra.mxu0 %v1034
    %1203 = vmatprep.subr.bf16.mxu0 %v1037
    %1204 = vmatpush1.bf16.msra.mxu0 %v1036
    %1205 = vmatprep.subr.bf16.mxu0 %v1039
    %1206 = vmatpush1.bf16.msra.mxu0 %v1038
    %1207 = vmatprep.subr.bf16.mxu0 %v1041
    %1208 = vmatpush1.bf16.msra.mxu0 %v1040
    %1209 = vmatprep.subr.bf16.mxu0 %v1043
    %1210 = vmatpush1.bf16.msra.mxu0 %v1042
    %1211 = vmatprep.subr.bf16.mxu0 %v1045
    %1212 = vmatpush1.bf16.msra.mxu0 %v1044
    %1213 = vmatprep.subr.bf16.mxu0 %v1047
    %1214 = vmatpush1.bf16.msra.mxu0 %v1046
    %1215 = vmatprep.mubr.bf16.mxu0 %v149
    %1216 = vmatmul.mubr.bf16.gmra.mrb[0].mxu0 %v148
    %v1217 = vpop.f32.mrb[0].mxu0
    %v1218 = vadd.f32 %v1175, %v1217
    %v1219 = vpop.f32.mrb[0].mxu0
    %v1220 = vadd.f32 %v1177, %v1219
    %v1221 = vpop.f32.mrb[0].mxu0
    %v1222 = vadd.f32 %v1179, %v1221
    %v1223 = vpop.f32.mrb[0].mxu0
    %v1224 = vadd.f32 %v1181, %v1223
    %1225 = vdwg.mxu0
    %1226 = vmatprep.subr.bf16.mxu0 %v1049
    %1227 = vmatpush1.bf16.msra.mxu0 %v1048
    %1228 = vmatprep.subr.bf16.mxu0 %v1051
    %1229 = vmatpush1.bf16.msra.mxu0 %v1050
    %1230 = vmatprep.subr.bf16.mxu0 %v1053
    %1231 = vmatpush1.bf16.msra.mxu0 %v1052
    %1232 = vmatprep.subr.bf16.mxu0 %v1055
    %1233 = vmatpush1.bf16.msra.mxu0 %v1054
    %1234 = vmatprep.subr.bf16.mxu0 %v1057
    %1235 = vmatpush1.bf16.msra.mxu0 %v1056
    %1236 = vmatprep.subr.bf16.mxu0 %v1138
    %1237 = vmatpush1.bf16.msra.mxu0 %v1135
    %1238 = vmatprep.subr.bf16.mxu0 0
    %1239 = vmatpush1.bf16.msra.mxu0 0
    %1240 = vmatprep.subr.bf16.mxu0 0
    %1241 = vmatpush1.bf16.msra.mxu0 0
    %1242 = vmatprep.subr.bf16.mxu0 0
    %1243 = vmatpush1.bf16.msra.mxu0 0
    %1244 = vmatprep.subr.bf16.mxu0 0
    %1245 = vmatpush1.bf16.msra.mxu0 0
    %1246 = vmatprep.subr.bf16.mxu0 0
    %1247 = vmatpush1.bf16.msra.mxu0 0
    %1248 = vmatprep.subr.bf16.mxu0 0
    %1249 = vmatpush1.bf16.msra.mxu0 0
    %1250 = vmatprep.subr.bf16.mxu0 0
    %1251 = vmatpush1.bf16.msra.mxu0 0
    %1252 = vmatprep.subr.bf16.mxu0 0
    %1253 = vmatpush1.bf16.msra.mxu0 0
    %1254 = vmatprep.subr.bf16.mxu0 0
    %1255 = vmatpush1.bf16.msra.mxu0 0
    %1256 = vmatprep.subr.bf16.mxu0 0
    %1257 = vmatpush1.bf16.msra.mxu0 0
    %1258 = vmatprep.mubr.bf16.mxu0 0
    %1259 = vmatmul.mubr.bf16.gmra.mrb[0].mxu0 %v532
    %v1260 = vpop.f32.mrb[0].mxu0
    %v1261 = vadd.f32 %v1218, %v1260
    %v1262 = vpop.f32.mrb[0].mxu0
    %v1263 = vadd.f32 %v1220, %v1262
    %v1264 = vpop.f32.mrb[0].mxu0
    %v1265 = vadd.f32 %v1222, %v1264
    %v1266 = vpop.f32.mrb[0].mxu0
    %v1267 = vadd.f32 %v1224, %v1266
    %1268 = vdwg.mxu0
    %s1269 = scalar_lea.vmem %s1, 1200
    %v1270 = vld [vmem:[%s1269] sm:$0xff]
    %v1271 = vld [vmem:[%s1269 + $0x8] sm:$0xff]
    %v1272 = vld [vmem:[%s1269 + $0x10] sm:$0xff]
    %v1273 = vld [vmem:[%s1269 + $0x18] sm:$0xff]
    %v1274 = vld [vmem:[%s1269 + $0x20] sm:$0xff]
    %v1275 = vld [vmem:[%s1269 + $0x28] sm:$0xff]
    %v1276 = vld [vmem:[%s1269 + $0x30] sm:$0xff]
    %v1277 = vld [vmem:[%s1269 + $0x38] sm:$0xff]
    %v1278 = vld [vmem:[%s1269 + $0x40] sm:$0xff]
    %v1279 = vld [vmem:[%s1269 + $0x48] sm:$0xff]
    %v1280 = vld [vmem:[%s1269 + $0x50] sm:$0xff]
    %v1281 = vld [vmem:[%s1269 + $0x58] sm:$0xff]
    %v1282 = vld [vmem:[%s1269 + $0x60] sm:$0xff]
    %v1283 = vld [vmem:[%s1269 + $0x68] sm:$0xff]
    %v1284 = vld [vmem:[%s1269 + $0x70] sm:$0xff]
    %v1285 = vld [vmem:[%s1269 + $0x78] sm:$0xff]
    %v1286 = vld [vmem:[%s1269 + $0x80] sm:$0xff]
    %v1287 = vld [vmem:[%s1269 + $0x88] sm:$0xff]
    %v1288 = vld [vmem:[%s1269 + $0x90] sm:$0xff]
    %v1289 = vld [vmem:[%s1269 + $0x98] sm:$0xff]
    %v1290 = vld [vmem:[%s1269 + $0xa0] sm:$0xff]
    %v1291 = vld [vmem:[%s1269 + $0xa8] sm:$0xff]
    %v1292 = vld [vmem:[%s1269 + $0xb0] sm:$0xff]
    %v1293 = vld [vmem:[%s1269 + $0xb8] sm:$0xff]
    %v1294 = vld [vmem:[%s1269 + $0xc0] sm:$0xff]
    %v1295 = vld [vmem:[%s1269 + $0xc8] sm:$0xff]
    %v1296 = vld [vmem:[%s1269 + $0xd0] sm:$0xff]
    %v1297 = vld [vmem:[%s1269 + $0xd8] sm:$0xff]
    %v1298 = vld [vmem:[%s1269 + $0xe0] sm:$0xff]
    %v1299 = vld [vmem:[%s1269 + $0xe8] sm:$0xff]
    %v1300 = vld [vmem:[%s1269 + $0xf0] sm:$0xff]
    %v1301 = vld [vmem:[%s1269 + $0xf8] sm:$0xff]
    %v1302 = vld [vmem:[%s1269 + $0x100] sm:$0xff]
    %v1303 = vld [vmem:[%s1269 + $0x108] sm:$0xff]
    %v1304 = vld [vmem:[%s1269 + $0x110] sm:$0xff]
    %v1305 = vld [vmem:[%s1269 + $0x118] sm:$0xff]
    %v1306 = vld [vmem:[%s1269 + $0x120] sm:$0xff]
    %v1307 = vld [vmem:[%s1269 + $0x128] sm:$0xff]
    %v1308 = vld [vmem:[%s1269 + $0x130] sm:$0xff]
    %v1309 = vld [vmem:[%s1269 + $0x138] sm:$0xff]
    %v1310 = vld [vmem:[%s1269 + $0x140] sm:$0xff]
    %v1311 = vld [vmem:[%s1269 + $0x148] sm:$0xff]
    %v1312 = vld [vmem:[%s1269 + $0x150] sm:$0xff]
    %v1313 = vld [vmem:[%s1269 + $0x158] sm:$0xff]
    %v1314 = vld [vmem:[%s1269 + $0x160] sm:$0xff]
    %v1315 = vld [vmem:[%s1269 + $0x168] sm:$0xff]
    %v1316 = vld [vmem:[%s1269 + $0x170] sm:$0xff]
    %v1317 = vld [vmem:[%s1269 + $0x178] sm:$0xff]
    %v1318 = vld [vmem:[%s1269 + $0x180] sm:$0xff]
    %v1319 = vld [vmem:[%s1269 + $0x188] sm:$0xff]
    %v1320 = vld [vmem:[%s1269 + $0x190] sm:$0xff]
    %v1321 = vld [vmem:[%s1269 + $0x198] sm:$0xff]
    %v1322 = vld [vmem:[%s1269 + $0x1a0] sm:$0xff]
    %v1323 = vld [vmem:[%s1269 + $0x1a8] sm:$0xff]
    %v1324 = vld [vmem:[%s1269 + $0x1b0] sm:$0xff]
    %v1325 = vld [vmem:[%s1269 + $0x1b8] sm:$0xff]
    %v1326 = vld [vmem:[%s1269 + $0x1c0] sm:$0xff]
    %v1327 = vld [vmem:[%s1269 + $0x1c8] sm:$0xff]
    %v1328 = vld [vmem:[%s1269 + $0x1d0] sm:$0xff]
    %v1329 = vld [vmem:[%s1269 + $0x1d8] sm:$0xff]
    %v1330 = vld [vmem:[%s1269 + $0x1e0] sm:$0xff]
    %v1331 = vld [vmem:[%s1269 + $0x1e8] sm:$0xff]
    %v1332 = vld [vmem:[%s1269 + $0x1f0] sm:$0xff]
    %v1333 = vld [vmem:[%s1269 + $0x1f8] sm:$0xff]
    %v1334 = vld [vmem:[%s1269 + $0x200] sm:$0xff]
    %v1335 = vld [vmem:[%s1269 + $0x208] sm:$0xff]
    %v1336 = vld [vmem:[%s1269 + $0x210] sm:$0xff]
    %v1337 = vld [vmem:[%s1269 + $0x218] sm:$0xff]
    %v1338 = vld [vmem:[%s1269 + $0x220] sm:$0xff]
    %v1339 = vld [vmem:[%s1269 + $0x228] sm:$0xff]
    %v1340 = vld [vmem:[%s1269 + $0x230] sm:$0xff]
    %v1341 = vld [vmem:[%s1269 + $0x238] sm:$0xff]
    %v1342 = vld [vmem:[%s1269 + $0x240] sm:$0xff]
    %v1343 = vld [vmem:[%s1269 + $0x248] sm:$0xff]
    %v1344 = vld [vmem:[%s1269 + $0x250] sm:$0xff]
    %s1345 = scalar_lea.vmem %s3, 4
    %v1346 = vld [vmem:[%s1345] sm:$0x3]
    %v1348 = vlaneseq
    %v1349 = vshrl.u32 %v1348, 7
    %v1350 = vsub.s32 0, %v1349
    %v1351 = vrot.slane %v1346, %v1350
    %v1352 = vlaneseq
    %v1353 = vshrl.u32 %v1352, 7
    %v1354 = vsub.s32 1, %v1353
    %v1355 = vrot.slane %v1346, %v1354
    %v1433 = vunpack.c.l.b16 %v1270
    %v1434 = vunpack.c.h.b16 %v1270
    %v1435 = vunpack.c.l.b16 %v1271
    %v1436 = vunpack.c.h.b16 %v1271
    %v1437 = vunpack.c.l.b16 %v1272
    %v1438 = vunpack.c.h.b16 %v1272
    %v1439 = vunpack.c.l.b16 %v1273
    %v1440 = vunpack.c.h.b16 %v1273
    %v1441 = vunpack.c.l.b16 %v1274
    %v1442 = vunpack.c.h.b16 %v1274
    %v1443 = vunpack.c.l.b16 %v1275
    %v1444 = vunpack.c.h.b16 %v1275
    %v1445 = vunpack.c.l.b16 %v1276
    %v1446 = vunpack.c.h.b16 %v1276
    %v1447 = vunpack.c.l.b16 %v1277
    %v1448 = vunpack.c.h.b16 %v1277
    %v1449 = vunpack.c.l.b16 %v1278
    %v1450 = vunpack.c.h.b16 %v1278
    %v1451 = vunpack.c.l.b16 %v1279
    %v1452 = vunpack.c.h.b16 %v1279
    %v1453 = vunpack.c.l.b16 %v1280
    %v1454 = vunpack.c.h.b16 %v1280
    %v1455 = vunpack.c.l.b16 %v1281
    %v1456 = vunpack.c.h.b16 %v1281
    %v1457 = vunpack.c.l.b16 %v1282
    %v1458 = vunpack.c.h.b16 %v1282
    %v1459 = vunpack.c.l.b16 %v1283
    %v1460 = vunpack.c.h.b16 %v1283
    %v1461 = vunpack.c.l.b16 %v1284
    %v1462 = vunpack.c.h.b16 %v1284
    %v1463 = vunpack.c.l.b16 %v1285
    %v1464 = vunpack.c.h.b16 %v1285
    %v1465 = vunpack.c.l.b16 %v1286
    %v1466 = vunpack.c.h.b16 %v1286
    %v1467 = vunpack.c.l.b16 %v1287
    %v1468 = vunpack.c.h.b16 %v1287
    %v1469 = vunpack.c.l.b16 %v1288
    %v1470 = vunpack.c.h.b16 %v1288
    %v1471 = vunpack.c.l.b16 %v1289
    %v1472 = vunpack.c.h.b16 %v1289
    %v1473 = vunpack.c.l.b16 %v1290
    %v1474 = vunpack.c.h.b16 %v1290
    %v1475 = vunpack.c.l.b16 %v1291
    %v1476 = vunpack.c.h.b16 %v1291
    %v1477 = vunpack.c.l.b16 %v1292
    %v1478 = vunpack.c.h.b16 %v1292
    %v1479 = vunpack.c.l.b16 %v1293
    %v1480 = vunpack.c.h.b16 %v1293
    %v1481 = vunpack.c.l.b16 %v1294
    %v1482 = vunpack.c.h.b16 %v1294
    %v1483 = vunpack.c.l.b16 %v1295
    %v1484 = vunpack.c.h.b16 %v1295
    %v1485 = vunpack.c.l.b16 %v1296
    %v1486 = vunpack.c.h.b16 %v1296
    %v1487 = vunpack.c.l.b16 %v1297
    %v1488 = vunpack.c.h.b16 %v1297
    %v1489 = vunpack.c.l.b16 %v1298
    %v1490 = vunpack.c.h.b16 %v1298
    %v1491 = vunpack.c.l.b16 %v1299
    %v1492 = vunpack.c.h.b16 %v1299
    %v1493 = vunpack.c.l.b16 %v1300
    %v1494 = vunpack.c.h.b16 %v1300
    %v1495 = vunpack.c.l.b16 %v1301
    %v1496 = vunpack.c.h.b16 %v1301
    %v1497 = vunpack.c.l.b16 %v1302
    %v1498 = vunpack.c.h.b16 %v1302
    %v1499 = vunpack.c.l.b16 %v1303
    %v1500 = vunpack.c.h.b16 %v1303
    %v1501 = vunpack.c.l.b16 %v1304
    %v1502 = vunpack.c.h.b16 %v1304
    %v1503 = vunpack.c.l.b16 %v1305
    %v1504 = vunpack.c.h.b16 %v1305
    %v1505 = vunpack.c.l.b16 %v1306
    %v1506 = vunpack.c.h.b16 %v1306
    %v1507 = vunpack.c.l.b16 %v1307
    %v1508 = vunpack.c.h.b16 %v1307
    %v1509 = vunpack.c.l.b16 %v1308
    %v1510 = vunpack.c.h.b16 %v1308
    %v1511 = vunpack.c.l.b16 %v1309
    %v1512 = vunpack.c.h.b16 %v1309
    %v1513 = vunpack.c.l.b16 %v1310
    %v1514 = vunpack.c.h.b16 %v1310
    %v1515 = vunpack.c.l.b16 %v1311
    %v1516 = vunpack.c.h.b16 %v1311
    %v1517 = vunpack.c.l.b16 %v1312
    %v1518 = vunpack.c.h.b16 %v1312
    %v1519 = vunpack.c.l.b16 %v1313
    %v1520 = vunpack.c.h.b16 %v1313
    %v1521 = vunpack.c.l.b16 %v1314
    %v1522 = vunpack.c.h.b16 %v1314
    %v1523 = vunpack.c.l.b16 %v1315
    %v1524 = vunpack.c.h.b16 %v1315
    %v1525 = vunpack.c.l.b16 %v1316
    %v1526 = vunpack.c.h.b16 %v1316
    %v1527 = vunpack.c.l.b16 %v1317
    %v1528 = vunpack.c.h.b16 %v1317
    %v1529 = vunpack.c.l.b16 %v1318
    %v1530 = vunpack.c.h.b16 %v1318
    %v1531 = vunpack.c.l.b16 %v1319
    %v1532 = vunpack.c.h.b16 %v1319
    %v1533 = vunpack.c.l.b16 %v1320
    %v1534 = vunpack.c.h.b16 %v1320
    %v1535 = vunpack.c.l.b16 %v1321
    %v1536 = vunpack.c.h.b16 %v1321
    %v1537 = vunpack.c.l.b16 %v1322
    %v1538 = vunpack.c.h.b16 %v1322
    %v1539 = vunpack.c.l.b16 %v1323
    %v1540 = vunpack.c.h.b16 %v1323
    %v1541 = vunpack.c.l.b16 %v1324
    %v1542 = vunpack.c.h.b16 %v1324
    %v1543 = vunpack.c.l.b16 %v1325
    %v1544 = vunpack.c.h.b16 %v1325
    %v1545 = vunpack.c.l.b16 %v1326
    %v1546 = vunpack.c.h.b16 %v1326
    %v1547 = vunpack.c.l.b16 %v1327
    %v1548 = vunpack.c.h.b16 %v1327
    %v1549 = vunpack.c.l.b16 %v1328
    %v1550 = vunpack.c.h.b16 %v1328
    %v1551 = vunpack.c.l.b16 %v1329
    %v1552 = vunpack.c.h.b16 %v1329
    %v1553 = vunpack.c.l.b16 %v1330
    %v1554 = vunpack.c.h.b16 %v1330
    %v1555 = vunpack.c.l.b16 %v1331
    %v1556 = vunpack.c.h.b16 %v1331
    %v1557 = vunpack.c.l.b16 %v1332
    %v1558 = vunpack.c.h.b16 %v1332
    %v1559 = vunpack.c.l.b16 %v1333
    %v1560 = vunpack.c.h.b16 %v1333
    %v1561 = vunpack.c.l.b16 %v1334
    %v1562 = vunpack.c.h.b16 %v1334
    %v1563 = vunpack.c.l.b16 %v1335
    %v1564 = vunpack.c.h.b16 %v1335
    %v1565 = vunpack.c.l.b16 %v1336
    %v1566 = vunpack.c.h.b16 %v1336
    %v1567 = vunpack.c.l.b16 %v1337
    %v1568 = vunpack.c.h.b16 %v1337
    %v1569 = vunpack.c.l.b16 %v1338
    %v1570 = vunpack.c.h.b16 %v1338
    %v1571 = vunpack.c.l.b16 %v1339
    %v1572 = vunpack.c.h.b16 %v1339
    %v1573 = vunpack.c.l.b16 %v1340
    %v1574 = vunpack.c.h.b16 %v1340
    %v1575 = vunpack.c.l.b16 %v1341
    %v1576 = vunpack.c.h.b16 %v1341
    %v1577 = vunpack.c.l.b16 %v1342
    %v1578 = vunpack.c.h.b16 %v1342
    %v1579 = vunpack.c.l.b16 %v1343
    %v1580 = vunpack.c.h.b16 %v1343
    %v1581 = vunpack.c.l.b16 %v1344
    %v1582 = vunpack.c.h.b16 %v1344
    %v1583 = vpack.c.b16 %v1435, %v1433
    %v1584 = vpack.c.b16 %v1436, %v1434
    %v1585 = vpack.c.b16 %v1439, %v1437
    %v1586 = vpack.c.b16 %v1440, %v1438
    %v1587 = vpack.c.b16 %v1443, %v1441
    %v1588 = vpack.c.b16 %v1444, %v1442
    %v1589 = vpack.c.b16 %v1447, %v1445
    %v1590 = vpack.c.b16 %v1448, %v1446
    %v1591 = vpack.c.b16 %v1451, %v1449
    %v1592 = vpack.c.b16 %v1452, %v1450
    %v1593 = vpack.c.b16 %v1455, %v1453
    %v1594 = vpack.c.b16 %v1456, %v1454
    %v1595 = vpack.c.b16 %v1459, %v1457
    %v1596 = vpack.c.b16 %v1460, %v1458
    %v1597 = vpack.c.b16 %v1463, %v1461
    %v1598 = vpack.c.b16 %v1464, %v1462
    %v1599 = vpack.c.b16 %v1467, %v1465
    %v1600 = vpack.c.b16 %v1468, %v1466
    %v1601 = vpack.c.b16 %v1471, %v1469
    %v1602 = vpack.c.b16 %v1472, %v1470
    %v1603 = vpack.c.b16 %v1475, %v1473
    %v1604 = vpack.c.b16 %v1476, %v1474
    %v1605 = vpack.c.b16 %v1479, %v1477
    %v1606 = vpack.c.b16 %v1480, %v1478
    %v1607 = vpack.c.b16 %v1483, %v1481
    %v1608 = vpack.c.b16 %v1484, %v1482
    %v1609 = vpack.c.b16 %v1487, %v1485
    %v1610 = vpack.c.b16 %v1488, %v1486
    %v1611 = vpack.c.b16 %v1491, %v1489
    %v1612 = vpack.c.b16 %v1492, %v1490
    %v1613 = vpack.c.b16 %v1495, %v1493
    %v1614 = vpack.c.b16 %v1496, %v1494
    %v1615 = vpack.c.b16 %v1499, %v1497
    %v1616 = vpack.c.b16 %v1500, %v1498
    %v1617 = vpack.c.b16 %v1503, %v1501
    %v1618 = vpack.c.b16 %v1504, %v1502
    %v1619 = vpack.c.b16 %v1507, %v1505
    %v1620 = vpack.c.b16 %v1508, %v1506
    %v1621 = vpack.c.b16 %v1511, %v1509
    %v1622 = vpack.c.b16 %v1512, %v1510
    %v1623 = vpack.c.b16 %v1515, %v1513
    %v1624 = vpack.c.b16 %v1516, %v1514
    %v1625 = vpack.c.b16 %v1519, %v1517
    %v1626 = vpack.c.b16 %v1520, %v1518
    %v1627 = vpack.c.b16 %v1523, %v1521
    %v1628 = vpack.c.b16 %v1524, %v1522
    %v1629 = vpack.c.b16 %v1527, %v1525
    %v1630 = vpack.c.b16 %v1528, %v1526
    %v1631 = vpack.c.b16 %v1531, %v1529
    %v1632 = vpack.c.b16 %v1532, %v1530
    %v1633 = vpack.c.b16 %v1535, %v1533
    %v1634 = vpack.c.b16 %v1536, %v1534
    %v1635 = vpack.c.b16 %v1539, %v1537
    %v1636 = vpack.c.b16 %v1540, %v1538
    %v1637 = vpack.c.b16 %v1543, %v1541
    %v1638 = vpack.c.b16 %v1544, %v1542
    %v1639 = vpack.c.b16 %v1547, %v1545
    %v1640 = vpack.c.b16 %v1548, %v1546
    %v1641 = vpack.c.b16 %v1551, %v1549
    %v1642 = vpack.c.b16 %v1552, %v1550
    %v1643 = vpack.c.b16 %v1555, %v1553
    %v1644 = vpack.c.b16 %v1556, %v1554
    %v1645 = vpack.c.b16 %v1559, %v1557
    %v1646 = vpack.c.b16 %v1560, %v1558
    %v1647 = vpack.c.b16 %v1563, %v1561
    %v1648 = vpack.c.b16 %v1564, %v1562
    %v1649 = vpack.c.b16 %v1567, %v1565
    %v1650 = vpack.c.b16 %v1568, %v1566
    %v1651 = vpack.c.b16 %v1571, %v1569
    %v1652 = vpack.c.b16 %v1572, %v1570
    %v1653 = vpack.c.b16 %v1575, %v1573
    %v1654 = vpack.c.b16 %v1576, %v1574
    %v1655 = vpack.c.b16 %v1579, %v1577
    %v1656 = vpack.c.b16 %v1580, %v1578
    %v1657 = vpack.c.b16 %v1581, %v1581
    %v1658 = vpack.c.b16 %v1582, %v1582
    %v1734 = vsel %vm534, %v1657, 0
    %v1737 = vsel %vm534, %v1658, 0
    %1739 = vmatprep.subr.bf16.mxu0 %v1584
    %1740 = vmatpush1.bf16.msra.mxu0 %v1583
    %1741 = vmatprep.subr.bf16.mxu0 %v1586
    %1742 = vmatpush1.bf16.msra.mxu0 %v1585
    %1743 = vmatprep.subr.bf16.mxu0 %v1588
    %1744 = vmatpush1.bf16.msra.mxu0 %v1587
    %1745 = vmatprep.subr.bf16.mxu0 %v1590
    %1746 = vmatpush1.bf16.msra.mxu0 %v1589
    %1747 = vmatprep.subr.bf16.mxu0 %v1592
    %1748 = vmatpush1.bf16.msra.mxu0 %v1591
    %1749 = vmatprep.subr.bf16.mxu0 %v1594
    %1750 = vmatpush1.bf16.msra.mxu0 %v1593
    %1751 = vmatprep.subr.bf16.mxu0 %v1596
    %1752 = vmatpush1.bf16.msra.mxu0 %v1595
    %1753 = vmatprep.subr.bf16.mxu0 %v1598
    %1754 = vmatpush1.bf16.msra.mxu0 %v1597
    %1755 = vmatprep.subr.bf16.mxu0 %v1600
    %1756 = vmatpush1.bf16.msra.mxu0 %v1599
    %1757 = vmatprep.subr.bf16.mxu0 %v1602
    %1758 = vmatpush1.bf16.msra.mxu0 %v1601
    %1759 = vmatprep.subr.bf16.mxu0 %v1604
    %1760 = vmatpush1.bf16.msra.mxu0 %v1603
    %1761 = vmatprep.subr.bf16.mxu0 %v1606
    %1762 = vmatpush1.bf16.msra.mxu0 %v1605
    %1763 = vmatprep.subr.bf16.mxu0 %v1608
    %1764 = vmatpush1.bf16.msra.mxu0 %v1607
    %1765 = vmatprep.subr.bf16.mxu0 %v1610
    %1766 = vmatpush1.bf16.msra.mxu0 %v1609
    %1767 = vmatprep.subr.bf16.mxu0 %v1612
    %1768 = vmatpush1.bf16.msra.mxu0 %v1611
    %1769 = vmatprep.subr.bf16.mxu0 %v1614
    %1770 = vmatpush1.bf16.msra.mxu0 %v1613
    %1771 = vmatprep.mubr.bf16.mxu0 %v147
    %1772 = vmatmul.mubr.bf16.gmra.mrb[0].mxu0 %v146
    %v1773 = vpop.f32.mrb[0].mxu0
    %v1774 = vadd.f32 %v1351, %v1773
    %v1775 = vpop.f32.mrb[0].mxu0
    %v1776 = vadd.f32 %v1355, %v1775
    %v1777 = vpop.f32.mrb[0].mxu0
    %v1778 = vadd.f32 %v1351, %v1777
    %v1779 = vpop.f32.mrb[0].mxu0
    %v1780 = vadd.f32 %v1355, %v1779
    %1781 = vdwg.mxu0
    %1782 = vmatprep.subr.bf16.mxu0 %v1616
    %1783 = vmatpush1.bf16.msra.mxu0 %v1615
    %1784 = vmatprep.subr.bf16.mxu0 %v1618
    %1785 = vmatpush1.bf16.msra.mxu0 %v1617
    %1786 = vmatprep.subr.bf16.mxu0 %v1620
    %1787 = vmatpush1.bf16.msra.mxu0 %v1619
    %1788 = vmatprep.subr.bf16.mxu0 %v1622
    %1789 = vmatpush1.bf16.msra.mxu0 %v1621
    %1790 = vmatprep.subr.bf16.mxu0 %v1624
    %1791 = vmatpush1.bf16.msra.mxu0 %v1623
    %1792 = vmatprep.subr.bf16.mxu0 %v1626
    %1793 = vmatpush1.bf16.msra.mxu0 %v1625
    %1794 = vmatprep.subr.bf16.mxu0 %v1628
    %1795 = vmatpush1.bf16.msra.mxu0 %v1627
    %1796 = vmatprep.subr.bf16.mxu0 %v1630
    %1797 = vmatpush1.bf16.msra.mxu0 %v1629
    %1798 = vmatprep.subr.bf16.mxu0 %v1632
    %1799 = vmatpush1.bf16.msra.mxu0 %v1631
    %1800 = vmatprep.subr.bf16.mxu0 %v1634
    %1801 = vmatpush1.bf16.msra.mxu0 %v1633
    %1802 = vmatprep.subr.bf16.mxu0 %v1636
    %1803 = vmatpush1.bf16.msra.mxu0 %v1635
    %1804 = vmatprep.subr.bf16.mxu0 %v1638
    %1805 = vmatpush1.bf16.msra.mxu0 %v1637
    %1806 = vmatprep.subr.bf16.mxu0 %v1640
    %1807 = vmatpush1.bf16.msra.mxu0 %v1639
    %1808 = vmatprep.subr.bf16.mxu0 %v1642
    %1809 = vmatpush1.bf16.msra.mxu0 %v1641
    %1810 = vmatprep.subr.bf16.mxu0 %v1644
    %1811 = vmatpush1.bf16.msra.mxu0 %v1643
    %1812 = vmatprep.subr.bf16.mxu0 %v1646
    %1813 = vmatpush1.bf16.msra.mxu0 %v1645
    %1814 = vmatprep.mubr.bf16.mxu0 %v149
    %1815 = vmatmul.mubr.bf16.gmra.mrb[0].mxu0 %v148
    %v1816 = vpop.f32.mrb[0].mxu0
    %v1817 = vadd.f32 %v1774, %v1816
    %v1818 = vpop.f32.mrb[0].mxu0
    %v1819 = vadd.f32 %v1776, %v1818
    %v1820 = vpop.f32.mrb[0].mxu0
    %v1821 = vadd.f32 %v1778, %v1820
    %v1822 = vpop.f32.mrb[0].mxu0
    %v1823 = vadd.f32 %v1780, %v1822
    %1824 = vdwg.mxu0
    %1825 = vmatprep.subr.bf16.mxu0 %v1648
    %1826 = vmatpush1.bf16.msra.mxu0 %v1647
    %1827 = vmatprep.subr.bf16.mxu0 %v1650
    %1828 = vmatpush1.bf16.msra.mxu0 %v1649
    %1829 = vmatprep.subr.bf16.mxu0 %v1652
    %1830 = vmatpush1.bf16.msra.mxu0 %v1651
    %1831 = vmatprep.subr.bf16.mxu0 %v1654
    %1832 = vmatpush1.bf16.msra.mxu0 %v1653
    %1833 = vmatprep.subr.bf16.mxu0 %v1656
    %1834 = vmatpush1.bf16.msra.mxu0 %v1655
    %1835 = vmatprep.subr.bf16.mxu0 %v1737
    %1836 = vmatpush1.bf16.msra.mxu0 %v1734
    %1837 = vmatprep.subr.bf16.mxu0 0
    %1838 = vmatpush1.bf16.msra.mxu0 0
    %1839 = vmatprep.subr.bf16.mxu0 0
    %1840 = vmatpush1.bf16.msra.mxu0 0
    %1841 = vmatprep.subr.bf16.mxu0 0
    %1842 = vmatpush1.bf16.msra.mxu0 0
    %1843 = vmatprep.subr.bf16.mxu0 0
    %1844 = vmatpush1.bf16.msra.mxu0 0
    %1845 = vmatprep.subr.bf16.mxu0 0
    %1846 = vmatpush1.bf16.msra.mxu0 0
    %1847 = vmatprep.subr.bf16.mxu0 0
    %1848 = vmatpush1.bf16.msra.mxu0 0
    %1849 = vmatprep.subr.bf16.mxu0 0
    %1850 = vmatpush1.bf16.msra.mxu0 0
    %1851 = vmatprep.subr.bf16.mxu0 0
    %1852 = vmatpush1.bf16.msra.mxu0 0
    %1853 = vmatprep.subr.bf16.mxu0 0
    %1854 = vmatpush1.bf16.msra.mxu0 0
    %1855 = vmatprep.subr.bf16.mxu0 0
    %1856 = vmatpush1.bf16.msra.mxu0 0
    %1857 = vmatprep.mubr.bf16.mxu0 0
    %1858 = vmatmul.mubr.bf16.gmra.mrb[0].mxu0 %v532
    %v1859 = vpop.f32.mrb[0].mxu0
    %v1860 = vadd.f32 %v1817, %v1859
    %v1861 = vpop.f32.mrb[0].mxu0
    %v1862 = vadd.f32 %v1819, %v1861
    %v1863 = vpop.f32.mrb[0].mxu0
    %v1864 = vadd.f32 %v1821, %v1863
    %v1865 = vpop.f32.mrb[0].mxu0
    %v1866 = vadd.f32 %v1823, %v1865
    %1867 = vdwg.mxu0
    %v1868 = vld [vmem:[%s4] sm:$0x3]
    %v1870 = vlaneseq
    %v1871 = vshrl.u32 %v1870, 7
    %v1872 = vsub.s32 0, %v1871
    %v1873 = vrot.slane %v1868, %v1872
    %v1874 = vlaneseq
    %v1875 = vshrl.u32 %v1874, 7
    %v1876 = vsub.s32 1, %v1875
    %v1877 = vrot.slane %v1868, %v1876
    %v1880 = vld [vmem:[%s2] sm:$0xff]
    %v1881 = vld [vmem:[%s2 + $0x8] sm:$0xff]
    %v1882 = vld [vmem:[%s2 + $0x10] sm:$0xff]
    %v1883 = vld [vmem:[%s2 + $0x18] sm:$0xff]
    %v1884 = vld [vmem:[%s2 + $0x20] sm:$0xff]
    %v1885 = vld [vmem:[%s2 + $0x28] sm:$0xff]
    %v1886 = vld [vmem:[%s2 + $0x30] sm:$0xff]
    %v1887 = vld [vmem:[%s2 + $0x38] sm:$0xff]
    %v1888 = vld [vmem:[%s2 + $0x40] sm:$0xff]
    %v1889 = vld [vmem:[%s2 + $0x48] sm:$0xff]
    %v1890 = vld [vmem:[%s2 + $0x50] sm:$0xff]
    %v1891 = vld [vmem:[%s2 + $0x58] sm:$0xff]
    %v1892 = vld [vmem:[%s2 + $0x60] sm:$0xff]
    %v1893 = vld [vmem:[%s2 + $0x68] sm:$0xff]
    %v1894 = vld [vmem:[%s2 + $0x70] sm:$0xff]
    %v1895 = vld [vmem:[%s2 + $0x78] sm:$0xff]
    %v1896 = vld [vmem:[%s2 + $0x80] sm:$0xff]
    %v1897 = vld [vmem:[%s2 + $0x88] sm:$0xff]
    %v1898 = vld [vmem:[%s2 + $0x90] sm:$0x77]
    %v1918 = vunpack.c.l.b16 %v1880
    %v1919 = vunpack.c.h.b16 %v1880
    %v1920 = vunpack.c.l.b16 %v1881
    %v1921 = vunpack.c.h.b16 %v1881
    %v1922 = vunpack.c.l.b16 %v1882
    %v1923 = vunpack.c.h.b16 %v1882
    %v1924 = vunpack.c.l.b16 %v1883
    %v1925 = vunpack.c.h.b16 %v1883
    %v1926 = vunpack.c.l.b16 %v1884
    %v1927 = vunpack.c.h.b16 %v1884
    %v1928 = vunpack.c.l.b16 %v1885
    %v1929 = vunpack.c.h.b16 %v1885
    %v1930 = vunpack.c.l.b16 %v1886
    %v1931 = vunpack.c.h.b16 %v1886
    %v1932 = vunpack.c.l.b16 %v1887
    %v1933 = vunpack.c.h.b16 %v1887
    %v1934 = vunpack.c.l.b16 %v1888
    %v1935 = vunpack.c.h.b16 %v1888
    %v1936 = vunpack.c.l.b16 %v1889
    %v1937 = vunpack.c.h.b16 %v1889
    %v1938 = vunpack.c.l.b16 %v1890
    %v1939 = vunpack.c.h.b16 %v1890
    %v1940 = vunpack.c.l.b16 %v1891
    %v1941 = vunpack.c.h.b16 %v1891
    %v1942 = vunpack.c.l.b16 %v1892
    %v1943 = vunpack.c.h.b16 %v1892
    %v1944 = vunpack.c.l.b16 %v1893
    %v1945 = vunpack.c.h.b16 %v1893
    %v1946 = vunpack.c.l.b16 %v1894
    %v1947 = vunpack.c.h.b16 %v1894
    %v1948 = vunpack.c.l.b16 %v1895
    %v1949 = vunpack.c.h.b16 %v1895
    %v1950 = vunpack.c.l.b16 %v1896
    %v1951 = vunpack.c.h.b16 %v1896
    %v1952 = vunpack.c.l.b16 %v1897
    %v1953 = vunpack.c.h.b16 %v1897
    %v1954 = vunpack.c.l.b16 %v1898
    %v1955 = vunpack.c.h.b16 %v1898
    %v1956 = vpack.c.b16 %v1920, %v1918
    %v1957 = vpack.c.b16 %v1921, %v1919
    %v1958 = vpack.c.b16 %v1924, %v1922
    %v1959 = vpack.c.b16 %v1925, %v1923
    %v1960 = vpack.c.b16 %v1928, %v1926
    %v1961 = vpack.c.b16 %v1929, %v1927
    %v1962 = vpack.c.b16 %v1932, %v1930
    %v1963 = vpack.c.b16 %v1933, %v1931
    %v1964 = vpack.c.b16 %v1936, %v1934
    %v1965 = vpack.c.b16 %v1937, %v1935
    %v1966 = vpack.c.b16 %v1940, %v1938
    %v1967 = vpack.c.b16 %v1941, %v1939
    %v1968 = vpack.c.b16 %v1944, %v1942
    %v1969 = vpack.c.b16 %v1945, %v1943
    %v1970 = vpack.c.b16 %v1948, %v1946
    %v1971 = vpack.c.b16 %v1949, %v1947
    %v1972 = vpack.c.b16 %v1952, %v1950
    %v1973 = vpack.c.b16 %v1953, %v1951
    %v1974 = vpack.c.b16 %v1954, %v1954
    %v1975 = vpack.c.b16 %v1955, %v1955
    %vm1994 = vcmask 179200
    %v1996 = vsel %vm1994, 0, 0
    %vm1998 = vcmask 1042432
    %v2000 = vsel %vm1998, %v1974, 0
    %v2003 = vsel %vm1998, %v1975, 0
    %2005 = vmatprep.subr.bf16.mxu0 %v1957
    %2006 = vmatpush1.bf16.msra.mxu0 %v1956
    %2007 = vmatprep.subr.bf16.mxu0 %v1959
    %2008 = vmatpush1.bf16.msra.mxu0 %v1958
    %2009 = vmatprep.subr.bf16.mxu0 %v1961
    %2010 = vmatpush1.bf16.msra.mxu0 %v1960
    %2011 = vmatprep.subr.bf16.mxu0 %v1963
    %2012 = vmatpush1.bf16.msra.mxu0 %v1962
    %2013 = vmatprep.subr.bf16.mxu0 %v1965
    %2014 = vmatpush1.bf16.msra.mxu0 %v1964
    %2015 = vmatprep.subr.bf16.mxu0 %v1967
    %2016 = vmatpush1.bf16.msra.mxu0 %v1966
    %2017 = vmatprep.subr.bf16.mxu0 %v1969
    %2018 = vmatpush1.bf16.msra.mxu0 %v1968
    %2019 = vmatprep.subr.bf16.mxu0 %v1971
    %2020 = vmatpush1.bf16.msra.mxu0 %v1970
    %2021 = vmatprep.subr.bf16.mxu0 %v1973
    %2022 = vmatpush1.bf16.msra.mxu0 %v1972
    %2023 = vmatprep.subr.bf16.mxu0 %v2003
    %2024 = vmatpush1.bf16.msra.mxu0 %v2000
    %2025 = vmatprep.subr.bf16.mxu0 0
    %2026 = vmatpush1.bf16.msra.mxu0 0
    %2027 = vmatprep.subr.bf16.mxu0 0
    %2028 = vmatpush1.bf16.msra.mxu0 0
    %2029 = vmatprep.subr.bf16.mxu0 0
    %2030 = vmatpush1.bf16.msra.mxu0 0
    %2031 = vmatprep.subr.bf16.mxu0 0
    %2032 = vmatpush1.bf16.msra.mxu0 0
    %2033 = vmatprep.subr.bf16.mxu0 0
    %2034 = vmatpush1.bf16.msra.mxu0 0
    %2035 = vmatprep.subr.bf16.mxu0 0
    %2036 = vmatpush1.bf16.msra.mxu0 0
    %2037 = vmatprep.mubr.bf16.mxu0 %v1996
    %2038 = vmatmul.mubr.bf16.gmra.mrb[0].mxu0 0
    %v2039 = vpop.f32.mrb[0].mxu0
    %v2040 = vadd.f32 0.0, %v2039
    %v2041 = vpop.f32.mrb[0].mxu0
    %v2042 = vadd.f32 0.0, %v2041
    %v2043 = vpop.f32.mrb[0].mxu0
    %v2044 = vpop.f32.mrb[0].mxu0
    %2045 = vdwg.mxu0
    %v2046 = vadd.f32 %v662, %v2040
    %v2047 = vadd.f32 %v664, %v2042
    %v2048 = vxor.u32 %v2046, 2147483648
    %v2049 = vxor.u32 %v2047, 2147483648
    %v2050 = vmul.f32 %v2048, 1.442695
    %v2051 = vpow.pop %v2050
    %v2052 = vmul.f32 %v2049, 1.442695
    %v2053 = vpow.pop %v2052
    %v2054 = vadd.f32 %v2051, 1.0
    %v2055 = vadd.f32 %v2053, 1.0
    %v2056 = vrcp.pop %v2054
    %v2057 = vmul.f32 1.0, %v2056
    %v2058 = vrcp.pop %v2055
    %v2059 = vmul.f32 1.0, %v2058
    %s2060 = scalar_lea.vmem %s2, 152
    %v2061 = vld [vmem:[%s2060] sm:$0xff]
    %v2062 = vld [vmem:[%s2060 + $0x8] sm:$0xff]
    %v2063 = vld [vmem:[%s2060 + $0x10] sm:$0xff]
    %v2064 = vld [vmem:[%s2060 + $0x18] sm:$0xff]
    %v2065 = vld [vmem:[%s2060 + $0x20] sm:$0xff]
    %v2066 = vld [vmem:[%s2060 + $0x28] sm:$0xff]
    %v2067 = vld [vmem:[%s2060 + $0x30] sm:$0xff]
    %v2068 = vld [vmem:[%s2060 + $0x38] sm:$0xff]
    %v2069 = vld [vmem:[%s2060 + $0x40] sm:$0xff]
    %v2070 = vld [vmem:[%s2060 + $0x48] sm:$0xff]
    %v2071 = vld [vmem:[%s2060 + $0x50] sm:$0xff]
    %v2072 = vld [vmem:[%s2060 + $0x58] sm:$0xff]
    %v2073 = vld [vmem:[%s2060 + $0x60] sm:$0xff]
    %v2074 = vld [vmem:[%s2060 + $0x68] sm:$0xff]
    %v2075 = vld [vmem:[%s2060 + $0x70] sm:$0xff]
    %v2076 = vld [vmem:[%s2060 + $0x78] sm:$0xff]
    %v2077 = vld [vmem:[%s2060 + $0x80] sm:$0xff]
    %v2078 = vld [vmem:[%s2060 + $0x88] sm:$0xff]
    %v2079 = vld [vmem:[%s2060 + $0x90] sm:$0x77]
    %v2099 = vunpack.c.l.b16 %v2061
    %v2100 = vunpack.c.h.b16 %v2061
    %v2101 = vunpack.c.l.b16 %v2062
    %v2102 = vunpack.c.h.b16 %v2062
    %v2103 = vunpack.c.l.b16 %v2063
    %v2104 = vunpack.c.h.b16 %v2063
    %v2105 = vunpack.c.l.b16 %v2064
    %v2106 = vunpack.c.h.b16 %v2064
    %v2107 = vunpack.c.l.b16 %v2065
    %v2108 = vunpack.c.h.b16 %v2065
    %v2109 = vunpack.c.l.b16 %v2066
    %v2110 = vunpack.c.h.b16 %v2066
    %v2111 = vunpack.c.l.b16 %v2067
    %v2112 = vunpack.c.h.b16 %v2067
    %v2113 = vunpack.c.l.b16 %v2068
    %v2114 = vunpack.c.h.b16 %v2068
    %v2115 = vunpack.c.l.b16 %v2069
    %v2116 = vunpack.c.h.b16 %v2069
    %v2117 = vunpack.c.l.b16 %v2070
    %v2118 = vunpack.c.h.b16 %v2070
    %v2119 = vunpack.c.l.b16 %v2071
    %v2120 = vunpack.c.h.b16 %v2071
    %v2121 = vunpack.c.l.b16 %v2072
    %v2122 = vunpack.c.h.b16 %v2072
    %v2123 = vunpack.c.l.b16 %v2073
    %v2124 = vunpack.c.h.b16 %v2073
    %v2125 = vunpack.c.l.b16 %v2074
    %v2126 = vunpack.c.h.b16 %v2074
    %v2127 = vunpack.c.l.b16 %v2075
    %v2128 = vunpack.c.h.b16 %v2075
    %v2129 = vunpack.c.l.b16 %v2076
    %v2130 = vunpack.c.h.b16 %v2076
    %v2131 = vunpack.c.l.b16 %v2077
    %v2132 = vunpack.c.h.b16 %v2077
    %v2133 = vunpack.c.l.b16 %v2078
    %v2134 = vunpack.c.h.b16 %v2078
    %v2135 = vunpack.c.l.b16 %v2079
    %v2136 = vunpack.c.h.b16 %v2079
    %v2137 = vpack.c.b16 %v2101, %v2099
    %v2138 = vpack.c.b16 %v2102, %v2100
    %v2139 = vpack.c.b16 %v2105, %v2103
    %v2140 = vpack.c.b16 %v2106, %v2104
    %v2141 = vpack.c.b16 %v2109, %v2107
    %v2142 = vpack.c.b16 %v2110, %v2108
    %v2143 = vpack.c.b16 %v2113, %v2111
    %v2144 = vpack.c.b16 %v2114, %v2112
    %v2145 = vpack.c.b16 %v2117, %v2115
    %v2146 = vpack.c.b16 %v2118, %v2116
    %v2147 = vpack.c.b16 %v2121, %v2119
    %v2148 = vpack.c.b16 %v2122, %v2120
    %v2149 = vpack.c.b16 %v2125, %v2123
    %v2150 = vpack.c.b16 %v2126, %v2124
    %v2151 = vpack.c.b16 %v2129, %v2127
    %v2152 = vpack.c.b16 %v2130, %v2128
    %v2153 = vpack.c.b16 %v2133, %v2131
    %v2154 = vpack.c.b16 %v2134, %v2132
    %v2155 = vpack.c.b16 %v2135, %v2135
    %v2156 = vpack.c.b16 %v2136, %v2136
    %v2176 = vsel %vm1998, %v2155, 0
    %v2179 = vsel %vm1998, %v2156, 0
    %2181 = vmatprep.subr.bf16.mxu0 %v2138
    %2182 = vmatpush1.bf16.msra.mxu0 %v2137
    %2183 = vmatprep.subr.bf16.mxu0 %v2140
    %2184 = vmatpush1.bf16.msra.mxu0 %v2139
    %2185 = vmatprep.subr.bf16.mxu0 %v2142
    %2186 = vmatpush1.bf16.msra.mxu0 %v2141
    %2187 = vmatprep.subr.bf16.mxu0 %v2144
    %2188 = vmatpush1.bf16.msra.mxu0 %v2143
    %2189 = vmatprep.subr.bf16.mxu0 %v2146
    %2190 = vmatpush1.bf16.msra.mxu0 %v2145
    %2191 = vmatprep.subr.bf16.mxu0 %v2148
    %2192 = vmatpush1.bf16.msra.mxu0 %v2147
    %2193 = vmatprep.subr.bf16.mxu0 %v2150
    %2194 = vmatpush1.bf16.msra.mxu0 %v2149
    %2195 = vmatprep.subr.bf16.mxu0 %v2152
    %2196 = vmatpush1.bf16.msra.mxu0 %v2151
    %2197 = vmatprep.subr.bf16.mxu0 %v2154
    %2198 = vmatpush1.bf16.msra.mxu0 %v2153
    %2199 = vmatprep.subr.bf16.mxu0 %v2179
    %2200 = vmatpush1.bf16.msra.mxu0 %v2176
    %2201 = vmatprep.subr.bf16.mxu0 0
    %2202 = vmatpush1.bf16.msra.mxu0 0
    %2203 = vmatprep.subr.bf16.mxu0 0
    %2204 = vmatpush1.bf16.msra.mxu0 0
    %2205 = vmatprep.subr.bf16.mxu0 0
    %2206 = vmatpush1.bf16.msra.mxu0 0
    %2207 = vmatprep.subr.bf16.mxu0 0
    %2208 = vmatpush1.bf16.msra.mxu0 0
    %2209 = vmatprep.subr.bf16.mxu0 0
    %2210 = vmatpush1.bf16.msra.mxu0 0
    %2211 = vmatprep.subr.bf16.mxu0 0
    %2212 = vmatpush1.bf16.msra.mxu0 0
    %2213 = vmatprep.mubr.bf16.mxu0 %v1996
    %2214 = vmatmul.mubr.bf16.gmra.mrb[0].mxu0 0
    %v2215 = vpop.f32.mrb[0].mxu0
    %v2216 = vadd.f32 0.0, %v2215
    %v2217 = vpop.f32.mrb[0].mxu0
    %v2218 = vadd.f32 0.0, %v2217
    %v2219 = vpop.f32.mrb[0].mxu0
    %v2220 = vpop.f32.mrb[0].mxu0
    %2221 = vdwg.mxu0
    %v2222 = vadd.f32 %v1261, %v2216
    %v2223 = vadd.f32 %v1263, %v2218
    %v2224 = vxor.u32 %v2222, 2147483648
    %v2225 = vxor.u32 %v2223, 2147483648
    %v2226 = vmul.f32 %v2224, 1.442695
    %v2227 = vpow.pop %v2226
    %v2228 = vmul.f32 %v2225, 1.442695
    %v2229 = vpow.pop %v2228
    %v2230 = vadd.f32 %v2227, 1.0
    %v2231 = vadd.f32 %v2229, 1.0
    %v2232 = vrcp.pop %v2230
    %v2233 = vmul.f32 1.0, %v2232
    %v2234 = vrcp.pop %v2231
    %v2235 = vmul.f32 1.0, %v2234
    %s2236 = scalar_lea.vmem %s2, 304
    %v2237 = vld [vmem:[%s2236] sm:$0xff]
    %v2238 = vld [vmem:[%s2236 + $0x8] sm:$0xff]
    %v2239 = vld [vmem:[%s2236 + $0x10] sm:$0xff]
    %v2240 = vld [vmem:[%s2236 + $0x18] sm:$0xff]
    %v2241 = vld [vmem:[%s2236 + $0x20] sm:$0xff]
    %v2242 = vld [vmem:[%s2236 + $0x28] sm:$0xff]
    %v2243 = vld [vmem:[%s2236 + $0x30] sm:$0xff]
    %v2244 = vld [vmem:[%s2236 + $0x38] sm:$0xff]
    %v2245 = vld [vmem:[%s2236 + $0x40] sm:$0xff]
    %v2246 = vld [vmem:[%s2236 + $0x48] sm:$0xff]
    %v2247 = vld [vmem:[%s2236 + $0x50] sm:$0xff]
    %v2248 = vld [vmem:[%s2236 + $0x58] sm:$0xff]
    %v2249 = vld [vmem:[%s2236 + $0x60] sm:$0xff]
    %v2250 = vld [vmem:[%s2236 + $0x68] sm:$0xff]
    %v2251 = vld [vmem:[%s2236 + $0x70] sm:$0xff]
    %v2252 = vld [vmem:[%s2236 + $0x78] sm:$0xff]
    %v2253 = vld [vmem:[%s2236 + $0x80] sm:$0xff]
    %v2254 = vld [vmem:[%s2236 + $0x88] sm:$0xff]
    %v2255 = vld [vmem:[%s2236 + $0x90] sm:$0x77]
    %v2275 = vunpack.c.l.b16 %v2237
    %v2276 = vunpack.c.h.b16 %v2237
    %v2277 = vunpack.c.l.b16 %v2238
    %v2278 = vunpack.c.h.b16 %v2238
    %v2279 = vunpack.c.l.b16 %v2239
    %v2280 = vunpack.c.h.b16 %v2239
    %v2281 = vunpack.c.l.b16 %v2240
    %v2282 = vunpack.c.h.b16 %v2240
    %v2283 = vunpack.c.l.b16 %v2241
    %v2284 = vunpack.c.h.b16 %v2241
    %v2285 = vunpack.c.l.b16 %v2242
    %v2286 = vunpack.c.h.b16 %v2242
    %v2287 = vunpack.c.l.b16 %v2243
    %v2288 = vunpack.c.h.b16 %v2243
    %v2289 = vunpack.c.l.b16 %v2244
    %v2290 = vunpack.c.h.b16 %v2244
    %v2291 = vunpack.c.l.b16 %v2245
    %v2292 = vunpack.c.h.b16 %v2245
    %v2293 = vunpack.c.l.b16 %v2246
    %v2294 = vunpack.c.h.b16 %v2246
    %v2295 = vunpack.c.l.b16 %v2247
    %v2296 = vunpack.c.h.b16 %v2247
    %v2297 = vunpack.c.l.b16 %v2248
    %v2298 = vunpack.c.h.b16 %v2248
    %v2299 = vunpack.c.l.b16 %v2249
    %v2300 = vunpack.c.h.b16 %v2249
    %v2301 = vunpack.c.l.b16 %v2250
    %v2302 = vunpack.c.h.b16 %v2250
    %v2303 = vunpack.c.l.b16 %v2251
    %v2304 = vunpack.c.h.b16 %v2251
    %v2305 = vunpack.c.l.b16 %v2252
    %v2306 = vunpack.c.h.b16 %v2252
    %v2307 = vunpack.c.l.b16 %v2253
    %v2308 = vunpack.c.h.b16 %v2253
    %v2309 = vunpack.c.l.b16 %v2254
    %v2310 = vunpack.c.h.b16 %v2254
    %v2311 = vunpack.c.l.b16 %v2255
    %v2312 = vunpack.c.h.b16 %v2255
    %v2313 = vpack.c.b16 %v2277, %v2275
    %v2314 = vpack.c.b16 %v2278, %v2276
    %v2315 = vpack.c.b16 %v2281, %v2279
    %v2316 = vpack.c.b16 %v2282, %v2280
    %v2317 = vpack.c.b16 %v2285, %v2283
    %v2318 = vpack.c.b16 %v2286, %v2284
    %v2319 = vpack.c.b16 %v2289, %v2287
    %v2320 = vpack.c.b16 %v2290, %v2288
    %v2321 = vpack.c.b16 %v2293, %v2291
    %v2322 = vpack.c.b16 %v2294, %v2292
    %v2323 = vpack.c.b16 %v2297, %v2295
    %v2324 = vpack.c.b16 %v2298, %v2296
    %v2325 = vpack.c.b16 %v2301, %v2299
    %v2326 = vpack.c.b16 %v2302, %v2300
    %v2327 = vpack.c.b16 %v2305, %v2303
    %v2328 = vpack.c.b16 %v2306, %v2304
    %v2329 = vpack.c.b16 %v2309, %v2307
    %v2330 = vpack.c.b16 %v2310, %v2308
    %v2331 = vpack.c.b16 %v2311, %v2311
    %v2332 = vpack.c.b16 %v2312, %v2312
    %v2352 = vsel %vm1998, %v2331, 0
    %v2355 = vsel %vm1998, %v2332, 0
    %2357 = vmatprep.subr.bf16.mxu0 %v2314
    %2358 = vmatpush1.bf16.msra.mxu0 %v2313
    %2359 = vmatprep.subr.bf16.mxu0 %v2316
    %2360 = vmatpush1.bf16.msra.mxu0 %v2315
    %2361 = vmatprep.subr.bf16.mxu0 %v2318
    %2362 = vmatpush1.bf16.msra.mxu0 %v2317
    %2363 = vmatprep.subr.bf16.mxu0 %v2320
    %2364 = vmatpush1.bf16.msra.mxu0 %v2319
    %2365 = vmatprep.subr.bf16.mxu0 %v2322
    %2366 = vmatpush1.bf16.msra.mxu0 %v2321
    %2367 = vmatprep.subr.bf16.mxu0 %v2324
    %2368 = vmatpush1.bf16.msra.mxu0 %v2323
    %2369 = vmatprep.subr.bf16.mxu0 %v2326
    %2370 = vmatpush1.bf16.msra.mxu0 %v2325
    %2371 = vmatprep.subr.bf16.mxu0 %v2328
    %2372 = vmatpush1.bf16.msra.mxu0 %v2327
    %2373 = vmatprep.subr.bf16.mxu0 %v2330
    %2374 = vmatpush1.bf16.msra.mxu0 %v2329
    %2375 = vmatprep.subr.bf16.mxu0 %v2355
    %2376 = vmatpush1.bf16.msra.mxu0 %v2352
    %2377 = vmatprep.subr.bf16.mxu0 0
    %2378 = vmatpush1.bf16.msra.mxu0 0
    %2379 = vmatprep.subr.bf16.mxu0 0
    %2380 = vmatpush1.bf16.msra.mxu0 0
    %2381 = vmatprep.subr.bf16.mxu0 0
    %2382 = vmatpush1.bf16.msra.mxu0 0
    %2383 = vmatprep.subr.bf16.mxu0 0
    %2384 = vmatpush1.bf16.msra.mxu0 0
    %2385 = vmatprep.subr.bf16.mxu0 0
    %2386 = vmatpush1.bf16.msra.mxu0 0
    %2387 = vmatprep.subr.bf16.mxu0 0
    %2388 = vmatpush1.bf16.msra.mxu0 0
    %2389 = vmatprep.mubr.bf16.mxu0 %v1996
    %2390 = vmatmul.mubr.bf16.gmra.mrb[0].mxu0 0
    %v2391 = vpop.f32.mrb[0].mxu0
    %v2392 = vadd.f32 %v1873, %v2391
    %v2393 = vpop.f32.mrb[0].mxu0
    %v2394 = vadd.f32 %v1877, %v2393
    %v2395 = vpop.f32.mrb[0].mxu0
    %v2396 = vpop.f32.mrb[0].mxu0
    %2397 = vdwg.mxu0
    %v2398 = vmul.f32 %v2057, %v2392
    %v2399 = vmul.f32 %v2059, %v2394
    %v2400 = vadd.f32 %v1860, %v2398
    %v2401 = vadd.f32 %v1862, %v2399
    %v2402 = vtanh.pop %v2400
    %v2403 = vtanh.pop %v2401
    %v2404 = vsub.f32 1.0, %v2233
    %v2405 = vsub.f32 1.0, %v2235
    %v2406 = vmul.f32 %v2404, %v2402
    %v2407 = vmul.f32 %v2405, %v2403
    %v2408 = vmul.f32 %v2233, 0.0
    %v2409 = vmul.f32 %v2235, 0.0
    %v2410 = vadd.f32 %v2406, %v2408
    %v2411 = vadd.f32 %v2407, %v2409
    %v2412 = vpack.c.bf16 %v2410, %v2410
    %v2413 = vpack.c.bf16 %v2411, %v2411
    %v2415 = vsel %vm1994, %v2413, 0
    %2417 = vmatprep.subr.bf16.mxu0 %v1957
    %2418 = vmatpush1.bf16.msra.mxu0 %v1956
    %2419 = vmatprep.subr.bf16.mxu0 %v1959
    %2420 = vmatpush1.bf16.msra.mxu0 %v1958
    %2421 = vmatprep.subr.bf16.mxu0 %v1961
    %2422 = vmatpush1.bf16.msra.mxu0 %v1960
    %2423 = vmatprep.subr.bf16.mxu0 %v1963
    %2424 = vmatpush1.bf16.msra.mxu0 %v1962
    %2425 = vmatprep.subr.bf16.mxu0 %v1965
    %2426 = vmatpush1.bf16.msra.mxu0 %v1964
    %2427 = vmatprep.subr.bf16.mxu0 %v1967
    %2428 = vmatpush1.bf16.msra.mxu0 %v1966
    %2429 = vmatprep.subr.bf16.mxu0 %v1969
    %2430 = vmatpush1.bf16.msra.mxu0 %v1968
    %2431 = vmatprep.subr.bf16.mxu0 %v1971
    %2432 = vmatpush1.bf16.msra.mxu0 %v1970
    %2433 = vmatprep.subr.bf16.mxu0 %v1973
    %2434 = vmatpush1.bf16.msra.mxu0 %v1972
    %2435 = vmatprep.subr.bf16.mxu0 %v2003
    %2436 = vmatpush1.bf16.msra.mxu0 %v2000
    %2437 = vmatprep.subr.bf16.mxu0 0
    %2438 = vmatpush1.bf16.msra.mxu0 0
    %2439 = vmatprep.subr.bf16.mxu0 0
    %2440 = vmatpush1.bf16.msra.mxu0 0
    %2441 = vmatprep.subr.bf16.mxu0 0
    %2442 = vmatpush1.bf16.msra.mxu0 0
    %2443 = vmatprep.subr.bf16.mxu0 0
    %2444 = vmatpush1.bf16.msra.mxu0 0
    %2445 = vmatprep.subr.bf16.mxu0 0
    %2446 = vmatpush1.bf16.msra.mxu0 0
    %2447 = vmatprep.subr.bf16.mxu0 0
    %2448 = vmatpush1.bf16.msra.mxu0 0
    %2449 = vmatprep.mubr.bf16.mxu0 %v2415
    %2450 = vmatmul.mubr.bf16.gmra.mrb[0].mxu0 %v2412
    %v2451 = vpop.f32.mrb[0].mxu0
    %v2452 = vadd.f32 0.0, %v2451
    %v2453 = vpop.f32.mrb[0].mxu0
    %v2454 = vadd.f32 0.0, %v2453
    %v2455 = vpop.f32.mrb[0].mxu0
    %v2456 = vpop.f32.mrb[0].mxu0
    %2457 = vdwg.mxu0
    %v2460 = vrot.slane %v2452, 6
    %v2461 = vrot.slane %v2454, 6
    %v2464 = vadd.f32 %v662, %v2460
    %v2465 = vadd.f32 %v664, %v2461
    %v2466 = vxor.u32 %v2464, 2147483648
    %v2467 = vxor.u32 %v2465, 2147483648
    %v2468 = vmul.f32 %v2466, 1.442695
    %v2469 = vpow.pop %v2468
    %v2470 = vmul.f32 %v2467, 1.442695
    %v2471 = vpow.pop %v2470
    %v2472 = vadd.f32 %v2469, 1.0
    %v2473 = vadd.f32 %v2471, 1.0
    %v2474 = vrcp.pop %v2472
    %v2475 = vmul.f32 1.0, %v2474
    %v2476 = vrcp.pop %v2473
    %v2477 = vmul.f32 1.0, %v2476
    %2478 = vmatprep.subr.bf16.mxu0 %v2138
    %2479 = vmatpush1.bf16.msra.mxu0 %v2137
    %2480 = vmatprep.subr.bf16.mxu0 %v2140
    %2481 = vmatpush1.bf16.msra.mxu0 %v2139
    %2482 = vmatprep.subr.bf16.mxu0 %v2142
    %2483 = vmatpush1.bf16.msra.mxu0 %v2141
    %2484 = vmatprep.subr.bf16.mxu0 %v2144
    %2485 = vmatpush1.bf16.msra.mxu0 %v2143
    %2486 = vmatprep.subr.bf16.mxu0 %v2146
    %2487 = vmatpush1.bf16.msra.mxu0 %v2145
    %2488 = vmatprep.subr.bf16.mxu0 %v2148
    %2489 = vmatpush1.bf16.msra.mxu0 %v2147
    %2490 = vmatprep.subr.bf16.mxu0 %v2150
    %2491 = vmatpush1.bf16.msra.mxu0 %v2149
    %2492 = vmatprep.subr.bf16.mxu0 %v2152
    %2493 = vmatpush1.bf16.msra.mxu0 %v2151
    %2494 = vmatprep.subr.bf16.mxu0 %v2154
    %2495 = vmatpush1.bf16.msra.mxu0 %v2153
    %2496 = vmatprep.subr.bf16.mxu0 %v2179
    %2497 = vmatpush1.bf16.msra.mxu0 %v2176
    %2498 = vmatprep.subr.bf16.mxu0 0
    %2499 = vmatpush1.bf16.msra.mxu0 0
    %2500 = vmatprep.subr.bf16.mxu0 0
    %2501 = vmatpush1.bf16.msra.mxu0 0
    %2502 = vmatprep.subr.bf16.mxu0 0
    %2503 = vmatpush1.bf16.msra.mxu0 0
    %2504 = vmatprep.subr.bf16.mxu0 0
    %2505 = vmatpush1.bf16.msra.mxu0 0
    %2506 = vmatprep.subr.bf16.mxu0 0
    %2507 = vmatpush1.bf16.msra.mxu0 0
    %2508 = vmatprep.subr.bf16.mxu0 0
    %2509 = vmatpush1.bf16.msra.mxu0 0
    %2510 = vmatprep.mubr.bf16.mxu0 %v2415
    %2511 = vmatmul.mubr.bf16.gmra.mrb[0].mxu0 %v2412
    %v2512 = vpop.f32.mrb[0].mxu0
    %v2513 = vadd.f32 0.0, %v2512
    %v2514 = vpop.f32.mrb[0].mxu0
    %v2515 = vadd.f32 0.0, %v2514
    %v2516 = vpop.f32.mrb[0].mxu0
    %v2517 = vpop.f32.mrb[0].mxu0
    %2518 = vdwg.mxu0
    %v2521 = vrot.slane %v2513, 6
    %v2522 = vrot.slane %v2515, 6
    %v2525 = vadd.f32 %v1261, %v2521
    %v2526 = vadd.f32 %v1263, %v2522
    %v2527 = vxor.u32 %v2525, 2147483648
    %v2528 = vxor.u32 %v2526, 2147483648
    %v2529 = vmul.f32 %v2527, 1.442695
    %v2530 = vpow.pop %v2529
    %v2531 = vmul.f32 %v2528, 1.442695
    %v2532 = vpow.pop %v2531
    %v2533 = vadd.f32 %v2530, 1.0
    %v2534 = vadd.f32 %v2532, 1.0
    %v2535 = vrcp.pop %v2533
    %v2536 = vmul.f32 1.0, %v2535
    %v2537 = vrcp.pop %v2534
    %v2538 = vmul.f32 1.0, %v2537
    %2539 = vmatprep.subr.bf16.mxu0 %v2314
    %2540 = vmatpush1.bf16.msra.mxu0 %v2313
    %2541 = vmatprep.subr.bf16.mxu0 %v2316
    %2542 = vmatpush1.bf16.msra.mxu0 %v2315
    %2543 = vmatprep.subr.bf16.mxu0 %v2318
    %2544 = vmatpush1.bf16.msra.mxu0 %v2317
    %2545 = vmatprep.subr.bf16.mxu0 %v2320
    %2546 = vmatpush1.bf16.msra.mxu0 %v2319
    %2547 = vmatprep.subr.bf16.mxu0 %v2322
    %2548 = vmatpush1.bf16.msra.mxu0 %v2321
    %2549 = vmatprep.subr.bf16.mxu0 %v2324
    %2550 = vmatpush1.bf16.msra.mxu0 %v2323
    %2551 = vmatprep.subr.bf16.mxu0 %v2326
    %2552 = vmatpush1.bf16.msra.mxu0 %v2325
    %2553 = vmatprep.subr.bf16.mxu0 %v2328
    %2554 = vmatpush1.bf16.msra.mxu0 %v2327
    %2555 = vmatprep.subr.bf16.mxu0 %v2330
    %2556 = vmatpush1.bf16.msra.mxu0 %v2329
    %2557 = vmatprep.subr.bf16.mxu0 %v2355
    %2558 = vmatpush1.bf16.msra.mxu0 %v2352
    %2559 = vmatprep.subr.bf16.mxu0 0
    %2560 = vmatpush1.bf16.msra.mxu0 0
    %2561 = vmatprep.subr.bf16.mxu0 0
    %2562 = vmatpush1.bf16.msra.mxu0 0
    %2563 = vmatprep.subr.bf16.mxu0 0
    %2564 = vmatpush1.bf16.msra.mxu0 0
    %2565 = vmatprep.subr.bf16.mxu0 0
    %2566 = vmatpush1.bf16.msra.mxu0 0
    %2567 = vmatprep.subr.bf16.mxu0 0
    %2568 = vmatpush1.bf16.msra.mxu0 0
    %2569 = vmatprep.subr.bf16.mxu0 0
    %2570 = vmatpush1.bf16.msra.mxu0 0
    %2571 = vmatprep.mubr.bf16.mxu0 %v2415
    %2572 = vmatmul.mubr.bf16.gmra.mrb[0].mxu0 %v2412
    %v2573 = vpop.f32.mrb[0].mxu0
    %v2574 = vadd.f32 %v1873, %v2573
    %v2575 = vpop.f32.mrb[0].mxu0
    %v2576 = vadd.f32 %v1877, %v2575
    %v2577 = vpop.f32.mrb[0].mxu0
    %v2578 = vpop.f32.mrb[0].mxu0
    %2579 = vdwg.mxu0
    %v2582 = vrot.slane %v2574, 6
    %v2583 = vrot.slane %v2576, 6
    %v2586 = vmul.f32 %v2475, %v2582
    %v2587 = vmul.f32 %v2477, %v2583
    %v2588 = vadd.f32 %v1860, %v2586
    %v2589 = vadd.f32 %v1862, %v2587
    %v2590 = vtanh.pop %v2588
    %v2591 = vtanh.pop %v2589
    %v2592 = vsub.f32 1.0, %v2536
    %v2593 = vsub.f32 1.0, %v2538
    %v2594 = vmul.f32 %v2592, %v2590
    %v2595 = vmul.f32 %v2593, %v2591
    %v2598 = vrot.slane %v2410, 6
    %v2599 = vrot.slane %v2411, 6
    %v2602 = vmul.f32 %v2536, %v2598
    %v2603 = vmul.f32 %v2538, %v2599
    %v2604 = vadd.f32 %v2594, %v2602
    %v2605 = vadd.f32 %v2595, %v2603
    %v2606 = vpack.c.bf16 %v2604, %v2604
    %v2607 = vpack.c.bf16 %v2605, %v2605
    %v2610 = vrot.slane %v2606, 1
    %v2611 = vrot.slane %v2607, 1
    %v2614 = vsel %vm1994, %v2611, 0
    %2616 = vmatprep.subr.bf16.mxu0 %v1957
    %2617 = vmatpush1.bf16.msra.mxu0 %v1956
    %2618 = vmatprep.subr.bf16.mxu0 %v1959
    %2619 = vmatpush1.bf16.msra.mxu0 %v1958
    %2620 = vmatprep.subr.bf16.mxu0 %v1961
    %2621 = vmatpush1.bf16.msra.mxu0 %v1960
    %2622 = vmatprep.subr.bf16.mxu0 %v1963
    %2623 = vmatpush1.bf16.msra.mxu0 %v1962
    %2624 = vmatprep.subr.bf16.mxu0 %v1965
    %2625 = vmatpush1.bf16.msra.mxu0 %v1964
    %2626 = vmatprep.subr.bf16.mxu0 %v1967
    %2627 = vmatpush1.bf16.msra.mxu0 %v1966
    %2628 = vmatprep.subr.bf16.mxu0 %v1969
    %2629 = vmatpush1.bf16.msra.mxu0 %v1968
    %2630 = vmatprep.subr.bf16.mxu0 %v1971
    %2631 = vmatpush1.bf16.msra.mxu0 %v1970
    %2632 = vmatprep.subr.bf16.mxu0 %v1973
    %2633 = vmatpush1.bf16.msra.mxu0 %v1972
    %2634 = vmatprep.subr.bf16.mxu0 %v2003
    %2635 = vmatpush1.bf16.msra.mxu0 %v2000
    %2636 = vmatprep.subr.bf16.mxu0 0
    %2637 = vmatpush1.bf16.msra.mxu0 0
    %2638 = vmatprep.subr.bf16.mxu0 0
    %2639 = vmatpush1.bf16.msra.mxu0 0
    %2640 = vmatprep.subr.bf16.mxu0 0
    %2641 = vmatpush1.bf16.msra.mxu0 0
    %2642 = vmatprep.subr.bf16.mxu0 0
    %2643 = vmatpush1.bf16.msra.mxu0 0
    %2644 = vmatprep.subr.bf16.mxu0 0
    %2645 = vmatpush1.bf16.msra.mxu0 0
    %2646 = vmatprep.subr.bf16.mxu0 0
    %2647 = vmatpush1.bf16.msra.mxu0 0
    %2648 = vmatprep.mubr.bf16.mxu0 %v2614
    %2649 = vmatmul.mubr.bf16.gmra.mrb[0].mxu0 %v2610
    %v2650 = vpop.f32.mrb[0].mxu0
    %v2651 = vadd.f32 0.0, %v2650
    %v2652 = vpop.f32.mrb[0].mxu0
    %v2653 = vadd.f32 0.0, %v2652
    %v2654 = vpop.f32.mrb[0].mxu0
    %v2655 = vpop.f32.mrb[0].mxu0
    %2656 = vdwg.mxu0
    %v2659 = vrot.slane %v2651, 4
    %v2660 = vrot.slane %v2653, 4
    %v2663 = vadd.f32 %v662, %v2659
    %v2664 = vadd.f32 %v664, %v2660
    %v2665 = vxor.u32 %v2663, 2147483648
    %v2666 = vxor.u32 %v2664, 2147483648
    %v2667 = vmul.f32 %v2665, 1.442695
    %v2668 = vpow.pop %v2667
    %v2669 = vmul.f32 %v2666, 1.442695
    %v2670 = vpow.pop %v2669
    %v2671 = vadd.f32 %v2668, 1.0
    %v2672 = vadd.f32 %v2670, 1.0
    %v2673 = vrcp.pop %v2671
    %v2674 = vmul.f32 1.0, %v2673
    %v2675 = vrcp.pop %v2672
    %v2676 = vmul.f32 1.0, %v2675
    %2677 = vmatprep.subr.bf16.mxu0 %v2138
    %2678 = vmatpush1.bf16.msra.mxu0 %v2137
    %2679 = vmatprep.subr.bf16.mxu0 %v2140
    %2680 = vmatpush1.bf16.msra.mxu0 %v2139
    %2681 = vmatprep.subr.bf16.mxu0 %v2142
    %2682 = vmatpush1.bf16.msra.mxu0 %v2141
    %2683 = vmatprep.subr.bf16.mxu0 %v2144
    %2684 = vmatpush1.bf16.msra.mxu0 %v2143
    %2685 = vmatprep.subr.bf16.mxu0 %v2146
    %2686 = vmatpush1.bf16.msra.mxu0 %v2145
    %2687 = vmatprep.subr.bf16.mxu0 %v2148
    %2688 = vmatpush1.bf16.msra.mxu0 %v2147
    %2689 = vmatprep.subr.bf16.mxu0 %v2150
    %2690 = vmatpush1.bf16.msra.mxu0 %v2149
    %2691 = vmatprep.subr.bf16.mxu0 %v2152
    %2692 = vmatpush1.bf16.msra.mxu0 %v2151
    %2693 = vmatprep.subr.bf16.mxu0 %v2154
    %2694 = vmatpush1.bf16.msra.mxu0 %v2153
    %2695 = vmatprep.subr.bf16.mxu0 %v2179
    %2696 = vmatpush1.bf16.msra.mxu0 %v2176
    %2697 = vmatprep.subr.bf16.mxu0 0
    %2698 = vmatpush1.bf16.msra.mxu0 0
    %2699 = vmatprep.subr.bf16.mxu0 0
    %2700 = vmatpush1.bf16.msra.mxu0 0
    %2701 = vmatprep.subr.bf16.mxu0 0
    %2702 = vmatpush1.bf16.msra.mxu0 0
    %2703 = vmatprep.subr.bf16.mxu0 0
    %2704 = vmatpush1.bf16.msra.mxu0 0
    %2705 = vmatprep.subr.bf16.mxu0 0
    %2706 = vmatpush1.bf16.msra.mxu0 0
    %2707 = vmatprep.subr.bf16.mxu0 0
    %2708 = vmatpush1.bf16.msra.mxu0 0
    %2709 = vmatprep.mubr.bf16.mxu0 %v2614
    %2710 = vmatmul.mubr.bf16.gmra.mrb[0].mxu0 %v2610
    %v2711 = vpop.f32.mrb[0].mxu0
    %v2712 = vadd.f32 0.0, %v2711
    %v2713 = vpop.f32.mrb[0].mxu0
    %v2714 = vadd.f32 0.0, %v2713
    %v2715 = vpop.f32.mrb[0].mxu0
    %v2716 = vpop.f32.mrb[0].mxu0
    %2717 = vdwg.mxu0
    %v2720 = vrot.slane %v2712, 4
    %v2721 = vrot.slane %v2714, 4
    %v2724 = vadd.f32 %v1261, %v2720
    %v2725 = vadd.f32 %v1263, %v2721
    %v2726 = vxor.u32 %v2724, 2147483648
    %v2727 = vxor.u32 %v2725, 2147483648
    %v2728 = vmul.f32 %v2726, 1.442695
    %v2729 = vpow.pop %v2728
    %v2730 = vmul.f32 %v2727, 1.442695
    %v2731 = vpow.pop %v2730
    %v2732 = vadd.f32 %v2729, 1.0
    %v2733 = vadd.f32 %v2731, 1.0
    %v2734 = vrcp.pop %v2732
    %v2735 = vmul.f32 1.0, %v2734
    %v2736 = vrcp.pop %v2733
    %v2737 = vmul.f32 1.0, %v2736
    %2738 = vmatprep.subr.bf16.mxu0 %v2314
    %2739 = vmatpush1.bf16.msra.mxu0 %v2313
    %2740 = vmatprep.subr.bf16.mxu0 %v2316
    %2741 = vmatpush1.bf16.msra.mxu0 %v2315
    %2742 = vmatprep.subr.bf16.mxu0 %v2318
    %2743 = vmatpush1.bf16.msra.mxu0 %v2317
    %2744 = vmatprep.subr.bf16.mxu0 %v2320
    %2745 = vmatpush1.bf16.msra.mxu0 %v2319
    %2746 = vmatprep.subr.bf16.mxu0 %v2322
    %2747 = vmatpush1.bf16.msra.mxu0 %v2321
    %2748 = vmatprep.subr.bf16.mxu0 %v2324
    %2749 = vmatpush1.bf16.msra.mxu0 %v2323
    %2750 = vmatprep.subr.bf16.mxu0 %v2326
    %2751 = vmatpush1.bf16.msra.mxu0 %v2325
    %2752 = vmatprep.subr.bf16.mxu0 %v2328
    %2753 = vmatpush1.bf16.msra.mxu0 %v2327
    %2754 = vmatprep.subr.bf16.mxu0 %v2330
    %2755 = vmatpush1.bf16.msra.mxu0 %v2329
    %2756 = vmatprep.subr.bf16.mxu0 %v2355
    %2757 = vmatpush1.bf16.msra.mxu0 %v2352
    %2758 = vmatprep.subr.bf16.mxu0 0
    %2759 = vmatpush1.bf16.msra.mxu0 0
    %2760 = vmatprep.subr.bf16.mxu0 0
    %2761 = vmatpush1.bf16.msra.mxu0 0
    %2762 = vmatprep.subr.bf16.mxu0 0
    %2763 = vmatpush1.bf16.msra.mxu0 0
    %2764 = vmatprep.subr.bf16.mxu0 0
    %2765 = vmatpush1.bf16.msra.mxu0 0
    %2766 = vmatprep.subr.bf16.mxu0 0
    %2767 = vmatpush1.bf16.msra.mxu0 0
    %2768 = vmatprep.subr.bf16.mxu0 0
    %2769 = vmatpush1.bf16.msra.mxu0 0
    %2770 = vmatprep.mubr.bf16.mxu0 %v2614
    %2771 = vmatmul.mubr.bf16.gmra.mrb[0].mxu0 %v2610
    %v2772 = vpop.f32.mrb[0].mxu0
    %v2773 = vadd.f32 %v1873, %v2772
    %v2774 = vpop.f32.mrb[0].mxu0
    %v2775 = vadd.f32 %v1877, %v2774
    %v2776 = vpop.f32.mrb[0].mxu0
    %v2777 = vpop.f32.mrb[0].mxu0
    %2778 = vdwg.mxu0
    %v2781 = vrot.slane %v2773, 4
    %v2782 = vrot.slane %v2775, 4
    %v2785 = vmul.f32 %v2674, %v2781
    %v2786 = vmul.f32 %v2676, %v2782
    %v2787 = vadd.f32 %v1860, %v2785
    %v2788 = vadd.f32 %v1862, %v2786
    %v2789 = vtanh.pop %v2787
    %v2790 = vtanh.pop %v2788
    %v2791 = vsub.f32 1.0, %v2735
    %v2792 = vsub.f32 1.0, %v2737
    %v2793 = vmul.f32 %v2791, %v2789
    %v2794 = vmul.f32 %v2792, %v2790
    %v2797 = vrot.slane %v2604, 6
    %v2798 = vrot.slane %v2605, 6
    %v2801 = vmul.f32 %v2735, %v2797
    %v2802 = vmul.f32 %v2737, %v2798
    %v2803 = vadd.f32 %v2793, %v2801
    %v2804 = vadd.f32 %v2794, %v2802
    %v2805 = vpack.c.bf16 %v2803, %v2803
    %v2806 = vpack.c.bf16 %v2804, %v2804
    %v2809 = vrot.slane %v2805, 2
    %v2810 = vrot.slane %v2806, 2
    %v2813 = vsel %vm1994, %v2810, 0
    %2815 = vmatprep.subr.bf16.mxu0 %v1957
    %2816 = vmatpush1.bf16.msra.mxu0 %v1956
    %2817 = vmatprep.subr.bf16.mxu0 %v1959
    %2818 = vmatpush1.bf16.msra.mxu0 %v1958
    %2819 = vmatprep.subr.bf16.mxu0 %v1961
    %2820 = vmatpush1.bf16.msra.mxu0 %v1960
    %2821 = vmatprep.subr.bf16.mxu0 %v1963
    %2822 = vmatpush1.bf16.msra.mxu0 %v1962
    %2823 = vmatprep.subr.bf16.mxu0 %v1965
    %2824 = vmatpush1.bf16.msra.mxu0 %v1964
    %2825 = vmatprep.subr.bf16.mxu0 %v1967
    %2826 = vmatpush1.bf16.msra.mxu0 %v1966
    %2827 = vmatprep.subr.bf16.mxu0 %v1969
    %2828 = vmatpush1.bf16.msra.mxu0 %v1968
    %2829 = vmatprep.subr.bf16.mxu0 %v1971
    %2830 = vmatpush1.bf16.msra.mxu0 %v1970
    %2831 = vmatprep.subr.bf16.mxu0 %v1973
    %2832 = vmatpush1.bf16.msra.mxu0 %v1972
    %2833 = vmatprep.subr.bf16.mxu0 %v2003
    %2834 = vmatpush1.bf16.msra.mxu0 %v2000
    %2835 = vmatprep.subr.bf16.mxu0 0
    %2836 = vmatpush1.bf16.msra.mxu0 0
    %2837 = vmatprep.subr.bf16.mxu0 0
    %2838 = vmatpush1.bf16.msra.mxu0 0
    %2839 = vmatprep.subr.bf16.mxu0 0
    %2840 = vmatpush1.bf16.msra.mxu0 0
    %2841 = vmatprep.subr.bf16.mxu0 0
    %2842 = vmatpush1.bf16.msra.mxu0 0
    %2843 = vmatprep.subr.bf16.mxu0 0
    %2844 = vmatpush1.bf16.msra.mxu0 0
    %2845 = vmatprep.subr.bf16.mxu0 0
    %2846 = vmatpush1.bf16.msra.mxu0 0
    %2847 = vmatprep.mubr.bf16.mxu0 %v2813
    %2848 = vmatmul.mubr.bf16.gmra.mrb[0].mxu0 %v2809
    %v2849 = vpop.f32.mrb[0].mxu0
    %v2850 = vadd.f32 0.0, %v2849
    %v2851 = vpop.f32.mrb[0].mxu0
    %v2852 = vadd.f32 0.0, %v2851
    %v2853 = vpop.f32.mrb[0].mxu0
    %v2854 = vpop.f32.mrb[0].mxu0
    %2855 = vdwg.mxu0
    %v2858 = vrot.slane %v2850, 2
    %v2859 = vrot.slane %v2852, 2
    %v2862 = vadd.f32 %v662, %v2858
    %v2863 = vadd.f32 %v664, %v2859
    %v2864 = vxor.u32 %v2862, 2147483648
    %v2865 = vxor.u32 %v2863, 2147483648
    %v2866 = vmul.f32 %v2864, 1.442695
    %v2867 = vpow.pop %v2866
    %v2868 = vmul.f32 %v2865, 1.442695
    %v2869 = vpow.pop %v2868
    %v2870 = vadd.f32 %v2867, 1.0
    %v2871 = vadd.f32 %v2869, 1.0
    %v2872 = vrcp.pop %v2870
    %v2873 = vmul.f32 1.0, %v2872
    %v2874 = vrcp.pop %v2871
    %v2875 = vmul.f32 1.0, %v2874
    %2876 = vmatprep.subr.bf16.mxu0 %v2138
    %2877 = vmatpush1.bf16.msra.mxu0 %v2137
    %2878 = vmatprep.subr.bf16.mxu0 %v2140
    %2879 = vmatpush1.bf16.msra.mxu0 %v2139
    %2880 = vmatprep.subr.bf16.mxu0 %v2142
    %2881 = vmatpush1.bf16.msra.mxu0 %v2141
    %2882 = vmatprep.subr.bf16.mxu0 %v2144
    %2883 = vmatpush1.bf16.msra.mxu0 %v2143
    %2884 = vmatprep.subr.bf16.mxu0 %v2146
    %2885 = vmatpush1.bf16.msra.mxu0 %v2145
    %2886 = vmatprep.subr.bf16.mxu0 %v2148
    %2887 = vmatpush1.bf16.msra.mxu0 %v2147
    %2888 = vmatprep.subr.bf16.mxu0 %v2150
    %2889 = vmatpush1.bf16.msra.mxu0 %v2149
    %2890 = vmatprep.subr.bf16.mxu0 %v2152
    %2891 = vmatpush1.bf16.msra.mxu0 %v2151
    %2892 = vmatprep.subr.bf16.mxu0 %v2154
    %2893 = vmatpush1.bf16.msra.mxu0 %v2153
    %2894 = vmatprep.subr.bf16.mxu0 %v2179
    %2895 = vmatpush1.bf16.msra.mxu0 %v2176
    %2896 = vmatprep.subr.bf16.mxu0 0
    %2897 = vmatpush1.bf16.msra.mxu0 0
    %2898 = vmatprep.subr.bf16.mxu0 0
    %2899 = vmatpush1.bf16.msra.mxu0 0
    %2900 = vmatprep.subr.bf16.mxu0 0
    %2901 = vmatpush1.bf16.msra.mxu0 0
    %2902 = vmatprep.subr.bf16.mxu0 0
    %2903 = vmatpush1.bf16.msra.mxu0 0
    %2904 = vmatprep.subr.bf16.mxu0 0
    %2905 = vmatpush1.bf16.msra.mxu0 0
    %2906 = vmatprep.subr.bf16.mxu0 0
    %2907 = vmatpush1.bf16.msra.mxu0 0
    %2908 = vmatprep.mubr.bf16.mxu0 %v2813
    %2909 = vmatmul.mubr.bf16.gmra.mrb[0].mxu0 %v2809
    %v2910 = vpop.f32.mrb[0].mxu0
    %v2911 = vadd.f32 0.0, %v2910
    %v2912 = vpop.f32.mrb[0].mxu0
    %v2913 = vadd.f32 0.0, %v2912
    %v2914 = vpop.f32.mrb[0].mxu0
    %v2915 = vpop.f32.mrb[0].mxu0
    %2916 = vdwg.mxu0
    %v2919 = vrot.slane %v2911, 2
    %v2920 = vrot.slane %v2913, 2
    %v2923 = vadd.f32 %v1261, %v2919
    %v2924 = vadd.f32 %v1263, %v2920
    %v2925 = vxor.u32 %v2923, 2147483648
    %v2926 = vxor.u32 %v2924, 2147483648
    %v2927 = vmul.f32 %v2925, 1.442695
    %v2928 = vpow.pop %v2927
    %v2929 = vmul.f32 %v2926, 1.442695
    %v2930 = vpow.pop %v2929
    %v2931 = vadd.f32 %v2928, 1.0
    %v2932 = vadd.f32 %v2930, 1.0
    %v2933 = vrcp.pop %v2931
    %v2934 = vmul.f32 1.0, %v2933
    %v2935 = vrcp.pop %v2932
    %v2936 = vmul.f32 1.0, %v2935
    %2937 = vmatprep.subr.bf16.mxu0 %v2314
    %2938 = vmatpush1.bf16.msra.mxu0 %v2313
    %2939 = vmatprep.subr.bf16.mxu0 %v2316
    %2940 = vmatpush1.bf16.msra.mxu0 %v2315
    %2941 = vmatprep.subr.bf16.mxu0 %v2318
    %2942 = vmatpush1.bf16.msra.mxu0 %v2317
    %2943 = vmatprep.subr.bf16.mxu0 %v2320
    %2944 = vmatpush1.bf16.msra.mxu0 %v2319
    %2945 = vmatprep.subr.bf16.mxu0 %v2322
    %2946 = vmatpush1.bf16.msra.mxu0 %v2321
    %2947 = vmatprep.subr.bf16.mxu0 %v2324
    %2948 = vmatpush1.bf16.msra.mxu0 %v2323
    %2949 = vmatprep.subr.bf16.mxu0 %v2326
    %2950 = vmatpush1.bf16.msra.mxu0 %v2325
    %2951 = vmatprep.subr.bf16.mxu0 %v2328
    %2952 = vmatpush1.bf16.msra.mxu0 %v2327
    %2953 = vmatprep.subr.bf16.mxu0 %v2330
    %2954 = vmatpush1.bf16.msra.mxu0 %v2329
    %2955 = vmatprep.subr.bf16.mxu0 %v2355
    %2956 = vmatpush1.bf16.msra.mxu0 %v2352
    %2957 = vmatprep.subr.bf16.mxu0 0
    %2958 = vmatpush1.bf16.msra.mxu0 0
    %2959 = vmatprep.subr.bf16.mxu0 0
    %2960 = vmatpush1.bf16.msra.mxu0 0
    %2961 = vmatprep.subr.bf16.mxu0 0
    %2962 = vmatpush1.bf16.msra.mxu0 0
    %2963 = vmatprep.subr.bf16.mxu0 0
    %2964 = vmatpush1.bf16.msra.mxu0 0
    %2965 = vmatprep.subr.bf16.mxu0 0
    %2966 = vmatpush1.bf16.msra.mxu0 0
    %2967 = vmatprep.subr.bf16.mxu0 0
    %2968 = vmatpush1.bf16.msra.mxu0 0
    %2969 = vmatprep.mubr.bf16.mxu0 %v2813
    %2970 = vmatmul.mubr.bf16.gmra.mrb[0].mxu0 %v2809
    %v2971 = vpop.f32.mrb[0].mxu0
    %v2972 = vadd.f32 %v1873, %v2971
    %v2973 = vpop.f32.mrb[0].mxu0
    %v2974 = vadd.f32 %v1877, %v2973
    %v2975 = vpop.f32.mrb[0].mxu0
    %v2976 = vpop.f32.mrb[0].mxu0
    %2977 = vdwg.mxu0
    %v2980 = vrot.slane %v2972, 2
    %v2981 = vrot.slane %v2974, 2
    %v2984 = vmul.f32 %v2873, %v2980
    %v2985 = vmul.f32 %v2875, %v2981
    %v2986 = vadd.f32 %v1860, %v2984
    %v2987 = vadd.f32 %v1862, %v2985
    %v2988 = vtanh.pop %v2986
    %v2989 = vtanh.pop %v2987
    %v2990 = vsub.f32 1.0, %v2934
    %v2991 = vsub.f32 1.0, %v2936
    %v2992 = vmul.f32 %v2990, %v2988
    %v2993 = vmul.f32 %v2991, %v2989
    %v2996 = vrot.slane %v2803, 6
    %v2997 = vrot.slane %v2804, 6
    %v3000 = vmul.f32 %v2934, %v2996
    %v3001 = vmul.f32 %v2936, %v2997
    %v3002 = vadd.f32 %v2992, %v3000
    %v3003 = vadd.f32 %v2993, %v3001
    %v3004 = vpack.c.bf16 %v3002, %v3002
    %v3005 = vpack.c.bf16 %v3003, %v3003
    %v3008 = vrot.slane %v3004, 3
    %v3009 = vrot.slane %v3005, 3
    %v3012 = vsel %vm1994, %v3009, 0
    %3014 = vmatprep.subr.bf16.mxu0 %v1957
    %3015 = vmatpush1.bf16.msra.mxu0 %v1956
    %3016 = vmatprep.subr.bf16.mxu0 %v1959
    %3017 = vmatpush1.bf16.msra.mxu0 %v1958
    %3018 = vmatprep.subr.bf16.mxu0 %v1961
    %3019 = vmatpush1.bf16.msra.mxu0 %v1960
    %3020 = vmatprep.subr.bf16.mxu0 %v1963
    %3021 = vmatpush1.bf16.msra.mxu0 %v1962
    %3022 = vmatprep.subr.bf16.mxu0 %v1965
    %3023 = vmatpush1.bf16.msra.mxu0 %v1964
    %3024 = vmatprep.subr.bf16.mxu0 %v1967
    %3025 = vmatpush1.bf16.msra.mxu0 %v1966
    %3026 = vmatprep.subr.bf16.mxu0 %v1969
    %3027 = vmatpush1.bf16.msra.mxu0 %v1968
    %3028 = vmatprep.subr.bf16.mxu0 %v1971
    %3029 = vmatpush1.bf16.msra.mxu0 %v1970
    %3030 = vmatprep.subr.bf16.mxu0 %v1973
    %3031 = vmatpush1.bf16.msra.mxu0 %v1972
    %3032 = vmatprep.subr.bf16.mxu0 %v2003
    %3033 = vmatpush1.bf16.msra.mxu0 %v2000
    %3034 = vmatprep.subr.bf16.mxu0 0
    %3035 = vmatpush1.bf16.msra.mxu0 0
    %3036 = vmatprep.subr.bf16.mxu0 0
    %3037 = vmatpush1.bf16.msra.mxu0 0
    %3038 = vmatprep.subr.bf16.mxu0 0
    %3039 = vmatpush1.bf16.msra.mxu0 0
    %3040 = vmatprep.subr.bf16.mxu0 0
    %3041 = vmatpush1.bf16.msra.mxu0 0
    %3042 = vmatprep.subr.bf16.mxu0 0
    %3043 = vmatpush1.bf16.msra.mxu0 0
    %3044 = vmatprep.subr.bf16.mxu0 0
    %3045 = vmatpush1.bf16.msra.mxu0 0
    %3046 = vmatprep.mubr.bf16.mxu0 %v3012
    %3047 = vmatmul.mubr.bf16.gmra.mrb[0].mxu0 %v3008
    %v3048 = vpop.f32.mrb[0].mxu0
    %v3049 = vadd.f32 0.0, %v3048
    %v3050 = vpop.f32.mrb[0].mxu0
    %v3051 = vadd.f32 0.0, %v3050
    %v3052 = vpop.f32.mrb[0].mxu0
    %v3053 = vpop.f32.mrb[0].mxu0
    %3054 = vdwg.mxu0
    %v3055 = vadd.f32 %v666, %v3049
    %v3056 = vadd.f32 %v668, %v3051
    %v3057 = vxor.u32 %v3055, 2147483648
    %v3058 = vxor.u32 %v3056, 2147483648
    %v3059 = vmul.f32 %v3057, 1.442695
    %v3060 = vpow.pop %v3059
    %v3061 = vmul.f32 %v3058, 1.442695
    %v3062 = vpow.pop %v3061
    %v3063 = vadd.f32 %v3060, 1.0
    %v3064 = vadd.f32 %v3062, 1.0
    %v3065 = vrcp.pop %v3063
    %v3066 = vmul.f32 1.0, %v3065
    %v3067 = vrcp.pop %v3064
    %v3068 = vmul.f32 1.0, %v3067
    %3069 = vmatprep.subr.bf16.mxu0 %v2138
    %3070 = vmatpush1.bf16.msra.mxu0 %v2137
    %3071 = vmatprep.subr.bf16.mxu0 %v2140
    %3072 = vmatpush1.bf16.msra.mxu0 %v2139
    %3073 = vmatprep.subr.bf16.mxu0 %v2142
    %3074 = vmatpush1.bf16.msra.mxu0 %v2141
    %3075 = vmatprep.subr.bf16.mxu0 %v2144
    %3076 = vmatpush1.bf16.msra.mxu0 %v2143
    %3077 = vmatprep.subr.bf16.mxu0 %v2146
    %3078 = vmatpush1.bf16.msra.mxu0 %v2145
    %3079 = vmatprep.subr.bf16.mxu0 %v2148
    %3080 = vmatpush1.bf16.msra.mxu0 %v2147
    %3081 = vmatprep.subr.bf16.mxu0 %v2150
    %3082 = vmatpush1.bf16.msra.mxu0 %v2149
    %3083 = vmatprep.subr.bf16.mxu0 %v2152
    %3084 = vmatpush1.bf16.msra.mxu0 %v2151
    %3085 = vmatprep.subr.bf16.mxu0 %v2154
    %3086 = vmatpush1.bf16.msra.mxu0 %v2153
    %3087 = vmatprep.subr.bf16.mxu0 %v2179
    %3088 = vmatpush1.bf16.msra.mxu0 %v2176
    %3089 = vmatprep.subr.bf16.mxu0 0
    %3090 = vmatpush1.bf16.msra.mxu0 0
    %3091 = vmatprep.subr.bf16.mxu0 0
    %3092 = vmatpush1.bf16.msra.mxu0 0
    %3093 = vmatprep.subr.bf16.mxu0 0
    %3094 = vmatpush1.bf16.msra.mxu0 0
    %3095 = vmatprep.subr.bf16.mxu0 0
    %3096 = vmatpush1.bf16.msra.mxu0 0
    %3097 = vmatprep.subr.bf16.mxu0 0
    %3098 = vmatpush1.bf16.msra.mxu0 0
    %3099 = vmatprep.subr.bf16.mxu0 0
    %3100 = vmatpush1.bf16.msra.mxu0 0
    %3101 = vmatprep.mubr.bf16.mxu0 %v3012
    %3102 = vmatmul.mubr.bf16.gmra.mrb[0].mxu0 %v3008
    %v3103 = vpop.f32.mrb[0].mxu0
    %v3104 = vadd.f32 0.0, %v3103
    %v3105 = vpop.f32.mrb[0].mxu0
    %v3106 = vadd.f32 0.0, %v3105
    %v3107 = vpop.f32.mrb[0].mxu0
    %v3108 = vpop.f32.mrb[0].mxu0
    %3109 = vdwg.mxu0
    %v3110 = vadd.f32 %v1265, %v3104
    %v3111 = vadd.f32 %v1267, %v3106
    %v3112 = vxor.u32 %v3110, 2147483648
    %v3113 = vxor.u32 %v3111, 2147483648
    %v3114 = vmul.f32 %v3112, 1.442695
    %v3115 = vpow.pop %v3114
    %v3116 = vmul.f32 %v3113, 1.442695
    %v3117 = vpow.pop %v3116
    %v3118 = vadd.f32 %v3115, 1.0
    %v3119 = vadd.f32 %v3117, 1.0
    %v3120 = vrcp.pop %v3118
    %v3121 = vmul.f32 1.0, %v3120
    %v3122 = vrcp.pop %v3119
    %v3123 = vmul.f32 1.0, %v3122
    %3124 = vmatprep.subr.bf16.mxu0 %v2314
    %3125 = vmatpush1.bf16.msra.mxu0 %v2313
    %3126 = vmatprep.subr.bf16.mxu0 %v2316
    %3127 = vmatpush1.bf16.msra.mxu0 %v2315
    %3128 = vmatprep.subr.bf16.mxu0 %v2318
    %3129 = vmatpush1.bf16.msra.mxu0 %v2317
    %3130 = vmatprep.subr.bf16.mxu0 %v2320
    %3131 = vmatpush1.bf16.msra.mxu0 %v2319
    %3132 = vmatprep.subr.bf16.mxu0 %v2322
    %3133 = vmatpush1.bf16.msra.mxu0 %v2321
    %3134 = vmatprep.subr.bf16.mxu0 %v2324
    %3135 = vmatpush1.bf16.msra.mxu0 %v2323
    %3136 = vmatprep.subr.bf16.mxu0 %v2326
    %3137 = vmatpush1.bf16.msra.mxu0 %v2325
    %3138 = vmatprep.subr.bf16.mxu0 %v2328
    %3139 = vmatpush1.bf16.msra.mxu0 %v2327
    %3140 = vmatprep.subr.bf16.mxu0 %v2330
    %3141 = vmatpush1.bf16.msra.mxu0 %v2329
    %3142 = vmatprep.subr.bf16.mxu0 %v2355
    %3143 = vmatpush1.bf16.msra.mxu0 %v2352
    %3144 = vmatprep.subr.bf16.mxu0 0
    %3145 = vmatpush1.bf16.msra.mxu0 0
    %3146 = vmatprep.subr.bf16.mxu0 0
    %3147 = vmatpush1.bf16.msra.mxu0 0
    %3148 = vmatprep.subr.bf16.mxu0 0
    %3149 = vmatpush1.bf16.msra.mxu0 0
    %3150 = vmatprep.subr.bf16.mxu0 0
    %3151 = vmatpush1.bf16.msra.mxu0 0
    %3152 = vmatprep.subr.bf16.mxu0 0
    %3153 = vmatpush1.bf16.msra.mxu0 0
    %3154 = vmatprep.subr.bf16.mxu0 0
    %3155 = vmatpush1.bf16.msra.mxu0 0
    %3156 = vmatprep.mubr.bf16.mxu0 %v3012
    %3157 = vmatmul.mubr.bf16.gmra.mrb[0].mxu0 %v3008
    %v3158 = vpop.f32.mrb[0].mxu0
    %v3159 = vadd.f32 %v1873, %v3158
    %v3160 = vpop.f32.mrb[0].mxu0
    %v3161 = vadd.f32 %v1877, %v3160
    %v3162 = vpop.f32.mrb[0].mxu0
    %v3163 = vpop.f32.mrb[0].mxu0
    %3164 = vdwg.mxu0
    %v3165 = vmul.f32 %v3066, %v3159
    %v3166 = vmul.f32 %v3068, %v3161
    %v3167 = vadd.f32 %v1864, %v3165
    %v3168 = vadd.f32 %v1866, %v3166
    %v3169 = vtanh.pop %v3167
    %v3170 = vtanh.pop %v3168
    %v3171 = vsub.f32 1.0, %v3121
    %v3172 = vsub.f32 1.0, %v3123
    %v3173 = vmul.f32 %v3171, %v3169
    %v3174 = vmul.f32 %v3172, %v3170
    %v3177 = vrot.slane %v3002, 6
    %v3178 = vrot.slane %v3003, 6
    %v3181 = vmul.f32 %v3121, %v3177
    %v3182 = vmul.f32 %v3123, %v3178
    %v3183 = vadd.f32 %v3173, %v3181
    %v3184 = vadd.f32 %v3174, %v3182
    %v3185 = vpack.c.bf16 %v3183, %v3183
    %v3186 = vpack.c.bf16 %v3184, %v3184
    %v3188 = vsel %vm1994, %v3186, 0
    %3190 = vmatprep.subr.bf16.mxu0 %v1957
    %3191 = vmatpush1.bf16.msra.mxu0 %v1956
    %3192 = vmatprep.subr.bf16.mxu0 %v1959
    %3193 = vmatpush1.bf16.msra.mxu0 %v1958
    %3194 = vmatprep.subr.bf16.mxu0 %v1961
    %3195 = vmatpush1.bf16.msra.mxu0 %v1960
    %3196 = vmatprep.subr.bf16.mxu0 %v1963
    %3197 = vmatpush1.bf16.msra.mxu0 %v1962
    %3198 = vmatprep.subr.bf16.mxu0 %v1965
    %3199 = vmatpush1.bf16.msra.mxu0 %v1964
    %3200 = vmatprep.subr.bf16.mxu0 %v1967
    %3201 = vmatpush1.bf16.msra.mxu0 %v1966
    %3202 = vmatprep.subr.bf16.mxu0 %v1969
    %3203 = vmatpush1.bf16.msra.mxu0 %v1968
    %3204 = vmatprep.subr.bf16.mxu0 %v1971
    %3205 = vmatpush1.bf16.msra.mxu0 %v1970
    %3206 = vmatprep.subr.bf16.mxu0 %v1973
    %3207 = vmatpush1.bf16.msra.mxu0 %v1972
    %3208 = vmatprep.subr.bf16.mxu0 %v2003
    %3209 = vmatpush1.bf16.msra.mxu0 %v2000
    %3210 = vmatprep.subr.bf16.mxu0 0
    %3211 = vmatpush1.bf16.msra.mxu0 0
    %3212 = vmatprep.subr.bf16.mxu0 0
    %3213 = vmatpush1.bf16.msra.mxu0 0
    %3214 = vmatprep.subr.bf16.mxu0 0
    %3215 = vmatpush1.bf16.msra.mxu0 0
    %3216 = vmatprep.subr.bf16.mxu0 0
    %3217 = vmatpush1.bf16.msra.mxu0 0
    %3218 = vmatprep.subr.bf16.mxu0 0
    %3219 = vmatpush1.bf16.msra.mxu0 0
    %3220 = vmatprep.subr.bf16.mxu0 0
    %3221 = vmatpush1.bf16.msra.mxu0 0
    %3222 = vmatprep.mubr.bf16.mxu0 %v3188
    %3223 = vmatmul.mubr.bf16.gmra.mrb[0].mxu0 %v3185
    %v3224 = vpop.f32.mrb[0].mxu0
    %v3225 = vadd.f32 0.0, %v3224
    %v3226 = vpop.f32.mrb[0].mxu0
    %v3227 = vadd.f32 0.0, %v3226
    %v3228 = vpop.f32.mrb[0].mxu0
    %v3229 = vpop.f32.mrb[0].mxu0
    %3230 = vdwg.mxu0
    %v3233 = vrot.slane %v3225, 6
    %v3234 = vrot.slane %v3227, 6
    %v3237 = vadd.f32 %v666, %v3233
    %v3238 = vadd.f32 %v668, %v3234
    %v3239 = vxor.u32 %v3237, 2147483648
    %v3240 = vxor.u32 %v3238, 2147483648
    %v3241 = vmul.f32 %v3239, 1.442695
    %v3242 = vpow.pop %v3241
    %v3243 = vmul.f32 %v3240, 1.442695
    %v3244 = vpow.pop %v3243
    %v3245 = vadd.f32 %v3242, 1.0
    %v3246 = vadd.f32 %v3244, 1.0
    %v3247 = vrcp.pop %v3245
    %v3248 = vmul.f32 1.0, %v3247
    %v3249 = vrcp.pop %v3246
    %v3250 = vmul.f32 1.0, %v3249
    %3251 = vmatprep.subr.bf16.mxu0 %v2138
    %3252 = vmatpush1.bf16.msra.mxu0 %v2137
    %3253 = vmatprep.subr.bf16.mxu0 %v2140
    %3254 = vmatpush1.bf16.msra.mxu0 %v2139
    %3255 = vmatprep.subr.bf16.mxu0 %v2142
    %3256 = vmatpush1.bf16.msra.mxu0 %v2141
    %3257 = vmatprep.subr.bf16.mxu0 %v2144
    %3258 = vmatpush1.bf16.msra.mxu0 %v2143
    %3259 = vmatprep.subr.bf16.mxu0 %v2146
    %3260 = vmatpush1.bf16.msra.mxu0 %v2145
    %3261 = vmatprep.subr.bf16.mxu0 %v2148
    %3262 = vmatpush1.bf16.msra.mxu0 %v2147
    %3263 = vmatprep.subr.bf16.mxu0 %v2150
    %3264 = vmatpush1.bf16.msra.mxu0 %v2149
    %3265 = vmatprep.subr.bf16.mxu0 %v2152
    %3266 = vmatpush1.bf16.msra.mxu0 %v2151
    %3267 = vmatprep.subr.bf16.mxu0 %v2154
    %3268 = vmatpush1.bf16.msra.mxu0 %v2153
    %3269 = vmatprep.subr.bf16.mxu0 %v2179
    %3270 = vmatpush1.bf16.msra.mxu0 %v2176
    %3271 = vmatprep.subr.bf16.mxu0 0
    %3272 = vmatpush1.bf16.msra.mxu0 0
    %3273 = vmatprep.subr.bf16.mxu0 0
    %3274 = vmatpush1.bf16.msra.mxu0 0
    %3275 = vmatprep.subr.bf16.mxu0 0
    %3276 = vmatpush1.bf16.msra.mxu0 0
    %3277 = vmatprep.subr.bf16.mxu0 0
    %3278 = vmatpush1.bf16.msra.mxu0 0
    %3279 = vmatprep.subr.bf16.mxu0 0
    %3280 = vmatpush1.bf16.msra.mxu0 0
    %3281 = vmatprep.subr.bf16.mxu0 0
    %3282 = vmatpush1.bf16.msra.mxu0 0
    %3283 = vmatprep.mubr.bf16.mxu0 %v3188
    %3284 = vmatmul.mubr.bf16.gmra.mrb[0].mxu0 %v3185
    %v3285 = vpop.f32.mrb[0].mxu0
    %v3286 = vadd.f32 0.0, %v3285
    %v3287 = vpop.f32.mrb[0].mxu0
    %v3288 = vadd.f32 0.0, %v3287
    %v3289 = vpop.f32.mrb[0].mxu0
    %v3290 = vpop.f32.mrb[0].mxu0
    %3291 = vdwg.mxu0
    %v3294 = vrot.slane %v3286, 6
    %v3295 = vrot.slane %v3288, 6
    %v3298 = vadd.f32 %v1265, %v3294
    %v3299 = vadd.f32 %v1267, %v3295
    %v3300 = vxor.u32 %v3298, 2147483648
    %v3301 = vxor.u32 %v3299, 2147483648
    %v3302 = vmul.f32 %v3300, 1.442695
    %v3303 = vpow.pop %v3302
    %v3304 = vmul.f32 %v3301, 1.442695
    %v3305 = vpow.pop %v3304
    %v3306 = vadd.f32 %v3303, 1.0
    %v3307 = vadd.f32 %v3305, 1.0
    %v3308 = vrcp.pop %v3306
    %v3309 = vmul.f32 1.0, %v3308
    %v3310 = vrcp.pop %v3307
    %v3311 = vmul.f32 1.0, %v3310
    %3312 = vmatprep.subr.bf16.mxu0 %v2314
    %3313 = vmatpush1.bf16.msra.mxu0 %v2313
    %3314 = vmatprep.subr.bf16.mxu0 %v2316
    %3315 = vmatpush1.bf16.msra.mxu0 %v2315
    %3316 = vmatprep.subr.bf16.mxu0 %v2318
    %3317 = vmatpush1.bf16.msra.mxu0 %v2317
    %3318 = vmatprep.subr.bf16.mxu0 %v2320
    %3319 = vmatpush1.bf16.msra.mxu0 %v2319
    %3320 = vmatprep.subr.bf16.mxu0 %v2322
    %3321 = vmatpush1.bf16.msra.mxu0 %v2321
    %3322 = vmatprep.subr.bf16.mxu0 %v2324
    %3323 = vmatpush1.bf16.msra.mxu0 %v2323
    %3324 = vmatprep.subr.bf16.mxu0 %v2326
    %3325 = vmatpush1.bf16.msra.mxu0 %v2325
    %3326 = vmatprep.subr.bf16.mxu0 %v2328
    %3327 = vmatpush1.bf16.msra.mxu0 %v2327
    %3328 = vmatprep.subr.bf16.mxu0 %v2330
    %3329 = vmatpush1.bf16.msra.mxu0 %v2329
    %3330 = vmatprep.subr.bf16.mxu0 %v2355
    %3331 = vmatpush1.bf16.msra.mxu0 %v2352
    %3332 = vmatprep.subr.bf16.mxu0 0
    %3333 = vmatpush1.bf16.msra.mxu0 0
    %3334 = vmatprep.subr.bf16.mxu0 0
    %3335 = vmatpush1.bf16.msra.mxu0 0
    %3336 = vmatprep.subr.bf16.mxu0 0
    %3337 = vmatpush1.bf16.msra.mxu0 0
    %3338 = vmatprep.subr.bf16.mxu0 0
    %3339 = vmatpush1.bf16.msra.mxu0 0
    %3340 = vmatprep.subr.bf16.mxu0 0
    %3341 = vmatpush1.bf16.msra.mxu0 0
    %3342 = vmatprep.subr.bf16.mxu0 0
    %3343 = vmatpush1.bf16.msra.mxu0 0
    %3344 = vmatprep.mubr.bf16.mxu0 %v3188
    %3345 = vmatmul.mubr.bf16.gmra.mrb[0].mxu0 %v3185
    %v3346 = vpop.f32.mrb[0].mxu0
    %v3347 = vadd.f32 %v1873, %v3346
    %v3348 = vpop.f32.mrb[0].mxu0
    %v3349 = vadd.f32 %v1877, %v3348
    %v3350 = vpop.f32.mrb[0].mxu0
    %v3351 = vpop.f32.mrb[0].mxu0
    %3352 = vdwg.mxu0
    %v3355 = vrot.slane %v3347, 6
    %v3356 = vrot.slane %v3349, 6
    %v3359 = vmul.f32 %v3248, %v3355
    %v3360 = vmul.f32 %v3250, %v3356
    %v3361 = vadd.f32 %v1864, %v3359
    %v3362 = vadd.f32 %v1866, %v3360
    %v3363 = vtanh.pop %v3361
    %v3364 = vtanh.pop %v3362
    %v3365 = vsub.f32 1.0, %v3309
    %v3366 = vsub.f32 1.0, %v3311
    %v3367 = vmul.f32 %v3365, %v3363
    %v3368 = vmul.f32 %v3366, %v3364
    %v3371 = vrot.slane %v3183, 6
    %v3372 = vrot.slane %v3184, 6
    %v3375 = vmul.f32 %v3309, %v3371
    %v3376 = vmul.f32 %v3311, %v3372
    %v3377 = vadd.f32 %v3367, %v3375
    %v3378 = vadd.f32 %v3368, %v3376
    %v3379 = vpack.c.bf16 %v3377, %v3377
    %v3380 = vpack.c.bf16 %v3378, %v3378
    %v3383 = vrot.slane %v3379, 1
    %v3384 = vrot.slane %v3380, 1
    %v3387 = vsel %vm1994, %v3384, 0
    %3389 = vmatprep.subr.bf16.mxu0 %v1957
    %3390 = vmatpush1.bf16.msra.mxu0 %v1956
    %3391 = vmatprep.subr.bf16.mxu0 %v1959
    %3392 = vmatpush1.bf16.msra.mxu0 %v1958
    %3393 = vmatprep.subr.bf16.mxu0 %v1961
    %3394 = vmatpush1.bf16.msra.mxu0 %v1960
    %3395 = vmatprep.subr.bf16.mxu0 %v1963
    %3396 = vmatpush1.bf16.msra.mxu0 %v1962
    %3397 = vmatprep.subr.bf16.mxu0 %v1965
    %3398 = vmatpush1.bf16.msra.mxu0 %v1964
    %3399 = vmatprep.subr.bf16.mxu0 %v1967
    %3400 = vmatpush1.bf16.msra.mxu0 %v1966
    %3401 = vmatprep.subr.bf16.mxu0 %v1969
    %3402 = vmatpush1.bf16.msra.mxu0 %v1968
    %3403 = vmatprep.subr.bf16.mxu0 %v1971
    %3404 = vmatpush1.bf16.msra.mxu0 %v1970
    %3405 = vmatprep.subr.bf16.mxu0 %v1973
    %3406 = vmatpush1.bf16.msra.mxu0 %v1972
    %3407 = vmatprep.subr.bf16.mxu0 %v2003
    %3408 = vmatpush1.bf16.msra.mxu0 %v2000
    %3409 = vmatprep.subr.bf16.mxu0 0
    %3410 = vmatpush1.bf16.msra.mxu0 0
    %3411 = vmatprep.subr.bf16.mxu0 0
    %3412 = vmatpush1.bf16.msra.mxu0 0
    %3413 = vmatprep.subr.bf16.mxu0 0
    %3414 = vmatpush1.bf16.msra.mxu0 0
    %3415 = vmatprep.subr.bf16.mxu0 0
    %3416 = vmatpush1.bf16.msra.mxu0 0
    %3417 = vmatprep.subr.bf16.mxu0 0
    %3418 = vmatpush1.bf16.msra.mxu0 0
    %3419 = vmatprep.subr.bf16.mxu0 0
    %3420 = vmatpush1.bf16.msra.mxu0 0
    %3421 = vmatprep.mubr.bf16.mxu0 %v3387
    %3422 = vmatmul.mubr.bf16.gmra.mrb[0].mxu0 %v3383
    %v3423 = vpop.f32.mrb[0].mxu0
    %v3424 = vadd.f32 0.0, %v3423
    %v3425 = vpop.f32.mrb[0].mxu0
    %v3426 = vadd.f32 0.0, %v3425
    %v3427 = vpop.f32.mrb[0].mxu0
    %v3428 = vpop.f32.mrb[0].mxu0
    %3429 = vdwg.mxu0
    %v3432 = vrot.slane %v3424, 4
    %v3433 = vrot.slane %v3426, 4
    %v3436 = vadd.f32 %v666, %v3432
    %v3437 = vadd.f32 %v668, %v3433
    %v3438 = vxor.u32 %v3436, 2147483648
    %v3439 = vxor.u32 %v3437, 2147483648
    %v3440 = vmul.f32 %v3438, 1.442695
    %v3441 = vpow.pop %v3440
    %v3442 = vmul.f32 %v3439, 1.442695
    %v3443 = vpow.pop %v3442
    %v3444 = vadd.f32 %v3441, 1.0
    %v3445 = vadd.f32 %v3443, 1.0
    %v3446 = vrcp.pop %v3444
    %v3447 = vmul.f32 1.0, %v3446
    %v3448 = vrcp.pop %v3445
    %v3449 = vmul.f32 1.0, %v3448
    %3450 = vmatprep.subr.bf16.mxu0 %v2138
    %3451 = vmatpush1.bf16.msra.mxu0 %v2137
    %3452 = vmatprep.subr.bf16.mxu0 %v2140
    %3453 = vmatpush1.bf16.msra.mxu0 %v2139
    %3454 = vmatprep.subr.bf16.mxu0 %v2142
    %3455 = vmatpush1.bf16.msra.mxu0 %v2141
    %3456 = vmatprep.subr.bf16.mxu0 %v2144
    %3457 = vmatpush1.bf16.msra.mxu0 %v2143
    %3458 = vmatprep.subr.bf16.mxu0 %v2146
    %3459 = vmatpush1.bf16.msra.mxu0 %v2145
    %3460 = vmatprep.subr.bf16.mxu0 %v2148
    %3461 = vmatpush1.bf16.msra.mxu0 %v2147
    %3462 = vmatprep.subr.bf16.mxu0 %v2150
    %3463 = vmatpush1.bf16.msra.mxu0 %v2149
    %3464 = vmatprep.subr.bf16.mxu0 %v2152
    %3465 = vmatpush1.bf16.msra.mxu0 %v2151
    %3466 = vmatprep.subr.bf16.mxu0 %v2154
    %3467 = vmatpush1.bf16.msra.mxu0 %v2153
    %3468 = vmatprep.subr.bf16.mxu0 %v2179
    %3469 = vmatpush1.bf16.msra.mxu0 %v2176
    %3470 = vmatprep.subr.bf16.mxu0 0
    %3471 = vmatpush1.bf16.msra.mxu0 0
    %3472 = vmatprep.subr.bf16.mxu0 0
    %3473 = vmatpush1.bf16.msra.mxu0 0
    %3474 = vmatprep.subr.bf16.mxu0 0
    %3475 = vmatpush1.bf16.msra.mxu0 0
    %3476 = vmatprep.subr.bf16.mxu0 0
    %3477 = vmatpush1.bf16.msra.mxu0 0
    %3478 = vmatprep.subr.bf16.mxu0 0
    %3479 = vmatpush1.bf16.msra.mxu0 0
    %3480 = vmatprep.subr.bf16.mxu0 0
    %3481 = vmatpush1.bf16.msra.mxu0 0
    %3482 = vmatprep.mubr.bf16.mxu0 %v3387
    %3483 = vmatmul.mubr.bf16.gmra.mrb[0].mxu0 %v3383
    %v3484 = vpop.f32.mrb[0].mxu0
    %v3485 = vadd.f32 0.0, %v3484
    %v3486 = vpop.f32.mrb[0].mxu0
    %v3487 = vadd.f32 0.0, %v3486
    %v3488 = vpop.f32.mrb[0].mxu0
    %v3489 = vpop.f32.mrb[0].mxu0
    %3490 = vdwg.mxu0
    %v3493 = vrot.slane %v3485, 4
    %v3494 = vrot.slane %v3487, 4
    %v3497 = vadd.f32 %v1265, %v3493
    %v3498 = vadd.f32 %v1267, %v3494
    %v3499 = vxor.u32 %v3497, 2147483648
    %v3500 = vxor.u32 %v3498, 2147483648
    %v3501 = vmul.f32 %v3499, 1.442695
    %v3502 = vpow.pop %v3501
    %v3503 = vmul.f32 %v3500, 1.442695
    %v3504 = vpow.pop %v3503
    %v3505 = vadd.f32 %v3502, 1.0
    %v3506 = vadd.f32 %v3504, 1.0
    %v3507 = vrcp.pop %v3505
    %v3508 = vmul.f32 1.0, %v3507
    %v3509 = vrcp.pop %v3506
    %v3510 = vmul.f32 1.0, %v3509
    %3511 = vmatprep.subr.bf16.mxu0 %v2314
    %3512 = vmatpush1.bf16.msra.mxu0 %v2313
    %3513 = vmatprep.subr.bf16.mxu0 %v2316
    %3514 = vmatpush1.bf16.msra.mxu0 %v2315
    %3515 = vmatprep.subr.bf16.mxu0 %v2318
    %3516 = vmatpush1.bf16.msra.mxu0 %v2317
    %3517 = vmatprep.subr.bf16.mxu0 %v2320
    %3518 = vmatpush1.bf16.msra.mxu0 %v2319
    %3519 = vmatprep.subr.bf16.mxu0 %v2322
    %3520 = vmatpush1.bf16.msra.mxu0 %v2321
    %3521 = vmatprep.subr.bf16.mxu0 %v2324
    %3522 = vmatpush1.bf16.msra.mxu0 %v2323
    %3523 = vmatprep.subr.bf16.mxu0 %v2326
    %3524 = vmatpush1.bf16.msra.mxu0 %v2325
    %3525 = vmatprep.subr.bf16.mxu0 %v2328
    %3526 = vmatpush1.bf16.msra.mxu0 %v2327
    %3527 = vmatprep.subr.bf16.mxu0 %v2330
    %3528 = vmatpush1.bf16.msra.mxu0 %v2329
    %3529 = vmatprep.subr.bf16.mxu0 %v2355
    %3530 = vmatpush1.bf16.msra.mxu0 %v2352
    %3531 = vmatprep.subr.bf16.mxu0 0
    %3532 = vmatpush1.bf16.msra.mxu0 0
    %3533 = vmatprep.subr.bf16.mxu0 0
    %3534 = vmatpush1.bf16.msra.mxu0 0
    %3535 = vmatprep.subr.bf16.mxu0 0
    %3536 = vmatpush1.bf16.msra.mxu0 0
    %3537 = vmatprep.subr.bf16.mxu0 0
    %3538 = vmatpush1.bf16.msra.mxu0 0
    %3539 = vmatprep.subr.bf16.mxu0 0
    %3540 = vmatpush1.bf16.msra.mxu0 0
    %3541 = vmatprep.subr.bf16.mxu0 0
    %3542 = vmatpush1.bf16.msra.mxu0 0
    %3543 = vmatprep.mubr.bf16.mxu0 %v3387
    %3544 = vmatmul.mubr.bf16.gmra.mrb[0].mxu0 %v3383
    %v3545 = vpop.f32.mrb[0].mxu0
    %v3546 = vadd.f32 %v1873, %v3545
    %v3547 = vpop.f32.mrb[0].mxu0
    %v3548 = vadd.f32 %v1877, %v3547
    %v3549 = vpop.f32.mrb[0].mxu0
    %v3550 = vpop.f32.mrb[0].mxu0
    %3551 = vdwg.mxu0
    %v3554 = vrot.slane %v3546, 4
    %v3555 = vrot.slane %v3548, 4
    %v3558 = vmul.f32 %v3447, %v3554
    %v3559 = vmul.f32 %v3449, %v3555
    %v3560 = vadd.f32 %v1864, %v3558
    %v3561 = vadd.f32 %v1866, %v3559
    %v3562 = vtanh.pop %v3560
    %v3563 = vtanh.pop %v3561
    %v3564 = vsub.f32 1.0, %v3508
    %v3565 = vsub.f32 1.0, %v3510
    %v3566 = vmul.f32 %v3564, %v3562
    %v3567 = vmul.f32 %v3565, %v3563
    %v3570 = vrot.slane %v3377, 6
    %v3571 = vrot.slane %v3378, 6
    %v3574 = vmul.f32 %v3508, %v3570
    %v3575 = vmul.f32 %v3510, %v3571
    %v3576 = vadd.f32 %v3566, %v3574
    %v3577 = vadd.f32 %v3567, %v3575
    %v3578 = vpack.c.bf16 %v3576, %v3576
    %v3579 = vpack.c.bf16 %v3577, %v3577
    %v3582 = vrot.slane %v3578, 2
    %v3583 = vrot.slane %v3579, 2
    %v3586 = vsel %vm1994, %v3583, 0
    %3588 = vmatprep.subr.bf16.mxu0 %v1957
    %3589 = vmatpush1.bf16.msra.mxu0 %v1956
    %3590 = vmatprep.subr.bf16.mxu0 %v1959
    %3591 = vmatpush1.bf16.msra.mxu0 %v1958
    %3592 = vmatprep.subr.bf16.mxu0 %v1961
    %3593 = vmatpush1.bf16.msra.mxu0 %v1960
    %3594 = vmatprep.subr.bf16.mxu0 %v1963
    %3595 = vmatpush1.bf16.msra.mxu0 %v1962
    %3596 = vmatprep.subr.bf16.mxu0 %v1965
    %3597 = vmatpush1.bf16.msra.mxu0 %v1964
    %3598 = vmatprep.subr.bf16.mxu0 %v1967
    %3599 = vmatpush1.bf16.msra.mxu0 %v1966
    %3600 = vmatprep.subr.bf16.mxu0 %v1969
    %3601 = vmatpush1.bf16.msra.mxu0 %v1968
    %3602 = vmatprep.subr.bf16.mxu0 %v1971
    %3603 = vmatpush1.bf16.msra.mxu0 %v1970
    %3604 = vmatprep.subr.bf16.mxu0 %v1973
    %3605 = vmatpush1.bf16.msra.mxu0 %v1972
    %3606 = vmatprep.subr.bf16.mxu0 %v2003
    %3607 = vmatpush1.bf16.msra.mxu0 %v2000
    %3608 = vmatprep.subr.bf16.mxu0 0
    %3609 = vmatpush1.bf16.msra.mxu0 0
    %3610 = vmatprep.subr.bf16.mxu0 0
    %3611 = vmatpush1.bf16.msra.mxu0 0
    %3612 = vmatprep.subr.bf16.mxu0 0
    %3613 = vmatpush1.bf16.msra.mxu0 0
    %3614 = vmatprep.subr.bf16.mxu0 0
    %3615 = vmatpush1.bf16.msra.mxu0 0
    %3616 = vmatprep.subr.bf16.mxu0 0
    %3617 = vmatpush1.bf16.msra.mxu0 0
    %3618 = vmatprep.subr.bf16.mxu0 0
    %3619 = vmatpush1.bf16.msra.mxu0 0
    %3620 = vmatprep.mubr.bf16.mxu0 %v3586
    %3621 = vmatmul.mubr.bf16.gmra.mrb[0].mxu0 %v3582
    %v3622 = vpop.f32.mrb[0].mxu0
    %v3623 = vadd.f32 0.0, %v3622
    %v3624 = vpop.f32.mrb[0].mxu0
    %v3625 = vadd.f32 0.0, %v3624
    %v3626 = vpop.f32.mrb[0].mxu0
    %v3627 = vpop.f32.mrb[0].mxu0
    %3628 = vdwg.mxu0
    %v3631 = vrot.slane %v3623, 2
    %v3632 = vrot.slane %v3625, 2
    %v3635 = vadd.f32 %v666, %v3631
    %v3636 = vadd.f32 %v668, %v3632
    %v3637 = vxor.u32 %v3635, 2147483648
    %v3638 = vxor.u32 %v3636, 2147483648
    %v3639 = vmul.f32 %v3637, 1.442695
    %v3640 = vpow.pop %v3639
    %v3641 = vmul.f32 %v3638, 1.442695
    %v3642 = vpow.pop %v3641
    %v3643 = vadd.f32 %v3640, 1.0
    %v3644 = vadd.f32 %v3642, 1.0
    %v3645 = vrcp.pop %v3643
    %v3646 = vmul.f32 1.0, %v3645
    %v3647 = vrcp.pop %v3644
    %v3648 = vmul.f32 1.0, %v3647
    %3649 = vmatprep.subr.bf16.mxu0 %v2138
    %3650 = vmatpush1.bf16.msra.mxu0 %v2137
    %3651 = vmatprep.subr.bf16.mxu0 %v2140
    %3652 = vmatpush1.bf16.msra.mxu0 %v2139
    %3653 = vmatprep.subr.bf16.mxu0 %v2142
    %3654 = vmatpush1.bf16.msra.mxu0 %v2141
    %3655 = vmatprep.subr.bf16.mxu0 %v2144
    %3656 = vmatpush1.bf16.msra.mxu0 %v2143
    %3657 = vmatprep.subr.bf16.mxu0 %v2146
    %3658 = vmatpush1.bf16.msra.mxu0 %v2145
    %3659 = vmatprep.subr.bf16.mxu0 %v2148
    %3660 = vmatpush1.bf16.msra.mxu0 %v2147
    %3661 = vmatprep.subr.bf16.mxu0 %v2150
    %3662 = vmatpush1.bf16.msra.mxu0 %v2149
    %3663 = vmatprep.subr.bf16.mxu0 %v2152
    %3664 = vmatpush1.bf16.msra.mxu0 %v2151
    %3665 = vmatprep.subr.bf16.mxu0 %v2154
    %3666 = vmatpush1.bf16.msra.mxu0 %v2153
    %3667 = vmatprep.subr.bf16.mxu0 %v2179
    %3668 = vmatpush1.bf16.msra.mxu0 %v2176
    %3669 = vmatprep.subr.bf16.mxu0 0
    %3670 = vmatpush1.bf16.msra.mxu0 0
    %3671 = vmatprep.subr.bf16.mxu0 0
    %3672 = vmatpush1.bf16.msra.mxu0 0
    %3673 = vmatprep.subr.bf16.mxu0 0
    %3674 = vmatpush1.bf16.msra.mxu0 0
    %3675 = vmatprep.subr.bf16.mxu0 0
    %3676 = vmatpush1.bf16.msra.mxu0 0
    %3677 = vmatprep.subr.bf16.mxu0 0
    %3678 = vmatpush1.bf16.msra.mxu0 0
    %3679 = vmatprep.subr.bf16.mxu0 0
    %3680 = vmatpush1.bf16.msra.mxu0 0
    %3681 = vmatprep.mubr.bf16.mxu0 %v3586
    %3682 = vmatmul.mubr.bf16.gmra.mrb[0].mxu0 %v3582
    %v3683 = vpop.f32.mrb[0].mxu0
    %v3684 = vadd.f32 0.0, %v3683
    %v3685 = vpop.f32.mrb[0].mxu0
    %v3686 = vadd.f32 0.0, %v3685
    %v3687 = vpop.f32.mrb[0].mxu0
    %v3688 = vpop.f32.mrb[0].mxu0
    %3689 = vdwg.mxu0
    %v3692 = vrot.slane %v3684, 2
    %v3693 = vrot.slane %v3686, 2
    %v3696 = vadd.f32 %v1265, %v3692
    %v3697 = vadd.f32 %v1267, %v3693
    %v3698 = vxor.u32 %v3696, 2147483648
    %v3699 = vxor.u32 %v3697, 2147483648
    %v3700 = vmul.f32 %v3698, 1.442695
    %v3701 = vpow.pop %v3700
    %v3702 = vmul.f32 %v3699, 1.442695
    %v3703 = vpow.pop %v3702
    %v3704 = vadd.f32 %v3701, 1.0
    %v3705 = vadd.f32 %v3703, 1.0
    %v3706 = vrcp.pop %v3704
    %v3707 = vmul.f32 1.0, %v3706
    %v3708 = vrcp.pop %v3705
    %v3709 = vmul.f32 1.0, %v3708
    %3710 = vmatprep.subr.bf16.mxu0 %v2314
    %3711 = vmatpush1.bf16.msra.mxu0 %v2313
    %3712 = vmatprep.subr.bf16.mxu0 %v2316
    %3713 = vmatpush1.bf16.msra.mxu0 %v2315
    %3714 = vmatprep.subr.bf16.mxu0 %v2318
    %3715 = vmatpush1.bf16.msra.mxu0 %v2317
    %3716 = vmatprep.subr.bf16.mxu0 %v2320
    %3717 = vmatpush1.bf16.msra.mxu0 %v2319
    %3718 = vmatprep.subr.bf16.mxu0 %v2322
    %3719 = vmatpush1.bf16.msra.mxu0 %v2321
    %3720 = vmatprep.subr.bf16.mxu0 %v2324
    %3721 = vmatpush1.bf16.msra.mxu0 %v2323
    %3722 = vmatprep.subr.bf16.mxu0 %v2326
    %3723 = vmatpush1.bf16.msra.mxu0 %v2325
    %3724 = vmatprep.subr.bf16.mxu0 %v2328
    %3725 = vmatpush1.bf16.msra.mxu0 %v2327
    %3726 = vmatprep.subr.bf16.mxu0 %v2330
    %3727 = vmatpush1.bf16.msra.mxu0 %v2329
    %3728 = vmatprep.subr.bf16.mxu0 %v2355
    %3729 = vmatpush1.bf16.msra.mxu0 %v2352
    %3730 = vmatprep.subr.bf16.mxu0 0
    %3731 = vmatpush1.bf16.msra.mxu0 0
    %3732 = vmatprep.subr.bf16.mxu0 0
    %3733 = vmatpush1.bf16.msra.mxu0 0
    %3734 = vmatprep.subr.bf16.mxu0 0
    %3735 = vmatpush1.bf16.msra.mxu0 0
    %3736 = vmatprep.subr.bf16.mxu0 0
    %3737 = vmatpush1.bf16.msra.mxu0 0
    %3738 = vmatprep.subr.bf16.mxu0 0
    %3739 = vmatpush1.bf16.msra.mxu0 0
    %3740 = vmatprep.subr.bf16.mxu0 0
    %3741 = vmatpush1.bf16.msra.mxu0 0
    %3742 = vmatprep.mubr.bf16.mxu0 %v3586
    %3743 = vmatmul.mubr.bf16.gmra.mrb[0].mxu0 %v3582
    %v3744 = vpop.f32.mrb[0].mxu0
    %v3745 = vadd.f32 %v1873, %v3744
    %v3746 = vpop.f32.mrb[0].mxu0
    %v3747 = vadd.f32 %v1877, %v3746
    %v3748 = vpop.f32.mrb[0].mxu0
    %v3749 = vpop.f32.mrb[0].mxu0
    %3750 = vdwg.mxu0
    %v3753 = vrot.slane %v3745, 2
    %v3754 = vrot.slane %v3747, 2
    %v3757 = vmul.f32 %v3646, %v3753
    %v3758 = vmul.f32 %v3648, %v3754
    %v3759 = vadd.f32 %v1864, %v3757
    %v3760 = vadd.f32 %v1866, %v3758
    %v3761 = vtanh.pop %v3759
    %v3762 = vtanh.pop %v3760
    %v3763 = vsub.f32 1.0, %v3707
    %v3764 = vsub.f32 1.0, %v3709
    %v3765 = vmul.f32 %v3763, %v3761
    %v3766 = vmul.f32 %v3764, %v3762
    %v3769 = vrot.slane %v3576, 6
    %v3770 = vrot.slane %v3577, 6
    %v3773 = vmul.f32 %v3707, %v3769
    %v3774 = vmul.f32 %v3709, %v3770
    %v3775 = vadd.f32 %v3765, %v3773
    %v3776 = vadd.f32 %v3766, %v3774
    %v3777 = vld [vmem:[%s5] sm:$0xf]
    %v3778 = vxor.u32 %v3777, 2147483648
    %v3779 = vmul.f32 %v3778, 1.442695
    %v3780 = vpow.pop %v3779
    %v3781 = vadd.f32 %v3780, 1.0
    %v3782 = vrcp.pop %v3781
    %v3783 = vmul.f32 1.0, %v3782
    %s3784 = scalar_lea.vmem %s5, 4
    %v3785 = vld [vmem:[%s3784] sm:$0xf]
    %v3786 = vxor.u32 %v3785, 2147483648
    %v3787 = vmul.f32 %v3786, 1.442695
    %v3788 = vpow.pop %v3787
    %v3789 = vadd.f32 %v3788, 1.0
    %v3790 = vrcp.pop %v3789
    %v3791 = vmul.f32 1.0, %v3790
    %s3792 = scalar_lea.vmem %s5, 8
    %v3793 = vld [vmem:[%s3792] sm:$0xf]
    %v3794 = vld [vmem:[%s6] sm:$0x3]
    %v3796 = vlaneseq
    %v3797 = vshrl.u32 %v3796, 7
    %v3798 = vsub.s32 0, %v3797
    %v3799 = vrot.slane %v3794, %v3798
    %v3800 = vlaneseq
    %v3801 = vshrl.u32 %v3800, 7
    %v3802 = vsub.s32 1, %v3801
    %v3803 = vrot.slane %v3794, %v3802
    %v3804 = vcombine.low %v3799, %v3803
    %v3806 = vunpack.c.l.s4 1983009808
    %v3807 = vunpack.c.0.s8 %v3806
    %v3808 = vlaneseq
    %v3809 = vshrl.u32 %v3808, 7
    %v3810 = vsub.s32 %v3807, %v3809
    %v3811 = vrot.slane %v3804, %v3810
    %v3813 = vmul.f32 %v3783, %v3811
    %v3814 = vadd.f32 %v3793, %v3813
    %v3815 = vtanh.pop %v3814
    %v3816 = vsub.f32 1.0, %v3791
    %v3817 = vmul.f32 %v3816, %v3815
    %v3818 = vld [vmem:[%s7] sm:$0xff]
    %v3819 = vld [vmem:[%s7 + $0x8] sm:$0xff]
    %v3820 = vld [vmem:[%s7 + $0x10] sm:$0xff]
    %v3821 = vld [vmem:[%s7 + $0x18] sm:$0xff]
    %v3822 = vld [vmem:[%s7 + $0x20] sm:$0xff]
    %v3823 = vld [vmem:[%s7 + $0x28] sm:$0xff]
    %v3824 = vld [vmem:[%s7 + $0x30] sm:$0xff]
    %v3825 = vld [vmem:[%s7 + $0x38] sm:$0xff]
    %v3826 = vld [vmem:[%s7 + $0x40] sm:$0xff]
    %v3827 = vld [vmem:[%s7 + $0x48] sm:$0xff]
    %v3828 = vld [vmem:[%s7 + $0x50] sm:$0xff]
    %v3829 = vld [vmem:[%s7 + $0x58] sm:$0xff]
    %v3830 = vld [vmem:[%s7 + $0x60] sm:$0xff]
    %v3831 = vld [vmem:[%s7 + $0x68] sm:$0xff]
    %v3832 = vld [vmem:[%s7 + $0x70] sm:$0xff]
    %v3833 = vld [vmem:[%s7 + $0x78] sm:$0xff]
    %v3834 = vld [vmem:[%s7 + $0x80] sm:$0xff]
    %v3835 = vld [vmem:[%s7 + $0x88] sm:$0xff]
    %v3836 = vld [vmem:[%s7 + $0x90] sm:$0x3f]
    %v3837 = vld [vmem:[%s8] sm:$0xff]
    %v3838 = vld [vmem:[%s8 + $0x8] sm:$0xff]
    %v3839 = vld [vmem:[%s8 + $0x10] sm:$0xff]
    %v3840 = vld [vmem:[%s8 + $0x18] sm:$0xff]
    %v3841 = vld [vmem:[%s8 + $0x20] sm:$0xff]
    %v3842 = vld [vmem:[%s8 + $0x28] sm:$0xff]
    %v3843 = vld [vmem:[%s8 + $0x30] sm:$0xff]
    %v3844 = vld [vmem:[%s8 + $0x38] sm:$0xff]
    %v3845 = vld [vmem:[%s8 + $0x40] sm:$0xff]
    %v3846 = vld [vmem:[%s8 + $0x48] sm:$0xff]
    %v3847 = vld [vmem:[%s8 + $0x50] sm:$0xff]
    %v3848 = vld [vmem:[%s8 + $0x58] sm:$0xff]
    %v3849 = vld [vmem:[%s8 + $0x60] sm:$0xff]
    %v3850 = vld [vmem:[%s8 + $0x68] sm:$0xff]
    %v3851 = vld [vmem:[%s8 + $0x70] sm:$0xff]
    %v3852 = vld [vmem:[%s8 + $0x78] sm:$0xff]
    %v3853 = vld [vmem:[%s8 + $0x80] sm:$0xff]
    %v3854 = vld [vmem:[%s8 + $0x88] sm:$0xff]
    %v3855 = vld [vmem:[%s8 + $0x90] sm:$0x3f]
    %v3858 = vunpack.c.l.s4 1983009808
    %v3859 = vunpack.c.0.s8 %v3858
    %v3860 = vlaneseq
    %v3861 = vshrl.u32 %v3860, 7
    %v3862 = vsub.s32 %v3859, %v3861
    %v3863 = vrot.slane %v3817, %v3862
    %v3864 = vcombine.high %v3863, %v3863
    %v3866 = vsel %vm1994, %v3864, 0
    %vm3868 = vcmask 1045504
    %v3870 = vsel %vm3868, %v3855, 0
    %3872 = vmatprep.subr.mxu0 0.0
    %3873 = vmatpush1.msra.mxu0 %v3837
    %3874 = vmatprep.subr.mxu0 0.0
    %3875 = vmatpush1.msra.mxu0 %v3838
    %3876 = vmatprep.subr.mxu0 0.0
    %3877 = vmatpush1.msra.mxu0 %v3839
    %3878 = vmatprep.subr.mxu0 0.0
    %3879 = vmatpush1.msra.mxu0 %v3840
    %3880 = vmatprep.subr.mxu0 0.0
    %3881 = vmatpush1.msra.mxu0 %v3841
    %3882 = vmatprep.subr.mxu0 0.0
    %3883 = vmatpush1.msra.mxu0 %v3842
    %3884 = vmatprep.subr.mxu0 0.0
    %3885 = vmatpush1.msra.mxu0 %v3843
    %3886 = vmatprep.subr.mxu0 0.0
    %3887 = vmatpush1.msra.mxu0 %v3844
    %3888 = vmatprep.subr.mxu0 0.0
    %3889 = vmatpush1.msra.mxu0 %v3845
    %3890 = vmatprep.subr.mxu0 0.0
    %3891 = vmatpush1.msra.mxu0 %v3846
    %3892 = vmatprep.subr.mxu0 0.0
    %3893 = vmatpush1.msra.mxu0 %v3847
    %3894 = vmatprep.subr.mxu0 0.0
    %3895 = vmatpush1.msra.mxu0 %v3848
    %3896 = vmatprep.subr.mxu0 0.0
    %3897 = vmatpush1.msra.mxu0 %v3849
    %3898 = vmatprep.subr.mxu0 0.0
    %3899 = vmatpush1.msra.mxu0 %v3850
    %3900 = vmatprep.subr.mxu0 0.0
    %3901 = vmatpush1.msra.mxu0 %v3851
    %3902 = vmatprep.subr.mxu0 0.0
    %3903 = vmatpush1.msra.mxu0 %v3852
    %3904 = vmatprep.subr.mxu0 0.0
    %3905 = vmatpush1.msra.mxu0 %v3853
    %3906 = vmatprep.subr.mxu0 0.0
    %3907 = vmatpush1.msra.mxu0 %v3854
    %3908 = vmatprep.subr.mxu0 0.0
    %3909 = vmatpush1.msra.mxu0 %v3870
    %3910 = vmatprep.subr.mxu0 0.0
    %3911 = vmatpush1.msra.mxu0 0.0
    %3912 = vmatprep.subr.mxu0 0.0
    %3913 = vmatpush1.msra.mxu0 0.0
    %3914 = vmatprep.subr.mxu0 0.0
    %3915 = vmatpush1.msra.mxu0 0.0
    %3916 = vmatprep.subr.mxu0 0.0
    %3917 = vmatpush1.msra.mxu0 0.0
    %3918 = vmatprep.subr.mxu0 0.0
    %3919 = vmatpush1.msra.mxu0 0.0
    %3920 = vmatprep.subr.mxu0 0.0
    %3921 = vmatpush1.msra.mxu0 0.0
    %3922 = vmatprep.subr.mxu0 0.0
    %3923 = vmatpush1.msra.mxu0 0.0
    %3924 = vmatprep.subr.mxu0 0.0
    %3925 = vmatpush1.msra.mxu0 0.0
    %3926 = vmatprep.subr.mxu0 0.0
    %3927 = vmatpush1.msra.mxu0 0.0
    %3928 = vmatprep.subr.mxu0 0.0
    %3929 = vmatpush1.msra.mxu0 0.0
    %3930 = vmatprep.subr.mxu0 0.0
    %3931 = vmatpush1.msra.mxu0 0.0
    %3932 = vmatprep.subr.mxu0 0.0
    %3933 = vmatpush1.msra.mxu0 0.0
    %3934 = vmatprep.subr.mxu0 0.0
    %3935 = vmatpush1.msra.mxu0 0.0
    %3936 = vmatprep.mubr.f32.mxu0 %v3866
    %3937 = vmatmul.mubr.f32.gmra.mrb[0].mxu0 %v3863
    %v3938 = vpop.f32.mrb[0].mxu0
    %v3939 = vadd.f32 0.0, %v3938
    %v3940 = vpop.f32.mrb[0].mxu0
    %3941 = vdwg.mxu0
    %v3944 = vrot.slane %v3775, 6
    %v3945 = vrot.slane %v3776, 6
    %v3947 = vsel %vm1994, %v3945, 0
    %v3950 = vsel %vm3868, %v3836, 0
    %3952 = vmatprep.subr.mxu0 0.0
    %3953 = vmatpush1.msra.mxu0 %v3818
    %3954 = vmatprep.subr.mxu0 0.0
    %3955 = vmatpush1.msra.mxu0 %v3819
    %3956 = vmatprep.subr.mxu0 0.0
    %3957 = vmatpush1.msra.mxu0 %v3820
    %3958 = vmatprep.subr.mxu0 0.0
    %3959 = vmatpush1.msra.mxu0 %v3821
    %3960 = vmatprep.subr.mxu0 0.0
    %3961 = vmatpush1.msra.mxu0 %v3822
    %3962 = vmatprep.subr.mxu0 0.0
    %3963 = vmatpush1.msra.mxu0 %v3823
    %3964 = vmatprep.subr.mxu0 0.0
    %3965 = vmatpush1.msra.mxu0 %v3824
    %3966 = vmatprep.subr.mxu0 0.0
    %3967 = vmatpush1.msra.mxu0 %v3825
    %3968 = vmatprep.subr.mxu0 0.0
    %3969 = vmatpush1.msra.mxu0 %v3826
    %3970 = vmatprep.subr.mxu0 0.0
    %3971 = vmatpush1.msra.mxu0 %v3827
    %3972 = vmatprep.subr.mxu0 0.0
    %3973 = vmatpush1.msra.mxu0 %v3828
    %3974 = vmatprep.subr.mxu0 0.0
    %3975 = vmatpush1.msra.mxu0 %v3829
    %3976 = vmatprep.subr.mxu0 0.0
    %3977 = vmatpush1.msra.mxu0 %v3830
    %3978 = vmatprep.subr.mxu0 0.0
    %3979 = vmatpush1.msra.mxu0 %v3831
    %3980 = vmatprep.subr.mxu0 0.0
    %3981 = vmatpush1.msra.mxu0 %v3832
    %3982 = vmatprep.subr.mxu0 0.0
    %3983 = vmatpush1.msra.mxu0 %v3833
    %3984 = vmatprep.subr.mxu0 0.0
    %3985 = vmatpush1.msra.mxu0 %v3834
    %3986 = vmatprep.subr.mxu0 0.0
    %3987 = vmatpush1.msra.mxu0 %v3835
    %3988 = vmatprep.subr.mxu0 0.0
    %3989 = vmatpush1.msra.mxu0 %v3950
    %3990 = vmatprep.subr.mxu0 0.0
    %3991 = vmatpush1.msra.mxu0 0.0
    %3992 = vmatprep.subr.mxu0 0.0
    %3993 = vmatpush1.msra.mxu0 0.0
    %3994 = vmatprep.subr.mxu0 0.0
    %3995 = vmatpush1.msra.mxu0 0.0
    %3996 = vmatprep.subr.mxu0 0.0
    %3997 = vmatpush1.msra.mxu0 0.0
    %3998 = vmatprep.subr.mxu0 0.0
    %3999 = vmatpush1.msra.mxu0 0.0
    %4000 = vmatprep.subr.mxu0 0.0
    %4001 = vmatpush1.msra.mxu0 0.0
    %4002 = vmatprep.subr.mxu0 0.0
    %4003 = vmatpush1.msra.mxu0 0.0
    %4004 = vmatprep.subr.mxu0 0.0
    %4005 = vmatpush1.msra.mxu0 0.0
    %4006 = vmatprep.subr.mxu0 0.0
    %4007 = vmatpush1.msra.mxu0 0.0
    %4008 = vmatprep.subr.mxu0 0.0
    %4009 = vmatpush1.msra.mxu0 0.0
    %4010 = vmatprep.subr.mxu0 0.0
    %4011 = vmatpush1.msra.mxu0 0.0
    %4012 = vmatprep.subr.mxu0 0.0
    %4013 = vmatpush1.msra.mxu0 0.0
    %4014 = vmatprep.subr.mxu0 0.0
    %4015 = vmatpush1.msra.mxu0 0.0
    %4016 = vmatprep.mubr.f32.mxu0 %v3947
    %4017 = vmatmul.mubr.f32.gmra.mrb[0].mxu0 %v3944
    %v4018 = vpop.f32.mrb[0].mxu0
    %v4019 = vadd.f32 %v3939, %v4018
    %v4020 = vpop.f32.mrb[0].mxu0
    %4021 = vdwg.mxu0
    %v4022 = vld [vmem:[%s9] sm:$0x1]
    %v4024 = vlaneseq
    %v4025 = vshrl.u32 %v4024, 7
    %v4026 = vsub.s32 0, %v4025
    %v4027 = vrot.slane %v4022, %v4026
    %v4029 = vadd.f32 %v4019, %v4027
    %vm4030 = vcmask 17408
    %4031 = vst.msk [vmem:[#allocation2] sm:$0x3] %vm4030, %v4029
    // Predicated region
    $region42: #{aelstm_forward.1} parent=1 // pred_check
      _
    $region43: #{aelstm_forward.1} parent=1 // pred_check_branch
      %4033 = sbr.rel (0) target = $region45
    $region44: #{aelstm_forward.1} parent=1 // pred_region
      %s4035 = ssub.s32 32, 32
      %4036 = vsyncadd [#allocation3], %s4035
      %s4038 = sshll.u32 [#allocation2], 4
      %s4039 = int_to_ptr.vmem [resolvable:$true] %s4038
      %4041 = dma.vmem_to_hbm [thread:$0]  %s4039, 32, %s10, [#allocation3]
    $region45: #{aelstm_forward.1} parent=1 // pred_fallthru
      _
    // Predicated region
    $region46: #{aelstm_forward.1} parent=1 // pred_check
      _
    $region47: #{aelstm_forward.1} parent=1 // pred_check_branch
      %4043 = sbr.rel (0) target = $region49
    $region48: #{aelstm_forward.1} parent=1 // pred_region
      %4044 = dma.done [#allocation3], 32
    $region49: #{aelstm_forward.1} parent=1 // pred_fallthru
      _
    %4045 = vsyncpa [#allocation3], 1

</llo_original>
